<compile_context>
chip_gen: v5e
topology: v5e:2x2
jax: 0.10.0
libtpu: 0.0.40
codegen_flags: <defaults>
</compile_context>

<pallas_src>
import math

import numpy as np

import jax
import jax.numpy as jnp
from jax.experimental import pallas as pl
from jax.experimental.pallas import tpu as pltpu


_GN_EPS = 1e-5
_VMEM_LIMIT = 32 * 1024 * 1024

_Q = 81            # 9*9 base rows per sample (7x7 valid pixels + padding ring)
_ROWS = 104        # padded flat rows per sample (>= 81 + max tap offset 20)
_TAP_OFFS = tuple(9 * a + b for a in range(3) for b in range(3))

# For output-row parity rho and union tap offset a in {0,1,2} of a k4/s2/p1
# deconv applied to a phase-packed input: unpadded input row = 2*(i'+dI) + r2.
_ROWMAP = {0: [(-1, 1), (0, 0), (0, 1)], 1: [(0, 0), (0, 1), (1, 0)]}


# ----------------------------------------------------------------------------
# Exact GELU (erf via Abramowitz-Stegun 7.1.26, abs err < 1.5e-7) so the
# kernels only need exp / mul / add / where.
# ----------------------------------------------------------------------------
def _erf(x):
    a1, a2, a3, a4, a5 = (0.254829592, -0.284496736, 1.421413741,
                          -1.453152027, 1.061405429)
    p = 0.3275911
    s = jnp.where(x >= 0, 1.0, -1.0)
    ax = jnp.abs(x)
    t = 1.0 / (1.0 + p * ax)
    poly = t * (a1 + t * (a2 + t * (a3 + t * (a4 + t * a5))))
    return s * (1.0 - poly * jnp.exp(-ax * ax))


def _gelu(x):
    return 0.5 * x * (1.0 + _erf(x * (1.0 / math.sqrt(2.0))))


# ----------------------------------------------------------------------------
# Kernel 1: head block.  y = GELU(GroupNorm1(z @ W1)), z tile: (BT, L),
# W1: (L, 49F) lane-dense, affine params pre-tiled to 784 columns.
# GroupNorm(1, F) over (F, 7, 7) == per-row normalization over all columns.
# ----------------------------------------------------------------------------
def _head_kernel(z_ref, w_ref, g_ref, b_ref, o_ref):
    y = jnp.dot(z_ref[...], w_ref[...], preferred_element_type=jnp.float32)
    inv_n = 1.0 / float(y.shape[1])
    mean = jnp.sum(y, axis=1, keepdims=True) * inv_n
    ex2 = jnp.sum(y * y, axis=1, keepdims=True) * inv_n
    inv = jax.lax.rsqrt(ex2 - mean * mean + _GN_EPS)          # one-pass stats
    o_ref[...] = _gelu((y - mean) * inv * g_ref[...] + b_ref[...]).astype(
        o_ref.dtype)


def _head_call(z, w1p, g1t, b1t):
    B, L = z.shape
    N = w1p.shape[1]
    bt = min(B, 128)                                  # MXU-friendly batch tile
    grid = (pl.cdiv(B, bt),)
    return pl.pallas_call(
        _head_kernel,
        out_shape=jax.ShapeDtypeStruct((B, N), jnp.float32),
        grid=grid,
        in_specs=[
            pl.BlockSpec((bt, L), lambda i: (i, 0)),
            pl.BlockSpec((L, N), lambda i: (0, 0)),
            pl.BlockSpec((1, N), lambda i: (0, 0)),
            pl.BlockSpec((1, N), lambda i: (0, 0)),
        ],
        out_specs=pl.BlockSpec((bt, N), lambda i: (i, 0)),
        compiler_params=pltpu.CompilerParams(
            dimension_semantics=("parallel",),
            vmem_limit_bytes=_VMEM_LIMIT),
    )(z, w1p, g1t, b1t)


# ----------------------------------------------------------------------------
# Kernel 2: fused  ConvT(4,2,1)+GN+GELU  ->  ConvT(4,2,1)+GN+GELU
#                  ->  Conv2d(F,1,1)+bias+Sigmoid,  one sample per grid step.
#
#   a1_ref : (104, F)    padded-flat 7x7 activation (rows q = 9*i_pad + j_pad,
#                         rows >= 81 and the padding ring are zero)
#   w2_ref : (9, F, 4F)  per-tap block-2 weights, output phases lane-packed
#   w3_ref : (9, 4F,16F) per-tap block-3 weights, (parity, phase) lane-packed
#   w4_ref : (16F, 16)   packed 1x1-conv weights
#   m_ref  : (81, 1)     valid-row mask (i < 7 and j < 7)
#   o_ref  : (81, 16)    final pixels, cols = (parity 2rho+sigma, phase 2R+C)
#   a2s_ref: (104, 4F)   VMEM scratch: block-2 output re-staged padded-flat
# ----------------------------------------------------------------------------
def _main_kernel(a1_ref, w2_ref, g2_ref, b2_ref, w3_ref, g3_ref, b3_ref,
                 w4_ref, b4_ref, m_ref, o_ref, a2s_ref):
    f32 = jnp.float32
    m = m_ref[...]                                             # (81, 1)

    # ---- block 2: 9 shifted-row MXU dots == (81, 9F) @ (9F, 4F) union matmul
    y2 = None
    for t, off in enumerate(_TAP_OFFS):
        d = jnp.dot(a1_ref[off:off + _Q, :], w2_ref[t],
                    preferred_element_type=f32)                # (81, 4F)
        y2 = d if y2 is None else y2 + d
    n2 = 49.0 * float(y2.shape[1])                             # F * 14 * 14
    mean2 = jnp.sum(y2 * m, keepdims=True) / n2
    ex2 = jnp.sum(y2 * y2 * m, keepdims=True) / n2
    inv2 = jax.lax.rsqrt(ex2 - mean2 * mean2 + _GN_EPS)
    a2 = _gelu((y2 - mean2) * inv2 * g2_ref[...] + b2_ref[...]) * m

    # ---- re-stage block-2 output into the padded-flat 9x9 block layout ----
    c2 = a2.shape[1]
    a2s_ref[0:10, :] = jnp.zeros((10, c2), f32)
    a2s_ref[10:10 + _Q, :] = a2
    a2s_ref[10 + _Q:_ROWS, :] = jnp.zeros((_ROWS - 10 - _Q, c2), f32)

    # ---- block 3: all 4 output parities at once, lane-packed (81, 16F) ----
    y3 = None
    for t, off in enumerate(_TAP_OFFS):
        d = jnp.dot(a2s_ref[off:off + _Q, :], w3_ref[t],
                    preferred_element_type=f32)                # (81, 16F)
        y3 = d if y3 is None else y3 + d
    n3 = 49.0 * float(y3.shape[1])                             # F * 28 * 28
    mean3 = jnp.sum(y3 * m, keepdims=True) / n3
    ex3 = jnp.sum(y3 * y3 * m, keepdims=True) / n3
    inv3 = jax.lax.rsqrt(ex3 - mean3 * mean3 + _GN_EPS)
    a3 = _gelu((y3 - mean3) * inv3 * g3_ref[...] + b3_ref[...])

    # ---- 1x1 conv to 1 channel + bias + sigmoid ----
    logits = jnp.dot(a3, w4_ref[...], preferred_element_type=f32) + b4_ref[...]
    sig = pl.reciprocal(1.0 + jnp.exp(-logits), approx=True)
    o_ref[...] = sig.astype(o_ref.dtype)


def _main_call(a1pad, w2u, g2t, b2t, w3u, g3t, b3t, w4m, b4r, mask):
    B, _, F = a1pad.shape
    F4 = w2u.shape[2]
    return pl.pallas_call(
        _main_kernel,
        out_shape=jax.ShapeDtypeStruct((B, _Q, 16), jnp.float32),
        grid=(B,),
        in_specs=[
            pl.BlockSpec((None, _ROWS, F), lambda b: (b, 0, 0)),
            pl.BlockSpec(w2u.shape, lambda b: (0, 0, 0)),
            pl.BlockSpec(g2t.shape, lambda b: (0, 0)),
            pl.BlockSpec(b2t.shape, lambda b: (0, 0)),
            pl.BlockSpec(w3u.shape, lambda b: (0, 0, 0)),
            pl.BlockSpec(g3t.shape, lambda b: (0, 0)),
            pl.BlockSpec(b3t.shape, lambda b: (0, 0)),
            pl.BlockSpec(w4m.shape, lambda b: (0, 0)),
            pl.BlockSpec(b4r.shape, lambda b: (0, 0)),
            pl.BlockSpec(mask.shape, lambda b: (0, 0)),
        ],
        out_specs=pl.BlockSpec((None, _Q, 16), lambda b: (b, 0, 0)),
        scratch_shapes=[pltpu.VMEM((_ROWS, F4), jnp.float32)],
        compiler_params=pltpu.CompilerParams(
            dimension_semantics=("parallel",),
            vmem_limit_bytes=_VMEM_LIMIT),
    )(a1pad, w2u, g2t, b2t, w3u, g3t, b3t, w4m, b4r, mask)


# ----------------------------------------------------------------------------
# Host-side weight re-packing (PyTorch layouts -> kernel layouts).
# ----------------------------------------------------------------------------
def _union_weight_b2(w2, F):
    """ConvT(F,F,4,2,1) weight (Cin,Cout,4,4) -> (9, F, 4F) per-tap matrices.

    Output col = p*F + f_out with p = 2r + c the output phase (pixel 2i+r,2j+c).
    Tap index t = 3a + b reads padded-input position (i+a, j+b)."""
    W = np.zeros((9, F, 4 * F), np.float32)
    for r in (0, 1):
        for c in (0, 1):
            p = 2 * r + c
            for di in (0, 1):
                for dj in (0, 1):
                    a, b = r + di, c + dj
                    ki, kj = 3 - r - 2 * di, 3 - c - 2 * dj
                    W[3 * a + b, :, p * F:(p + 1) * F] += w2[:, :, ki, kj]
    return W


def _union_weight_b3(w3, F):
    """Block-3 ConvT weight (F,F,4,4) -> (9, 4F, 16F) per-block-tap matrices.

    Rows: p_in*F + f_in (p_in = phase packing of block-2's output).
    Cols: parity*4F + p_out*F + f_out, parity = 2*rho + sigma (row/col parity
    of the base pixel in the 14x14 grid), p_out = 2R + C."""
    W = np.zeros((9, 4 * F, 16 * F), np.float32)
    for rho in (0, 1):
        for sigma in (0, 1):
            par = 2 * rho + sigma
            for R in (0, 1):
                for C in (0, 1):
                    p_out = 2 * R + C
                    for di in (0, 1):
                        for dj in (0, 1):
                            a, b = R + di, C + dj
                            ki, kj = 3 - R - 2 * di, 3 - C - 2 * dj
                            dI, r2 = _ROWMAP[rho][a]
                            dJ, c2 = _ROWMAP[sigma][b]
                            t = 3 * (dI + 1) + (dJ + 1)
                            p_in = 2 * r2 + c2
                            col0 = par * 4 * F + p_out * F
                            W[t, p_in * F:(p_in + 1) * F, col0:col0 + F] += \
                                w3[:, :, ki, kj]
    return W


def _w4_packed(w4_vec, F):
    """1x1 Conv2d(F,1) weight -> (16F, 16) so (81,16F) @ it gives all pixels."""
    W = np.zeros((16 * F, 16), np.float32)
    for kp in range(16):                      # (parity, out-phase) packed index
        W[kp * F:(kp + 1) * F, kp] = w4_vec
    return W


def init_torch_weights(key, latent_dim, features):
    ks = jax.random.split(key, 11)
    tn = lambda k, s: 0.02 * jax.random.truncated_normal(k, -2.0, 2.0, s,
                                                         jnp.float32)
    # GroupNorm affine defaults to ones/zeros in PyTorch; randomized slightly
    # here so the self-check exercises the per-channel affine / tiling paths.
    return {
        "w1": tn(ks[0], (latent_dim, features, 7, 7)),   # ConvT (Cin,Cout,k,k)
        "w2": tn(ks[1], (features, features, 4, 4)),
        "w3": tn(ks[2], (features, features, 4, 4)),
        "w4": tn(ks[3], (1, features, 1, 1)),            # Conv2d(F,1,1) weight
        "b4": 0.01 * jax.random.normal(ks[4], (1,), jnp.float32),
        "g1": 1.0 + 0.1 * jax.random.normal(ks[5], (features,), jnp.float32),
        "b1": 0.05 * jax.random.normal(ks[6], (features,), jnp.float32),
        "g2": 1.0 + 0.1 * jax.random.normal(ks[7], (features,), jnp.float32),
        "b2": 0.05 * jax.random.normal(ks[8], (features,), jnp.float32),
        "g3": 1.0 + 0.1 * jax.random.normal(ks[9], (features,), jnp.float32),
        "b3": 0.05 * jax.random.normal(ks[10], (features,), jnp.float32),
    }


def prepare_params(pt):
    L, F = pt["w1"].shape[0], pt["w1"].shape[1]
    w1 = np.asarray(pt["w1"])
    w2 = np.asarray(pt["w2"])
    w3 = np.asarray(pt["w3"])
    w4 = np.asarray(pt["w4"]).reshape(F)

    out = {
        # k7 deconv on a 1x1 input == matmul; columns ordered (i, j, f).
        "w1p": np.transpose(w1, (0, 2, 3, 1)).reshape(L, 49 * F),
        "g1t": np.tile(np.asarray(pt["g1"]), 49).reshape(1, 49 * F),
        "b1t": np.tile(np.asarray(pt["b1"]), 49).reshape(1, 49 * F),
        "w2u": _union_weight_b2(w2, F),
        "g2t": np.tile(np.asarray(pt["g2"]), 4).reshape(1, 4 * F),
        "b2t": np.tile(np.asarray(pt["b2"]), 4).reshape(1, 4 * F),
        "w3u": _union_weight_b3(w3, F),
        "g3t": np.tile(np.asarray(pt["g3"]), 16).reshape(1, 16 * F),
        "b3t": np.tile(np.asarray(pt["b3"]), 16).reshape(1, 16 * F),
        "w4m": _w4_packed(w4, F),
        "b4r": np.full((1, 16), float(np.asarray(pt["b4"]).reshape(())),
                       np.float32),
    }
    q = np.arange(_Q)
    out["mask"] = (((q // 9) < 7) & ((q % 9) < 7)).astype(np.float32
                                                          ).reshape(_Q, 1)
    return {k: jnp.asarray(v, jnp.float32) for k, v in out.items()}


# ----------------------------------------------------------------------------
# Forward pass (public API matches PyTorch: z is (N, latent_dim), out NCHW).
# ----------------------------------------------------------------------------
def generator_forward(params, z):
    B = z.shape[0]
    F = params["g2t"].shape[1] // 4

    # Block 1 (head kernel): ConvT(L,F,7,1,0) + GN + GELU, lane-dense (B,784).
    a1 = _head_call(z, params["w1p"], params["g1t"], params["b1t"])

    # Compact glue (~6 KB/sample): (B,49F) -> padded-flat (B, 104, F).
    a1 = a1.reshape(B, 7, 7, F)
    a1 = jnp.pad(a1, ((0, 0), (1, 1), (1, 1), (0, 0)))            # (B,9,9,F)
    a1 = a1.reshape(B, 81, F)
    a1 = jnp.pad(a1, ((0, 0), (0, _ROWS - 81), (0, 0)))           # (B,104,F)

    # Blocks 2 + 3 + 1x1 conv + sigmoid, fully fused in one kernel.
    y = _main_call(a1, params["w2u"], params["g2t"], params["b2t"],
                   params["w3u"], params["g3t"], params["b3t"],
                   params["w4m"], params["b4r"], params["mask"])   # (B,81,16)

    # Assemble the 28x28 image: pixel = (4i' + 2rho + R, 4j' + 2sigma + C).
    y = y.reshape(B, 9, 9, 16)[:, :7, :7, :]
    y = y.reshape(B, 7, 7, 2, 2, 2, 2)          # (b, i', j', rho, sigma, R, C)
    y = jnp.transpose(y, (0, 1, 3, 5, 2, 4, 6)) # (b, i', rho, R, j', sigma, C)
    return y.reshape(B, 1, 28, 28)


# ----------------------------------------------------------------------------
# Pure-JAX reference (direct transposed-conv formula) for the self-check.
# ----------------------------------------------------------------------------
def _ref_conv_transpose(x, w, stride, padding):
    B, Ci, H, W = x.shape
    k = w.shape[2]
    Hf = (H - 1) * stride + k
    out = jnp.zeros((B, w.shape[1], Hf, Hf), jnp.float32)
    for ki in range(k):
        for kj in range(k):
            contrib = jnp.einsum('bchw,cd->bdhw', x, w[:, :, ki, kj])
            out = out.at[:, :, ki:ki + stride * H:stride,
                         kj:kj + stride * W:stride].add(contrib)
    return out[:, :, padding:Hf - padding, padding:Hf - padding]


def _ref_gn_gelu(x, gamma, beta):
    mean = jnp.mean(x, axis=(1, 2, 3), keepdims=True)
    var = jnp.mean((x - mean) ** 2, axis=(1, 2, 3), keepdims=True)
    xn = (x - mean) / jnp.sqrt(var + _GN_EPS)
    xn = xn * gamma[None, :, None, None] + beta[None, :, None, None]
    return jax.nn.gelu(xn, approximate=False)


def reference_forward(pt, z):
    x = z[:, :, None, None]
    x = _ref_gn_gelu(_ref_conv_transpose(x, pt["w1"], 1, 0), pt["g1"], pt["b1"])
    x = _ref_gn_gelu(_ref_conv_transpose(x, pt["w2"], 2, 1), pt["g2"], pt["b2"])
    x = _ref_gn_gelu(_ref_conv_transpose(x, pt["w3"], 2, 1), pt["g3"], pt["b3"])
    logits = jnp.einsum('bchw,oc->bohw', x, pt["w4"].reshape(1, -1))
    logits = logits + pt["b4"].reshape(1, 1, 1, 1)
    return jax.nn.sigmoid(logits)


if __name__ == "__main__":
    key = jax.random.PRNGKey(0)
    latent_dim, features, batch = 64, 16, 2
    pkey, xkey = jax.random.split(key)

    pt = init_torch_weights(pkey, latent_dim, features)
    params = prepare_params(pt)
    z = jax.random.normal(xkey, (batch, latent_dim), jnp.float32)

    out = jax.jit(generator_forward)(params, z)
    jax.block_until_ready(out)
    assert out.shape == (batch, 1, 28, 28) and out.dtype == jnp.float32

    ref = reference_forward(pt, z)
    err = float(jnp.max(jnp.abs(out - ref)))
    # Tolerance is dominated by the approximate EUP reciprocal in the final
    # sigmoid; any structural/weight-packing bug would be orders of magnitude
    # larger than this bound.
    assert err < 1e-2, f"mismatch vs pure-JAX reference: {err}"
    print("KERNEL_OK")
</pallas_src>

<mosaic_0001>
module attributes {stable_mosaic.version = 11 : i64} {
  func.func @_head_kernel(%arg0: i32, %arg1: memref<2x64xf32, #tpu.memory_space<vmem>>, %arg2: memref<64x784xf32, #tpu.memory_space<vmem>>, %arg3: memref<1x784xf32, #tpu.memory_space<vmem>>, %arg4: memref<1x784xf32, #tpu.memory_space<vmem>>, %arg5: memref<2x784xf32, #tpu.memory_space<vmem>>) attributes {dimension_semantics = [#tpu.dimension_semantics<parallel>], iteration_bounds = array<i64: 1>, scalar_prefetch = 0 : i64, scratch_operands = 0 : i64, tpu.core_type = #tpu.core_type<tc>, window_params = [{transform_indices = @transform_0, window_bounds = array<i64: 2, 64>}, {pipeline_mode = #tpu.pipeline_mode<synchronous>, transform_indices = @transform_1, window_bounds = array<i64: 64, 784>}, {pipeline_mode = #tpu.pipeline_mode<synchronous>, transform_indices = @transform_2, window_bounds = array<i64: 1, 784>}, {pipeline_mode = #tpu.pipeline_mode<synchronous>, transform_indices = @transform_3, window_bounds = array<i64: 1, 784>}, {transform_indices = @transform_4, window_bounds = array<i64: 2, 784>}]} {
    %c0 = arith.constant 0 : index
    %c0_0 = arith.constant 0 : index
    %0 = vector.load %arg1[%c0, %c0_0] : memref<2x64xf32, #tpu.memory_space<vmem>>, vector<2x64xf32>
    %c0_1 = arith.constant 0 : index
    %c0_2 = arith.constant 0 : index
    %1 = vector.load %arg2[%c0_1, %c0_2] : memref<64x784xf32, #tpu.memory_space<vmem>>, vector<64x784xf32>
    %cst = arith.constant dense<0.000000e+00> : vector<2x784xf32>
    %2 = tpu.matmul %0, %1, %cst {dimension_numbers = #tpu.dot_dimension_numbers<[1], [0], [0], [1], [0, 0, 1, 1], [], []>} : vector<2x64xf32>, vector<64x784xf32>, vector<2x784xf32> -> vector<2x784xf32>
    %cst_3 = arith.constant dense<0.000000e+00> : vector<2xf32>
    %3 = vector.multi_reduction <add>, %2, %cst_3 [1] : vector<2x784xf32> to vector<2xf32>
    %4 = vector.shape_cast %3 : vector<2xf32> to vector<2x1xf32>
    %cst_4 = arith.constant 0.00127551018 : f32
    %5 = vector.broadcast %cst_4 : f32 to vector<2x1xf32>
    %6 = arith.mulf %4, %5 : vector<2x1xf32>
    %7 = arith.mulf %2, %2 : vector<2x784xf32>
    %cst_5 = arith.constant dense<0.000000e+00> : vector<2xf32>
    %8 = vector.multi_reduction <add>, %7, %cst_5 [1] : vector<2x784xf32> to vector<2xf32>
    %9 = vector.shape_cast %8 : vector<2xf32> to vector<2x1xf32>
    %cst_6 = arith.constant 0.00127551018 : f32
    %10 = vector.broadcast %cst_6 : f32 to vector<2x1xf32>
    %11 = arith.mulf %9, %10 : vector<2x1xf32>
    %12 = arith.mulf %6, %6 : vector<2x1xf32>
    %13 = arith.subf %11, %12 : vector<2x1xf32>
    %cst_7 = arith.constant 9.99999974E-6 : f32
    %14 = vector.broadcast %cst_7 : f32 to vector<2x1xf32>
    %15 = arith.addf %13, %14 : vector<2x1xf32>
    %16 = math.rsqrt %15 : vector<2x1xf32>
    %17 = vector.broadcast %6 : vector<2x1xf32> to vector<2x784xf32>
    %18 = arith.subf %2, %17 : vector<2x784xf32>
    %19 = vector.broadcast %16 : vector<2x1xf32> to vector<2x784xf32>
    %20 = arith.mulf %18, %19 : vector<2x784xf32>
    %c0_8 = arith.constant 0 : index
    %c0_9 = arith.constant 0 : index
    %21 = vector.load %arg3[%c0_8, %c0_9] : memref<1x784xf32, #tpu.memory_space<vmem>>, vector<1x784xf32>
    %22 = vector.broadcast %21 : vector<1x784xf32> to vector<2x784xf32>
    %23 = arith.mulf %20, %22 : vector<2x784xf32>
    %c0_10 = arith.constant 0 : index
    %c0_11 = arith.constant 0 : index
    %24 = vector.load %arg4[%c0_10, %c0_11] : memref<1x784xf32, #tpu.memory_space<vmem>>, vector<1x784xf32>
    %25 = vector.broadcast %24 : vector<1x784xf32> to vector<2x784xf32>
    %26 = arith.addf %23, %25 : vector<2x784xf32>
    %cst_12 = arith.constant 5.000000e-01 : f32
    %27 = vector.broadcast %cst_12 : f32 to vector<2x784xf32>
    %28 = arith.mulf %27, %26 : vector<2x784xf32>
    %cst_13 = arith.constant 0.707106769 : f32
    %29 = vector.broadcast %cst_13 : f32 to vector<2x784xf32>
    %30 = arith.mulf %26, %29 : vector<2x784xf32>
    %cst_14 = arith.constant 0.000000e+00 : f32
    %31 = vector.broadcast %cst_14 : f32 to vector<2x784xf32>
    %32 = arith.cmpf oge, %30, %31 : vector<2x784xf32>
    %cst_15 = arith.constant 1.000000e+00 : f32
    %cst_16 = arith.constant -1.000000e+00 : f32
    %33 = vector.broadcast %cst_15 : f32 to vector<2x784xf32>
    %34 = vector.broadcast %cst_16 : f32 to vector<2x784xf32>
    %35 = arith.select %32, %33, %34 : vector<2x784xi1>, vector<2x784xf32>
    %36 = math.absf %30 : vector<2x784xf32>
    %cst_17 = arith.constant 0.327591091 : f32
    %37 = vector.broadcast %cst_17 : f32 to vector<2x784xf32>
    %38 = arith.mulf %37, %36 : vector<2x784xf32>
    %cst_18 = arith.constant 1.000000e+00 : f32
    %39 = vector.broadcast %cst_18 : f32 to vector<2x784xf32>
    %40 = arith.addf %39, %38 : vector<2x784xf32>
    %cst_19 = arith.constant 1.000000e+00 : f32
    %41 = vector.broadcast %cst_19 : f32 to vector<2x784xf32>
    %42 = arith.divf %41, %40 : vector<2x784xf32>
    %cst_20 = arith.constant 1.06140542 : f32
    %43 = vector.broadcast %cst_20 : f32 to vector<2x784xf32>
    %44 = arith.mulf %42, %43 : vector<2x784xf32>
    %cst_21 = arith.constant -1.45315206 : f32
    %45 = vector.broadcast %cst_21 : f32 to vector<2x784xf32>
    %46 = arith.addf %45, %44 : vector<2x784xf32>
    %47 = arith.mulf %42, %46 : vector<2x784xf32>
    %cst_22 = arith.constant 1.42141378 : f32
    %48 = vector.broadcast %cst_22 : f32 to vector<2x784xf32>
    %49 = arith.addf %48, %47 : vector<2x784xf32>
    %50 = arith.mulf %42, %49 : vector<2x784xf32>
    %cst_23 = arith.constant -0.284496725 : f32
    %51 = vector.broadcast %cst_23 : f32 to vector<2x784xf32>
    %52 = arith.addf %51, %50 : vector<2x784xf32>
    %53 = arith.mulf %42, %52 : vector<2x784xf32>
    %cst_24 = arith.constant 0.254829586 : f32
    %54 = vector.broadcast %cst_24 : f32 to vector<2x784xf32>
    %55 = arith.addf %54, %53 : vector<2x784xf32>
    %56 = arith.mulf %42, %55 : vector<2x784xf32>
    %cst_25 = arith.constant 0.000000e+00 : f32
    %57 = vector.broadcast %cst_25 : f32 to vector<2x784xf32>
    %58 = arith.subf %57, %36 : vector<2x784xf32>
    %59 = arith.mulf %58, %36 : vector<2x784xf32>
    %60 = math.exp %59 : vector<2x784xf32>
    %61 = arith.mulf %56, %60 : vector<2x784xf32>
    %cst_26 = arith.constant 1.000000e+00 : f32
    %62 = vector.broadcast %cst_26 : f32 to vector<2x784xf32>
    %63 = arith.subf %62, %61 : vector<2x784xf32>
    %64 = arith.mulf %35, %63 : vector<2x784xf32>
    %cst_27 = arith.constant 1.000000e+00 : f32
    %65 = vector.broadcast %cst_27 : f32 to vector<2x784xf32>
    %66 = arith.addf %65, %64 : vector<2x784xf32>
    %67 = arith.mulf %28, %66 : vector<2x784xf32>
    %c0_28 = arith.constant 0 : index
    %c0_29 = arith.constant 0 : index
    %68 = vector.load %arg5[%c0_28, %c0_29] : memref<2x784xf32, #tpu.memory_space<vmem>>, vector<2x784xf32>
    tpu.vector_store %arg5[%c0_28, %c0_29], %67 {strides = array<i32>} : memref<2x784xf32, #tpu.memory_space<vmem>>, vector<2x784xf32>,
    return
  }
  func.func @transform_0(%arg0: i32) -> (i32, i32) {
    %c0_i32 = arith.constant 0 : i32
    %c0_i32_0 = arith.constant 0 : i32
    return %arg0, %c0_i32 : i32, i32
  }
  func.func @transform_1(%arg0: i32) -> (i32, i32) {
    %c0_i32 = arith.constant 0 : i32
    %c0_i32_0 = arith.constant 0 : i32
    %c0_i32_1 = arith.constant 0 : i32
    return %c0_i32, %c0_i32_0 : i32, i32
  }
  func.func @transform_2(%arg0: i32) -> (i32, i32) {
    %c0_i32 = arith.constant 0 : i32
    %c0_i32_0 = arith.constant 0 : i32
    %c0_i32_1 = arith.constant 0 : i32
    return %c0_i32, %c0_i32_0 : i32, i32
  }
  func.func @transform_3(%arg0: i32) -> (i32, i32) {
    %c0_i32 = arith.constant 0 : i32
    %c0_i32_0 = arith.constant 0 : i32
    %c0_i32_1 = arith.constant 0 : i32
    return %c0_i32, %c0_i32_0 : i32, i32
  }
  func.func @transform_4(%arg0: i32) -> (i32, i32) {
    %c0_i32 = arith.constant 0 : i32
    %c0_i32_0 = arith.constant 0 : i32
    return %arg0, %c0_i32 : i32, i32
  }
}

module attributes {stable_mosaic.version = 11 : i64} {
  func.func @_main_kernel(%arg0: i32, %arg1: memref<1x104x16xf32, #tpu.memory_space<vmem>>, %arg2: memref<9x16x64xf32, #tpu.memory_space<vmem>>, %arg3: memref<1x64xf32, #tpu.memory_space<vmem>>, %arg4: memref<1x64xf32, #tpu.memory_space<vmem>>, %arg5: memref<9x64x256xf32, #tpu.memory_space<vmem>>, %arg6: memref<1x256xf32, #tpu.memory_space<vmem>>, %arg7: memref<1x256xf32, #tpu.memory_space<vmem>>, %arg8: memref<256x16xf32, #tpu.memory_space<vmem>>, %arg9: memref<1x16xf32, #tpu.memory_space<vmem>>, %arg10: memref<81x1xf32, #tpu.memory_space<vmem>>, %arg11: memref<1x81x16xf32, #tpu.memory_space<vmem>>, %arg12: memref<104x64xf32, #tpu.memory_space<vmem>>) attributes {dimension_semantics = [#tpu.dimension_semantics<parallel>], iteration_bounds = array<i64: 2>, scalar_prefetch = 0 : i64, scratch_operands = 1 : i64, tpu.core_type = #tpu.core_type<tc>, window_params = [{transform_indices = @transform_0, window_bounds = array<i64: 1, 104, 16>}, {pipeline_mode = #tpu.pipeline_mode<synchronous>, transform_indices = @transform_1, window_bounds = array<i64: 9, 16, 64>}, {pipeline_mode = #tpu.pipeline_mode<synchronous>, transform_indices = @transform_2, window_bounds = array<i64: 1, 64>}, {pipeline_mode = #tpu.pipeline_mode<synchronous>, transform_indices = @transform_3, window_bounds = array<i64: 1, 64>}, {pipeline_mode = #tpu.pipeline_mode<synchronous>, transform_indices = @transform_4, window_bounds = array<i64: 9, 64, 256>}, {pipeline_mode = #tpu.pipeline_mode<synchronous>, transform_indices = @transform_5, window_bounds = array<i64: 1, 256>}, {pipeline_mode = #tpu.pipeline_mode<synchronous>, transform_indices = @transform_6, window_bounds = array<i64: 1, 256>}, {pipeline_mode = #tpu.pipeline_mode<synchronous>, transform_indices = @transform_7, window_bounds = array<i64: 256, 16>}, {pipeline_mode = #tpu.pipeline_mode<synchronous>, transform_indices = @transform_8, window_bounds = array<i64: 1, 16>}, {pipeline_mode = #tpu.pipeline_mode<synchronous>, transform_indices = @transform_9, window_bounds = array<i64: 81, 1>}, {transform_indices = @transform_10, window_bounds = array<i64: 1, 81, 16>}]} {
    %c0 = arith.constant 0 : index
    %c0_0 = arith.constant 0 : index
    %0 = vector.load %arg10[%c0, %c0_0] : memref<81x1xf32, #tpu.memory_space<vmem>>, vector<81x1xf32>
    %c0_1 = arith.constant 0 : index
    %c0_2 = arith.constant 0 : index
    %c0_3 = arith.constant 0 : index
    %1 = vector.load %arg1[%c0_1, %c0_2, %c0_3] : memref<1x104x16xf32, #tpu.memory_space<vmem>>, vector<1x81x16xf32>
    %2 = vector.shape_cast %1 : vector<1x81x16xf32> to vector<81x16xf32>
    %c0_4 = arith.constant 0 : index
    %c0_5 = arith.constant 0 : index
    %c0_6 = arith.constant 0 : index
    %3 = vector.load %arg2[%c0_4, %c0_5, %c0_6] : memref<9x16x64xf32, #tpu.memory_space<vmem>>, vector<1x16x64xf32>
    %4 = vector.shape_cast %3 : vector<1x16x64xf32> to vector<16x64xf32>
    %cst = arith.constant dense<0.000000e+00> : vector<81x64xf32>
    %5 = tpu.matmul %2, %4, %cst {dimension_numbers = #tpu.dot_dimension_numbers<[1], [0], [0], [1], [0, 0, 1, 1], [], []>} : vector<81x16xf32>, vector<16x64xf32>, vector<81x64xf32> -> vector<81x64xf32>
    %c0_7 = arith.constant 0 : index
    %c1 = arith.constant 1 : index
    %c0_8 = arith.constant 0 : index
    %6 = vector.load %arg1[%c0_7, %c1, %c0_8] : memref<1x104x16xf32, #tpu.memory_space<vmem>>, vector<1x81x16xf32>
    %7 = vector.shape_cast %6 : vector<1x81x16xf32> to vector<81x16xf32>
    %c1_9 = arith.constant 1 : index
    %c0_10 = arith.constant 0 : index
    %c0_11 = arith.constant 0 : index
    %8 = vector.load %arg2[%c1_9, %c0_10, %c0_11] : memref<9x16x64xf32, #tpu.memory_space<vmem>>, vector<1x16x64xf32>
    %9 = vector.shape_cast %8 : vector<1x16x64xf32> to vector<16x64xf32>
    %cst_12 = arith.constant dense<0.000000e+00> : vector<81x64xf32>
    %10 = tpu.matmul %7, %9, %cst_12 {dimension_numbers = #tpu.dot_dimension_numbers<[1], [0], [0], [1], [0, 0, 1, 1], [], []>} : vector<81x16xf32>, vector<16x64xf32>, vector<81x64xf32> -> vector<81x64xf32>
    %11 = arith.addf %5, %10 : vector<81x64xf32>
    %c0_13 = arith.constant 0 : index
    %c2 = arith.constant 2 : index
    %c0_14 = arith.constant 0 : index
    %12 = vector.load %arg1[%c0_13, %c2, %c0_14] : memref<1x104x16xf32, #tpu.memory_space<vmem>>, vector<1x81x16xf32>
    %13 = vector.shape_cast %12 : vector<1x81x16xf32> to vector<81x16xf32>
    %c2_15 = arith.constant 2 : index
    %c0_16 = arith.constant 0 : index
    %c0_17 = arith.constant 0 : index
    %14 = vector.load %arg2[%c2_15, %c0_16, %c0_17] : memref<9x16x64xf32, #tpu.memory_space<vmem>>, vector<1x16x64xf32>
    %15 = vector.shape_cast %14 : vector<1x16x64xf32> to vector<16x64xf32>
    %cst_18 = arith.constant dense<0.000000e+00> : vector<81x64xf32>
    %16 = tpu.matmul %13, %15, %cst_18 {dimension_numbers = #tpu.dot_dimension_numbers<[1], [0], [0], [1], [0, 0, 1, 1], [], []>} : vector<81x16xf32>, vector<16x64xf32>, vector<81x64xf32> -> vector<81x64xf32>
    %17 = arith.addf %11, %16 : vector<81x64xf32>
    %c0_19 = arith.constant 0 : index
    %c9 = arith.constant 9 : index
    %c0_20 = arith.constant 0 : index
    %18 = vector.load %arg1[%c0_19, %c9, %c0_20] : memref<1x104x16xf32, #tpu.memory_space<vmem>>, vector<1x81x16xf32>
    %19 = vector.shape_cast %18 : vector<1x81x16xf32> to vector<81x16xf32>
    %c3 = arith.constant 3 : index
    %c0_21 = arith.constant 0 : index
    %c0_22 = arith.constant 0 : index
    %20 = vector.load %arg2[%c3, %c0_21, %c0_22] : memref<9x16x64xf32, #tpu.memory_space<vmem>>, vector<1x16x64xf32>
    %21 = vector.shape_cast %20 : vector<1x16x64xf32> to vector<16x64xf32>
    %cst_23 = arith.constant dense<0.000000e+00> : vector<81x64xf32>
    %22 = tpu.matmul %19, %21, %cst_23 {dimension_numbers = #tpu.dot_dimension_numbers<[1], [0], [0], [1], [0, 0, 1, 1], [], []>} : vector<81x16xf32>, vector<16x64xf32>, vector<81x64xf32> -> vector<81x64xf32>
    %23 = arith.addf %17, %22 : vector<81x64xf32>
    %c0_24 = arith.constant 0 : index
    %c10 = arith.constant 10 : index
    %c0_25 = arith.constant 0 : index
    %24 = vector.load %arg1[%c0_24, %c10, %c0_25] : memref<1x104x16xf32, #tpu.memory_space<vmem>>, vector<1x81x16xf32>
    %25 = vector.shape_cast %24 : vector<1x81x16xf32> to vector<81x16xf32>
    %c4 = arith.constant 4 : index
    %c0_26 = arith.constant 0 : index
    %c0_27 = arith.constant 0 : index
    %26 = vector.load %arg2[%c4, %c0_26, %c0_27] : memref<9x16x64xf32, #tpu.memory_space<vmem>>, vector<1x16x64xf32>
    %27 = vector.shape_cast %26 : vector<1x16x64xf32> to vector<16x64xf32>
    %cst_28 = arith.constant dense<0.000000e+00> : vector<81x64xf32>
    %28 = tpu.matmul %25, %27, %cst_28 {dimension_numbers = #tpu.dot_dimension_numbers<[1], [0], [0], [1], [0, 0, 1, 1], [], []>} : vector<81x16xf32>, vector<16x64xf32>, vector<81x64xf32> -> vector<81x64xf32>
    %29 = arith.addf %23, %28 : vector<81x64xf32>
    %c0_29 = arith.constant 0 : index
    %c11 = arith.constant 11 : index
    %c0_30 = arith.constant 0 : index
    %30 = vector.load %arg1[%c0_29, %c11, %c0_30] : memref<1x104x16xf32, #tpu.memory_space<vmem>>, vector<1x81x16xf32>
    %31 = vector.shape_cast %30 : vector<1x81x16xf32> to vector<81x16xf32>
    %c5 = arith.constant 5 : index
    %c0_31 = arith.constant 0 : index
    %c0_32 = arith.constant 0 : index
    %32 = vector.load %arg2[%c5, %c0_31, %c0_32] : memref<9x16x64xf32, #tpu.memory_space<vmem>>, vector<1x16x64xf32>
    %33 = vector.shape_cast %32 : vector<1x16x64xf32> to vector<16x64xf32>
    %cst_33 = arith.constant dense<0.000000e+00> : vector<81x64xf32>
    %34 = tpu.matmul %31, %33, %cst_33 {dimension_numbers = #tpu.dot_dimension_numbers<[1], [0], [0], [1], [0, 0, 1, 1], [], []>} : vector<81x16xf32>, vector<16x64xf32>, vector<81x64xf32> -> vector<81x64xf32>
    %35 = arith.addf %29, %34 : vector<81x64xf32>
    %c0_34 = arith.constant 0 : index
    %c18 = arith.constant 18 : index
    %c0_35 = arith.constant 0 : index
    %36 = vector.load %arg1[%c0_34, %c18, %c0_35] : memref<1x104x16xf32, #tpu.memory_space<vmem>>, vector<1x81x16xf32>
    %37 = vector.shape_cast %36 : vector<1x81x16xf32> to vector<81x16xf32>
    %c6 = arith.constant 6 : index
    %c0_36 = arith.constant 0 : index
    %c0_37 = arith.constant 0 : index
    %38 = vector.load %arg2[%c6, %c0_36, %c0_37] : memref<9x16x64xf32, #tpu.memory_space<vmem>>, vector<1x16x64xf32>
    %39 = vector.shape_cast %38 : vector<1x16x64xf32> to vector<16x64xf32>
    %cst_38 = arith.constant dense<0.000000e+00> : vector<81x64xf32>
    %40 = tpu.matmul %37, %39, %cst_38 {dimension_numbers = #tpu.dot_dimension_numbers<[1], [0], [0], [1], [0, 0, 1, 1], [], []>} : vector<81x16xf32>, vector<16x64xf32>, vector<81x64xf32> -> vector<81x64xf32>
    %41 = arith.addf %35, %40 : vector<81x64xf32>
    %c0_39 = arith.constant 0 : index
    %c19 = arith.constant 19 : index
    %c0_40 = arith.constant 0 : index
    %42 = vector.load %arg1[%c0_39, %c19, %c0_40] : memref<1x104x16xf32, #tpu.memory_space<vmem>>, vector<1x81x16xf32>
    %43 = vector.shape_cast %42 : vector<1x81x16xf32> to vector<81x16xf32>
    %c7 = arith.constant 7 : index
    %c0_41 = arith.constant 0 : index
    %c0_42 = arith.constant 0 : index
    %44 = vector.load %arg2[%c7, %c0_41, %c0_42] : memref<9x16x64xf32, #tpu.memory_space<vmem>>, vector<1x16x64xf32>
    %45 = vector.shape_cast %44 : vector<1x16x64xf32> to vector<16x64xf32>
    %cst_43 = arith.constant dense<0.000000e+00> : vector<81x64xf32>
    %46 = tpu.matmul %43, %45, %cst_43 {dimension_numbers = #tpu.dot_dimension_numbers<[1], [0], [0], [1], [0, 0, 1, 1], [], []>} : vector<81x16xf32>, vector<16x64xf32>, vector<81x64xf32> -> vector<81x64xf32>
    %47 = arith.addf %41, %46 : vector<81x64xf32>
    %c0_44 = arith.constant 0 : index
    %c20 = arith.constant 20 : index
    %c0_45 = arith.constant 0 : index
    %48 = vector.load %arg1[%c0_44, %c20, %c0_45] : memref<1x104x16xf32, #tpu.memory_space<vmem>>, vector<1x81x16xf32>
    %49 = vector.shape_cast %48 : vector<1x81x16xf32> to vector<81x16xf32>
    %c8 = arith.constant 8 : index
    %c0_46 = arith.constant 0 : index
    %c0_47 = arith.constant 0 : index
    %50 = vector.load %arg2[%c8, %c0_46, %c0_47] : memref<9x16x64xf32, #tpu.memory_space<vmem>>, vector<1x16x64xf32>
    %51 = vector.shape_cast %50 : vector<1x16x64xf32> to vector<16x64xf32>
    %cst_48 = arith.constant dense<0.000000e+00> : vector<81x64xf32>
    %52 = tpu.matmul %49, %51, %cst_48 {dimension_numbers = #tpu.dot_dimension_numbers<[1], [0], [0], [1], [0, 0, 1, 1], [], []>} : vector<81x16xf32>, vector<16x64xf32>, vector<81x64xf32> -> vector<81x64xf32>
    %53 = arith.addf %47, %52 : vector<81x64xf32>
    %54 = vector.broadcast %0 : vector<81x1xf32> to vector<81x64xf32>
    %55 = arith.mulf %53, %54 : vector<81x64xf32>
    %56 = vector.shape_cast %55 : vector<81x64xf32> to vector<1x81x64xf32>
    %cst_49 = arith.constant dense<0.000000e+00> : vector<1xf32>
    %57 = vector.multi_reduction <add>, %56, %cst_49 [1, 2] : vector<1x81x64xf32> to vector<1xf32>
    %58 = vector.shape_cast %57 : vector<1xf32> to vector<1x1x1xf32>
    %59 = vector.extract %58[0, 0, 0] : f32 from vector<1x1x1xf32>
    %60 = vector.broadcast %59 : f32 to vector<1x1xf32>
    %cst_50 = arith.constant 3.136000e+03 : f32
    %61 = vector.broadcast %cst_50 : f32 to vector<1x1xf32>
    %62 = arith.divf %60, %61 : vector<1x1xf32>
    %63 = arith.mulf %53, %53 : vector<81x64xf32>
    %64 = vector.broadcast %0 : vector<81x1xf32> to vector<81x64xf32>
    %65 = arith.mulf %63, %64 : vector<81x64xf32>
    %66 = vector.shape_cast %65 : vector<81x64xf32> to vector<1x81x64xf32>
    %cst_51 = arith.constant dense<0.000000e+00> : vector<1xf32>
    %67 = vector.multi_reduction <add>, %66, %cst_51 [1, 2] : vector<1x81x64xf32> to vector<1xf32>
    %68 = vector.shape_cast %67 : vector<1xf32> to vector<1x1x1xf32>
    %69 = vector.extract %68[0, 0, 0] : f32 from vector<1x1x1xf32>
    %70 = vector.broadcast %69 : f32 to vector<1x1xf32>
    %cst_52 = arith.constant 3.136000e+03 : f32
    %71 = vector.broadcast %cst_52 : f32 to vector<1x1xf32>
    %72 = arith.divf %70, %71 : vector<1x1xf32>
    %73 = arith.mulf %62, %62 : vector<1x1xf32>
    %74 = arith.subf %72, %73 : vector<1x1xf32>
    %cst_53 = arith.constant 9.99999974E-6 : f32
    %75 = vector.broadcast %cst_53 : f32 to vector<1x1xf32>
    %76 = arith.addf %74, %75 : vector<1x1xf32>
    %77 = math.rsqrt %76 : vector<1x1xf32>
    %78 = vector.broadcast %62 : vector<1x1xf32> to vector<81x64xf32>
    %79 = arith.subf %53, %78 : vector<81x64xf32>
    %80 = vector.broadcast %77 : vector<1x1xf32> to vector<81x64xf32>
    %81 = arith.mulf %79, %80 : vector<81x64xf32>
    %c0_54 = arith.constant 0 : index
    %c0_55 = arith.constant 0 : index
    %82 = vector.load %arg3[%c0_54, %c0_55] : memref<1x64xf32, #tpu.memory_space<vmem>>, vector<1x64xf32>
    %83 = vector.broadcast %82 : vector<1x64xf32> to vector<81x64xf32>
    %84 = arith.mulf %81, %83 : vector<81x64xf32>
    %c0_56 = arith.constant 0 : index
    %c0_57 = arith.constant 0 : index
    %85 = vector.load %arg4[%c0_56, %c0_57] : memref<1x64xf32, #tpu.memory_space<vmem>>, vector<1x64xf32>
    %86 = vector.broadcast %85 : vector<1x64xf32> to vector<81x64xf32>
    %87 = arith.addf %84, %86 : vector<81x64xf32>
    %cst_58 = arith.constant 5.000000e-01 : f32
    %88 = vector.broadcast %cst_58 : f32 to vector<81x64xf32>
    %89 = arith.mulf %88, %87 : vector<81x64xf32>
    %cst_59 = arith.constant 0.707106769 : f32
    %90 = vector.broadcast %cst_59 : f32 to vector<81x64xf32>
    %91 = arith.mulf %87, %90 : vector<81x64xf32>
    %cst_60 = arith.constant 0.000000e+00 : f32
    %92 = vector.broadcast %cst_60 : f32 to vector<81x64xf32>
    %93 = arith.cmpf oge, %91, %92 : vector<81x64xf32>
    %cst_61 = arith.constant 1.000000e+00 : f32
    %cst_62 = arith.constant -1.000000e+00 : f32
    %94 = vector.broadcast %cst_61 : f32 to vector<81x64xf32>
    %95 = vector.broadcast %cst_62 : f32 to vector<81x64xf32>
    %96 = arith.select %93, %94, %95 : vector<81x64xi1>, vector<81x64xf32>
    %97 = math.absf %91 : vector<81x64xf32>
    %cst_63 = arith.constant 0.327591091 : f32
    %98 = vector.broadcast %cst_63 : f32 to vector<81x64xf32>
    %99 = arith.mulf %98, %97 : vector<81x64xf32>
    %cst_64 = arith.constant 1.000000e+00 : f32
    %100 = vector.broadcast %cst_64 : f32 to vector<81x64xf32>
    %101 = arith.addf %100, %99 : vector<81x64xf32>
    %cst_65 = arith.constant 1.000000e+00 : f32
    %102 = vector.broadcast %cst_65 : f32 to vector<81x64xf32>
    %103 = arith.divf %102, %101 : vector<81x64xf32>
    %cst_66 = arith.constant 1.06140542 : f32
    %104 = vector.broadcast %cst_66 : f32 to vector<81x64xf32>
    %105 = arith.mulf %103, %104 : vector<81x64xf32>
    %cst_67 = arith.constant -1.45315206 : f32
    %106 = vector.broadcast %cst_67 : f32 to vector<81x64xf32>
    %107 = arith.addf %106, %105 : vector<81x64xf32>
    %108 = arith.mulf %103, %107 : vector<81x64xf32>
    %cst_68 = arith.constant 1.42141378 : f32
    %109 = vector.broadcast %cst_68 : f32 to vector<81x64xf32>
    %110 = arith.addf %109, %108 : vector<81x64xf32>
    %111 = arith.mulf %103, %110 : vector<81x64xf32>
    %cst_69 = arith.constant -0.284496725 : f32
    %112 = vector.broadcast %cst_69 : f32 to vector<81x64xf32>
    %113 = arith.addf %112, %111 : vector<81x64xf32>
    %114 = arith.mulf %103, %113 : vector<81x64xf32>
    %cst_70 = arith.constant 0.254829586 : f32
    %115 = vector.broadcast %cst_70 : f32 to vector<81x64xf32>
    %116 = arith.addf %115, %114 : vector<81x64xf32>
    %117 = arith.mulf %103, %116 : vector<81x64xf32>
    %cst_71 = arith.constant 0.000000e+00 : f32
    %118 = vector.broadcast %cst_71 : f32 to vector<81x64xf32>
    %119 = arith.subf %118, %97 : vector<81x64xf32>
    %120 = arith.mulf %119, %97 : vector<81x64xf32>
    %121 = math.exp %120 : vector<81x64xf32>
    %122 = arith.mulf %117, %121 : vector<81x64xf32>
    %cst_72 = arith.constant 1.000000e+00 : f32
    %123 = vector.broadcast %cst_72 : f32 to vector<81x64xf32>
    %124 = arith.subf %123, %122 : vector<81x64xf32>
    %125 = arith.mulf %96, %124 : vector<81x64xf32>
    %cst_73 = arith.constant 1.000000e+00 : f32
    %126 = vector.broadcast %cst_73 : f32 to vector<81x64xf32>
    %127 = arith.addf %126, %125 : vector<81x64xf32>
    %128 = arith.mulf %89, %127 : vector<81x64xf32>
    %129 = vector.broadcast %0 : vector<81x1xf32> to vector<81x64xf32>
    %130 = arith.mulf %128, %129 : vector<81x64xf32>
    %cst_74 = arith.constant 0.000000e+00 : f32
    %131 = vector.broadcast %cst_74 : f32 to vector<10x64xf32>
    %c0_75 = arith.constant 0 : index
    %c0_76 = arith.constant 0 : index
    %132 = vector.load %arg12[%c0_75, %c0_76] : memref<104x64xf32, #tpu.memory_space<vmem>>, vector<10x64xf32>
    tpu.vector_store %arg12[%c0_75, %c0_76], %131 {strides = array<i32>} : memref<104x64xf32, #tpu.memory_space<vmem>>, vector<10x64xf32>,
    %c10_77 = arith.constant 10 : index
    %c0_78 = arith.constant 0 : index
    %133 = vector.load %arg12[%c10_77, %c0_78] : memref<104x64xf32, #tpu.memory_space<vmem>>, vector<81x64xf32>
    tpu.vector_store %arg12[%c10_77, %c0_78], %130 {strides = array<i32>} : memref<104x64xf32, #tpu.memory_space<vmem>>, vector<81x64xf32>,
    %cst_79 = arith.constant 0.000000e+00 : f32
    %134 = vector.broadcast %cst_79 : f32 to vector<13x64xf32>
    %c91 = arith.constant 91 : index
    %c0_80 = arith.constant 0 : index
    %135 = vector.load %arg12[%c91, %c0_80] : memref<104x64xf32, #tpu.memory_space<vmem>>, vector<13x64xf32>
    tpu.vector_store %arg12[%c91, %c0_80], %134 {strides = array<i32>} : memref<104x64xf32, #tpu.memory_space<vmem>>, vector<13x64xf32>,
    %c0_81 = arith.constant 0 : index
    %c0_82 = arith.constant 0 : index
    %136 = vector.load %arg12[%c0_81, %c0_82] : memref<104x64xf32, #tpu.memory_space<vmem>>, vector<81x64xf32>
    %c0_83 = arith.constant 0 : index
    %c0_84 = arith.constant 0 : index
    %c0_85 = arith.constant 0 : index
    %137 = vector.load %arg5[%c0_83, %c0_84, %c0_85] : memref<9x64x256xf32, #tpu.memory_space<vmem>>, vector<1x64x256xf32>
    %138 = vector.shape_cast %137 : vector<1x64x256xf32> to vector<64x256xf32>
    %cst_86 = arith.constant dense<0.000000e+00> : vector<81x256xf32>
    %139 = tpu.matmul %136, %138, %cst_86 {dimension_numbers = #tpu.dot_dimension_numbers<[1], [0], [0], [1], [0, 0, 1, 1], [], []>} : vector<81x64xf32>, vector<64x256xf32>, vector<81x256xf32> -> vector<81x256xf32>
    %c1_87 = arith.constant 1 : index
    %c0_88 = arith.constant 0 : index
    %140 = vector.load %arg12[%c1_87, %c0_88] : memref<104x64xf32, #tpu.memory_space<vmem>>, vector<81x64xf32>
    %c1_89 = arith.constant 1 : index
    %c0_90 = arith.constant 0 : index
    %c0_91 = arith.constant 0 : index
    %141 = vector.load %arg5[%c1_89, %c0_90, %c0_91] : memref<9x64x256xf32, #tpu.memory_space<vmem>>, vector<1x64x256xf32>
    %142 = vector.shape_cast %141 : vector<1x64x256xf32> to vector<64x256xf32>
    %cst_92 = arith.constant dense<0.000000e+00> : vector<81x256xf32>
    %143 = tpu.matmul %140, %142, %cst_92 {dimension_numbers = #tpu.dot_dimension_numbers<[1], [0], [0], [1], [0, 0, 1, 1], [], []>} : vector<81x64xf32>, vector<64x256xf32>, vector<81x256xf32> -> vector<81x256xf32>
    %144 = arith.addf %139, %143 : vector<81x256xf32>
    %c2_93 = arith.constant 2 : index
    %c0_94 = arith.constant 0 : index
    %145 = vector.load %arg12[%c2_93, %c0_94] : memref<104x64xf32, #tpu.memory_space<vmem>>, vector<81x64xf32>
    %c2_95 = arith.constant 2 : index
    %c0_96 = arith.constant 0 : index
    %c0_97 = arith.constant 0 : index
    %146 = vector.load %arg5[%c2_95, %c0_96, %c0_97] : memref<9x64x256xf32, #tpu.memory_space<vmem>>, vector<1x64x256xf32>
    %147 = vector.shape_cast %146 : vector<1x64x256xf32> to vector<64x256xf32>
    %cst_98 = arith.constant dense<0.000000e+00> : vector<81x256xf32>
    %148 = tpu.matmul %145, %147, %cst_98 {dimension_numbers = #tpu.dot_dimension_numbers<[1], [0], [0], [1], [0, 0, 1, 1], [], []>} : vector<81x64xf32>, vector<64x256xf32>, vector<81x256xf32> -> vector<81x256xf32>
    %149 = arith.addf %144, %148 : vector<81x256xf32>
    %c9_99 = arith.constant 9 : index
    %c0_100 = arith.constant 0 : index
    %150 = vector.load %arg12[%c9_99, %c0_100] : memref<104x64xf32, #tpu.memory_space<vmem>>, vector<81x64xf32>
    %c3_101 = arith.constant 3 : index
    %c0_102 = arith.constant 0 : index
    %c0_103 = arith.constant 0 : index
    %151 = vector.load %arg5[%c3_101, %c0_102, %c0_103] : memref<9x64x256xf32, #tpu.memory_space<vmem>>, vector<1x64x256xf32>
    %152 = vector.shape_cast %151 : vector<1x64x256xf32> to vector<64x256xf32>
    %cst_104 = arith.constant dense<0.000000e+00> : vector<81x256xf32>
    %153 = tpu.matmul %150, %152, %cst_104 {dimension_numbers = #tpu.dot_dimension_numbers<[1], [0], [0], [1], [0, 0, 1, 1], [], []>} : vector<81x64xf32>, vector<64x256xf32>, vector<81x256xf32> -> vector<81x256xf32>
    %154 = arith.addf %149, %153 : vector<81x256xf32>
    %c10_105 = arith.constant 10 : index
    %c0_106 = arith.constant 0 : index
    %155 = vector.load %arg12[%c10_105, %c0_106] : memref<104x64xf32, #tpu.memory_space<vmem>>, vector<81x64xf32>
    %c4_107 = arith.constant 4 : index
    %c0_108 = arith.constant 0 : index
    %c0_109 = arith.constant 0 : index
    %156 = vector.load %arg5[%c4_107, %c0_108, %c0_109] : memref<9x64x256xf32, #tpu.memory_space<vmem>>, vector<1x64x256xf32>
    %157 = vector.shape_cast %156 : vector<1x64x256xf32> to vector<64x256xf32>
    %cst_110 = arith.constant dense<0.000000e+00> : vector<81x256xf32>
    %158 = tpu.matmul %155, %157, %cst_110 {dimension_numbers = #tpu.dot_dimension_numbers<[1], [0], [0], [1], [0, 0, 1, 1], [], []>} : vector<81x64xf32>, vector<64x256xf32>, vector<81x256xf32> -> vector<81x256xf32>
    %159 = arith.addf %154, %158 : vector<81x256xf32>
    %c11_111 = arith.constant 11 : index
    %c0_112 = arith.constant 0 : index
    %160 = vector.load %arg12[%c11_111, %c0_112] : memref<104x64xf32, #tpu.memory_space<vmem>>, vector<81x64xf32>
    %c5_113 = arith.constant 5 : index
    %c0_114 = arith.constant 0 : index
    %c0_115 = arith.constant 0 : index
    %161 = vector.load %arg5[%c5_113, %c0_114, %c0_115] : memref<9x64x256xf32, #tpu.memory_space<vmem>>, vector<1x64x256xf32>
    %162 = vector.shape_cast %161 : vector<1x64x256xf32> to vector<64x256xf32>
    %cst_116 = arith.constant dense<0.000000e+00> : vector<81x256xf32>
    %163 = tpu.matmul %160, %162, %cst_116 {dimension_numbers = #tpu.dot_dimension_numbers<[1], [0], [0], [1], [0, 0, 1, 1], [], []>} : vector<81x64xf32>, vector<64x256xf32>, vector<81x256xf32> -> vector<81x256xf32>
    %164 = arith.addf %159, %163 : vector<81x256xf32>
    %c18_117 = arith.constant 18 : index
    %c0_118 = arith.constant 0 : index
    %165 = vector.load %arg12[%c18_117, %c0_118] : memref<104x64xf32, #tpu.memory_space<vmem>>, vector<81x64xf32>
    %c6_119 = arith.constant 6 : index
    %c0_120 = arith.constant 0 : index
    %c0_121 = arith.constant 0 : index
    %166 = vector.load %arg5[%c6_119, %c0_120, %c0_121] : memref<9x64x256xf32, #tpu.memory_space<vmem>>, vector<1x64x256xf32>
    %167 = vector.shape_cast %166 : vector<1x64x256xf32> to vector<64x256xf32>
    %cst_122 = arith.constant dense<0.000000e+00> : vector<81x256xf32>
    %168 = tpu.matmul %165, %167, %cst_122 {dimension_numbers = #tpu.dot_dimension_numbers<[1], [0], [0], [1], [0, 0, 1, 1], [], []>} : vector<81x64xf32>, vector<64x256xf32>, vector<81x256xf32> -> vector<81x256xf32>
    %169 = arith.addf %164, %168 : vector<81x256xf32>
    %c19_123 = arith.constant 19 : index
    %c0_124 = arith.constant 0 : index
    %170 = vector.load %arg12[%c19_123, %c0_124] : memref<104x64xf32, #tpu.memory_space<vmem>>, vector<81x64xf32>
    %c7_125 = arith.constant 7 : index
    %c0_126 = arith.constant 0 : index
    %c0_127 = arith.constant 0 : index
    %171 = vector.load %arg5[%c7_125, %c0_126, %c0_127] : memref<9x64x256xf32, #tpu.memory_space<vmem>>, vector<1x64x256xf32>
    %172 = vector.shape_cast %171 : vector<1x64x256xf32> to vector<64x256xf32>
    %cst_128 = arith.constant dense<0.000000e+00> : vector<81x256xf32>
    %173 = tpu.matmul %170, %172, %cst_128 {dimension_numbers = #tpu.dot_dimension_numbers<[1], [0], [0], [1], [0, 0, 1, 1], [], []>} : vector<81x64xf32>, vector<64x256xf32>, vector<81x256xf32> -> vector<81x256xf32>
    %174 = arith.addf %169, %173 : vector<81x256xf32>
    %c20_129 = arith.constant 20 : index
    %c0_130 = arith.constant 0 : index
    %175 = vector.load %arg12[%c20_129, %c0_130] : memref<104x64xf32, #tpu.memory_space<vmem>>, vector<81x64xf32>
    %c8_131 = arith.constant 8 : index
    %c0_132 = arith.constant 0 : index
    %c0_133 = arith.constant 0 : index
    %176 = vector.load %arg5[%c8_131, %c0_132, %c0_133] : memref<9x64x256xf32, #tpu.memory_space<vmem>>, vector<1x64x256xf32>
    %177 = vector.shape_cast %176 : vector<1x64x256xf32> to vector<64x256xf32>
    %cst_134 = arith.constant dense<0.000000e+00> : vector<81x256xf32>
    %178 = tpu.matmul %175, %177, %cst_134 {dimension_numbers = #tpu.dot_dimension_numbers<[1], [0], [0], [1], [0, 0, 1, 1], [], []>} : vector<81x64xf32>, vector<64x256xf32>, vector<81x256xf32> -> vector<81x256xf32>
    %179 = arith.addf %174, %178 : vector<81x256xf32>
    %180 = vector.broadcast %0 : vector<81x1xf32> to vector<81x256xf32>
    %181 = arith.mulf %179, %180 : vector<81x256xf32>
    %182 = vector.shape_cast %181 : vector<81x256xf32> to vector<1x81x256xf32>
    %cst_135 = arith.constant dense<0.000000e+00> : vector<1xf32>
    %183 = vector.multi_reduction <add>, %182, %cst_135 [1, 2] : vector<1x81x256xf32> to vector<1xf32>
    %184 = vector.shape_cast %183 : vector<1xf32> to vector<1x1x1xf32>
    %185 = vector.extract %184[0, 0, 0] : f32 from vector<1x1x1xf32>
    %186 = vector.broadcast %185 : f32 to vector<1x1xf32>
    %cst_136 = arith.constant 1.254400e+04 : f32
    %187 = vector.broadcast %cst_136 : f32 to vector<1x1xf32>
    %188 = arith.divf %186, %187 : vector<1x1xf32>
    %189 = arith.mulf %179, %179 : vector<81x256xf32>
    %190 = vector.broadcast %0 : vector<81x1xf32> to vector<81x256xf32>
    %191 = arith.mulf %189, %190 : vector<81x256xf32>
    %192 = vector.shape_cast %191 : vector<81x256xf32> to vector<1x81x256xf32>
    %cst_137 = arith.constant dense<0.000000e+00> : vector<1xf32>
    %193 = vector.multi_reduction <add>, %192, %cst_137 [1, 2] : vector<1x81x256xf32> to vector<1xf32>
    %194 = vector.shape_cast %193 : vector<1xf32> to vector<1x1x1xf32>
    %195 = vector.extract %194[0, 0, 0] : f32 from vector<1x1x1xf32>
    %196 = vector.broadcast %195 : f32 to vector<1x1xf32>
    %cst_138 = arith.constant 1.254400e+04 : f32
    %197 = vector.broadcast %cst_138 : f32 to vector<1x1xf32>
    %198 = arith.divf %196, %197 : vector<1x1xf32>
    %199 = arith.mulf %188, %188 : vector<1x1xf32>
    %200 = arith.subf %198, %199 : vector<1x1xf32>
    %cst_139 = arith.constant 9.99999974E-6 : f32
    %201 = vector.broadcast %cst_139 : f32 to vector<1x1xf32>
    %202 = arith.addf %200, %201 : vector<1x1xf32>
    %203 = math.rsqrt %202 : vector<1x1xf32>
    %204 = vector.broadcast %188 : vector<1x1xf32> to vector<81x256xf32>
    %205 = arith.subf %179, %204 : vector<81x256xf32>
    %206 = vector.broadcast %203 : vector<1x1xf32> to vector<81x256xf32>
    %207 = arith.mulf %205, %206 : vector<81x256xf32>
    %c0_140 = arith.constant 0 : index
    %c0_141 = arith.constant 0 : index
    %208 = vector.load %arg6[%c0_140, %c0_141] : memref<1x256xf32, #tpu.memory_space<vmem>>, vector<1x256xf32>
    %209 = vector.broadcast %208 : vector<1x256xf32> to vector<81x256xf32>
    %210 = arith.mulf %207, %209 : vector<81x256xf32>
    %c0_142 = arith.constant 0 : index
    %c0_143 = arith.constant 0 : index
    %211 = vector.load %arg7[%c0_142, %c0_143] : memref<1x256xf32, #tpu.memory_space<vmem>>, vector<1x256xf32>
    %212 = vector.broadcast %211 : vector<1x256xf32> to vector<81x256xf32>
    %213 = arith.addf %210, %212 : vector<81x256xf32>
    %cst_144 = arith.constant 5.000000e-01 : f32
    %214 = vector.broadcast %cst_144 : f32 to vector<81x256xf32>
    %215 = arith.mulf %214, %213 : vector<81x256xf32>
    %cst_145 = arith.constant 0.707106769 : f32
    %216 = vector.broadcast %cst_145 : f32 to vector<81x256xf32>
    %217 = arith.mulf %213, %216 : vector<81x256xf32>
    %cst_146 = arith.constant 0.000000e+00 : f32
    %218 = vector.broadcast %cst_146 : f32 to vector<81x256xf32>
    %219 = arith.cmpf oge, %217, %218 : vector<81x256xf32>
    %cst_147 = arith.constant 1.000000e+00 : f32
    %cst_148 = arith.constant -1.000000e+00 : f32
    %220 = vector.broadcast %cst_147 : f32 to vector<81x256xf32>
    %221 = vector.broadcast %cst_148 : f32 to vector<81x256xf32>
    %222 = arith.select %219, %220, %221 : vector<81x256xi1>, vector<81x256xf32>
    %223 = math.absf %217 : vector<81x256xf32>
    %cst_149 = arith.constant 0.327591091 : f32
    %224 = vector.broadcast %cst_149 : f32 to vector<81x256xf32>
    %225 = arith.mulf %224, %223 : vector<81x256xf32>
    %cst_150 = arith.constant 1.000000e+00 : f32
    %226 = vector.broadcast %cst_150 : f32 to vector<81x256xf32>
    %227 = arith.addf %226, %225 : vector<81x256xf32>
    %cst_151 = arith.constant 1.000000e+00 : f32
    %228 = vector.broadcast %cst_151 : f32 to vector<81x256xf32>
    %229 = arith.divf %228, %227 : vector<81x256xf32>
    %cst_152 = arith.constant 1.06140542 : f32
    %230 = vector.broadcast %cst_152 : f32 to vector<81x256xf32>
    %231 = arith.mulf %229, %230 : vector<81x256xf32>
    %cst_153 = arith.constant -1.45315206 : f32
    %232 = vector.broadcast %cst_153 : f32 to vector<81x256xf32>
    %233 = arith.addf %232, %231 : vector<81x256xf32>
    %234 = arith.mulf %229, %233 : vector<81x256xf32>
    %cst_154 = arith.constant 1.42141378 : f32
    %235 = vector.broadcast %cst_154 : f32 to vector<81x256xf32>
    %236 = arith.addf %235, %234 : vector<81x256xf32>
    %237 = arith.mulf %229, %236 : vector<81x256xf32>
    %cst_155 = arith.constant -0.284496725 : f32
    %238 = vector.broadcast %cst_155 : f32 to vector<81x256xf32>
    %239 = arith.addf %238, %237 : vector<81x256xf32>
    %240 = arith.mulf %229, %239 : vector<81x256xf32>
    %cst_156 = arith.constant 0.254829586 : f32
    %241 = vector.broadcast %cst_156 : f32 to vector<81x256xf32>
    %242 = arith.addf %241, %240 : vector<81x256xf32>
    %243 = arith.mulf %229, %242 : vector<81x256xf32>
    %cst_157 = arith.constant 0.000000e+00 : f32
    %244 = vector.broadcast %cst_157 : f32 to vector<81x256xf32>
    %245 = arith.subf %244, %223 : vector<81x256xf32>
    %246 = arith.mulf %245, %223 : vector<81x256xf32>
    %247 = math.exp %246 : vector<81x256xf32>
    %248 = arith.mulf %243, %247 : vector<81x256xf32>
    %cst_158 = arith.constant 1.000000e+00 : f32
    %249 = vector.broadcast %cst_158 : f32 to vector<81x256xf32>
    %250 = arith.subf %249, %248 : vector<81x256xf32>
    %251 = arith.mulf %222, %250 : vector<81x256xf32>
    %cst_159 = arith.constant 1.000000e+00 : f32
    %252 = vector.broadcast %cst_159 : f32 to vector<81x256xf32>
    %253 = arith.addf %252, %251 : vector<81x256xf32>
    %254 = arith.mulf %215, %253 : vector<81x256xf32>
    %c0_160 = arith.constant 0 : index
    %c0_161 = arith.constant 0 : index
    %255 = vector.load %arg8[%c0_160, %c0_161] : memref<256x16xf32, #tpu.memory_space<vmem>>, vector<256x16xf32>
    %cst_162 = arith.constant dense<0.000000e+00> : vector<81x16xf32>
    %256 = tpu.matmul %254, %255, %cst_162 {dimension_numbers = #tpu.dot_dimension_numbers<[1], [0], [0], [1], [0, 0, 1, 1], [], []>} : vector<81x256xf32>, vector<256x16xf32>, vector<81x16xf32> -> vector<81x16xf32>
    %c0_163 = arith.constant 0 : index
    %c0_164 = arith.constant 0 : index
    %257 = vector.load %arg9[%c0_163, %c0_164] : memref<1x16xf32, #tpu.memory_space<vmem>>, vector<1x16xf32>
    %258 = vector.broadcast %257 : vector<1x16xf32> to vector<81x16xf32>
    %259 = arith.addf %256, %258 : vector<81x16xf32>
    %cst_165 = arith.constant 0.000000e+00 : f32
    %260 = vector.broadcast %cst_165 : f32 to vector<81x16xf32>
    %261 = arith.subf %260, %259 : vector<81x16xf32>
    %262 = math.exp %261 : vector<81x16xf32>
    %cst_166 = arith.constant 1.000000e+00 : f32
    %263 = vector.broadcast %cst_166 : f32 to vector<81x16xf32>
    %264 = arith.addf %263, %262 : vector<81x16xf32>
    %265 = tpu.reciprocal %264 {approx = true} : vector<81x16xf32> -> vector<81x16xf32>
    %c0_167 = arith.constant 0 : index
    %c0_168 = arith.constant 0 : index
    %c0_169 = arith.constant 0 : index
    %266 = vector.load %arg11[%c0_167, %c0_168, %c0_169] : memref<1x81x16xf32, #tpu.memory_space<vmem>>, vector<1x81x16xf32>
    %267 = vector.shape_cast %266 : vector<1x81x16xf32> to vector<81x16xf32>
    %268 = vector.shape_cast %265 : vector<81x16xf32> to vector<1x81x16xf32>
    tpu.vector_store %arg11[%c0_167, %c0_168, %c0_169], %268 {strides = array<i32>} : memref<1x81x16xf32, #tpu.memory_space<vmem>>, vector<1x81x16xf32>,
    return
  }
  func.func @transform_0(%arg0: i32) -> (i32, i32, i32) {
    %c0_i32 = arith.constant 0 : i32
    %c0_i32_0 = arith.constant 0 : i32
    %c0_i32_1 = arith.constant 0 : i32
    return %arg0, %c0_i32, %c0_i32_0 : i32, i32, i32
  }
  func.func @transform_1(%arg0: i32) -> (i32, i32, i32) {
    %c0_i32 = arith.constant 0 : i32
    %c0_i32_0 = arith.constant 0 : i32
    %c0_i32_1 = arith.constant 0 : i32
    %c0_i32_2 = arith.constant 0 : i32
    return %c0_i32, %c0_i32_0, %c0_i32_1 : i32, i32, i32
  }
  func.func @transform_2(%arg0: i32) -> (i32, i32) {
    %c0_i32 = arith.constant 0 : i32
    %c0_i32_0 = arith.constant 0 : i32
    %c0_i32_1 = arith.constant 0 : i32
    return %c0_i32, %c0_i32_0 : i32, i32
  }
  func.func @transform_3(%arg0: i32) -> (i32, i32) {
    %c0_i32 = arith.constant 0 : i32
    %c0_i32_0 = arith.constant 0 : i32
    %c0_i32_1 = arith.constant 0 : i32
    return %c0_i32, %c0_i32_0 : i32, i32
  }
  func.func @transform_4(%arg0: i32) -> (i32, i32, i32) {
    %c0_i32 = arith.constant 0 : i32
    %c0_i32_0 = arith.constant 0 : i32
    %c0_i32_1 = arith.constant 0 : i32
    %c0_i32_2 = arith.constant 0 : i32
    return %c0_i32, %c0_i32_0, %c0_i32_1 : i32, i32, i32
  }
  func.func @transform_5(%arg0: i32) -> (i32, i32) {
    %c0_i32 = arith.constant 0 : i32
    %c0_i32_0 = arith.constant 0 : i32
    %c0_i32_1 = arith.constant 0 : i32
    return %c0_i32, %c0_i32_0 : i32, i32
  }
  func.func @transform_6(%arg0: i32) -> (i32, i32) {
    %c0_i32 = arith.constant 0 : i32
    %c0_i32_0 = arith.constant 0 : i32
    %c0_i32_1 = arith.constant 0 : i32
    return %c0_i32, %c0_i32_0 : i32, i32
  }
  func.func @transform_7(%arg0: i32) -> (i32, i32) {
    %c0_i32 = arith.constant 0 : i32
    %c0_i32_0 = arith.constant 0 : i32
    %c0_i32_1 = arith.constant 0 : i32
    return %c0_i32, %c0_i32_0 : i32, i32
  }
  func.func @transform_8(%arg0: i32) -> (i32, i32) {
    %c0_i32 = arith.constant 0 : i32
    %c0_i32_0 = arith.constant 0 : i32
    %c0_i32_1 = arith.constant 0 : i32
    return %c0_i32, %c0_i32_0 : i32, i32
  }
  func.func @transform_9(%arg0: i32) -> (i32, i32) {
    %c0_i32 = arith.constant 0 : i32
    %c0_i32_0 = arith.constant 0 : i32
    %c0_i32_1 = arith.constant 0 : i32
    return %c0_i32, %c0_i32_0 : i32, i32
  }
  func.func @transform_10(%arg0: i32) -> (i32, i32, i32) {
    %c0_i32 = arith.constant 0 : i32
    %c0_i32_0 = arith.constant 0 : i32
    %c0_i32_1 = arith.constant 0 : i32
    return %arg0, %c0_i32, %c0_i32_0 : i32, i32, i32
  }
}

</mosaic_0001>

<llo_original>
// kernel: generator_forward.2
$region0: #{generator_forward.2}
  #allocation0 [shape = 'u32[]', space=smem, size = 0x4, offset = 0x4, fixed_abs, tag = 'smem constant byte address 0x4 - core index']
  #allocation1 [shape = 'u32[72,128]{1,0:T(1,128)}', space=vmem, size = 0x9000, scoped, tag = 'internal scratch']
  %s0 = inlined_call_operand.vmem [shape: f32[2,64], index: 0, kind: input, shape index: {}]
  %s1 = inlined_call_operand.hbm [shape: f32[64,784], index: 1, kind: input, shape index: {}]
  %s2 = inlined_call_operand.hbm [shape: f32[1,784], index: 2, kind: input, shape index: {}]
  %s3 = inlined_call_operand.hbm [shape: f32[1,784], index: 3, kind: input, shape index: {}]
  %s4 = inlined_call_operand.vmem [shape: f32[2,784], index: 4, kind: output, shape index: {}]
  %s5 = sld [smem:[#allocation0]]
  $region38: #{generator_forward.2} parent=0
    _
  %s7 = ssub.s32 1, %s5
  %s8 = scalar_select 0, %s7, %s5
  $region1: #{generator_forward.2} parent=0
    #allocation2 [shape = 'u8[229376]{0}', space=vmem, size = 0x38000, scoped, tag = 'input window, operand 1, single buffered']
    #allocation3 [shape = 's32[1]{0}', space=sflag, size = 0x4, scoped, tag = 'scoped memory for generator_forward.2']
    #allocation4 [shape = 'u8[3584]{0}', space=vmem, size = 0x1000, scoped, tag = 'input window, operand 2, single buffered']
    #allocation5 [shape = 's32[1]{0}', space=sflag, size = 0x4, scoped, tag = 'scoped memory for generator_forward.2']
    #allocation6 [shape = 'u8[3584]{0}', space=vmem, size = 0x1000, scoped, tag = 'input window, operand 3, single buffered']
    %9 = vsyncpa [#allocation3], 0
    %10 = vsyncpa [#allocation5], 0
    // Predicated region
    $region2: #{generator_forward.2} parent=1 // pred_check
      _
    $region3: #{generator_forward.2} parent=1 // pred_check_branch
      %12 = sbr.rel (0) target = $region5
    $region4: #{generator_forward.2} parent=1 // pred_region
      _
    $region5: #{generator_forward.2} parent=1 // pred_fallthru
      _
    // Predicated region
    $region6: #{generator_forward.2} parent=1 // pred_check
      _
    $region7: #{generator_forward.2} parent=1 // pred_check_branch
      %14 = sbr.rel (0) target = $region9
    $region8: #{generator_forward.2} parent=1 // pred_region
      %16 = vsyncadd [#allocation3], 0
      %s17 = sshll.u32 %s1, 4
      %s18 = int_to_ptr.hbm [resolvable:$true] %s17
      %s19 = sshll.u32 [#allocation2], 4
      %s20 = int_to_ptr.vmem [resolvable:$true] %s19
      %25 = dma.hbm_to_vmem [thread:$0]  %s18, 7168, %s20, [#allocation3], 896, 896, 56
    $region9: #{generator_forward.2} parent=1 // pred_fallthru
      _
    // Predicated region
    $region10: #{generator_forward.2} parent=1 // pred_check
      _
    $region11: #{generator_forward.2} parent=1 // pred_check_branch
      %27 = sbr.rel (0) target = $region13
    $region12: #{generator_forward.2} parent=1 // pred_region
      %29 = vsyncadd [#allocation5], 0
      %s31 = sshll.u32 %s2, 4
      %s32 = int_to_ptr.hbm [resolvable:$true] %s31
      %s33 = sshll.u32 [#allocation4], 4
      %s34 = int_to_ptr.vmem [resolvable:$true] %s33
      %36 = dma.hbm_to_vmem [thread:$0]  %s32, 112, %s34, [#allocation5]
    $region13: #{generator_forward.2} parent=1 // pred_fallthru
      _
    // Predicated region
    $region14: #{generator_forward.2} parent=1 // pred_check
      _
    $region15: #{generator_forward.2} parent=1 // pred_check_branch
      %38 = sbr.rel (0) target = $region17
    $region16: #{generator_forward.2} parent=1 // pred_region
      %40 = vsyncadd [#allocation5], 0
      %s42 = sshll.u32 %s3, 4
      %s43 = int_to_ptr.hbm [resolvable:$true] %s42
      %s44 = sshll.u32 [#allocation6], 4
      %s45 = int_to_ptr.vmem [resolvable:$true] %s44
      %47 = dma.hbm_to_vmem [thread:$0]  %s43, 112, %s45, [#allocation5]
    $region17: #{generator_forward.2} parent=1 // pred_fallthru
      _
    // Predicated region
    $region18: #{generator_forward.2} parent=1 // pred_check
      _
    $region19: #{generator_forward.2} parent=1 // pred_check_branch
      %49 = sbr.rel (0) target = $region21
    $region20: #{generator_forward.2} parent=1 // pred_region
      %51 = dma.done [#allocation3], 7168
    $region21: #{generator_forward.2} parent=1 // pred_fallthru
      _
    // Predicated region
    $region22: #{generator_forward.2} parent=1 // pred_check
      _
    $region23: #{generator_forward.2} parent=1 // pred_check_branch
      %53 = sbr.rel (0) target = $region25
    $region24: #{generator_forward.2} parent=1 // pred_region
      %55 = dma.done [#allocation5], 112
    $region25: #{generator_forward.2} parent=1 // pred_fallthru
      _
    // Predicated region
    $region26: #{generator_forward.2} parent=1 // pred_check
      _
    $region27: #{generator_forward.2} parent=1 // pred_check_branch
      %57 = sbr.rel (0) target = $region29
    $region28: #{generator_forward.2} parent=1 // pred_region
      %59 = dma.done [#allocation5], 112
    $region29: #{generator_forward.2} parent=1 // pred_fallthru
      _
    %v60 = vld [vmem:[%s0] sm:$0x3]
    %v61 = vld [vmem:[#allocation2] sm:$0xff]
    %v62 = vld [vmem:[#allocation2 + $0x8] sm:$0xff]
    %v63 = vld [vmem:[#allocation2 + $0x10] sm:$0xff]
    %v64 = vld [vmem:[#allocation2 + $0x18] sm:$0xff]
    %v65 = vld [vmem:[#allocation2 + $0x20] sm:$0xff]
    %v66 = vld [vmem:[#allocation2 + $0x28] sm:$0xff]
    %v67 = vld [vmem:[#allocation2 + $0x30] sm:$0xff]
    %v68 = vld [vmem:[#allocation2 + $0x38] sm:$0xff]
    %v69 = vld [vmem:[#allocation2 + $0x40] sm:$0xff]
    %v70 = vld [vmem:[#allocation2 + $0x48] sm:$0xff]
    %v71 = vld [vmem:[#allocation2 + $0x50] sm:$0xff]
    %v72 = vld [vmem:[#allocation2 + $0x58] sm:$0xff]
    %v73 = vld [vmem:[#allocation2 + $0x60] sm:$0xff]
    %v74 = vld [vmem:[#allocation2 + $0x68] sm:$0xff]
    %v75 = vld [vmem:[#allocation2 + $0x70] sm:$0xff]
    %v76 = vld [vmem:[#allocation2 + $0x78] sm:$0xff]
    %v77 = vld [vmem:[#allocation2 + $0x80] sm:$0xff]
    %v78 = vld [vmem:[#allocation2 + $0x88] sm:$0xff]
    %v79 = vld [vmem:[#allocation2 + $0x90] sm:$0xff]
    %v80 = vld [vmem:[#allocation2 + $0x98] sm:$0xff]
    %v81 = vld [vmem:[#allocation2 + $0xa0] sm:$0xff]
    %v82 = vld [vmem:[#allocation2 + $0xa8] sm:$0xff]
    %v83 = vld [vmem:[#allocation2 + $0xb0] sm:$0xff]
    %v84 = vld [vmem:[#allocation2 + $0xb8] sm:$0xff]
    %v85 = vld [vmem:[#allocation2 + $0xc0] sm:$0xff]
    %v86 = vld [vmem:[#allocation2 + $0xc8] sm:$0xff]
    %v87 = vld [vmem:[#allocation2 + $0xd0] sm:$0xff]
    %v88 = vld [vmem:[#allocation2 + $0xd8] sm:$0xff]
    %v89 = vld [vmem:[#allocation2 + $0xe0] sm:$0xff]
    %v90 = vld [vmem:[#allocation2 + $0xe8] sm:$0xff]
    %v91 = vld [vmem:[#allocation2 + $0xf0] sm:$0xff]
    %v92 = vld [vmem:[#allocation2 + $0xf8] sm:$0xff]
    %v93 = vld [vmem:[#allocation2 + $0x100] sm:$0xff]
    %v94 = vld [vmem:[#allocation2 + $0x108] sm:$0xff]
    %v95 = vld [vmem:[#allocation2 + $0x110] sm:$0xff]
    %v96 = vld [vmem:[#allocation2 + $0x118] sm:$0xff]
    %v97 = vld [vmem:[#allocation2 + $0x120] sm:$0xff]
    %v98 = vld [vmem:[#allocation2 + $0x128] sm:$0xff]
    %v99 = vld [vmem:[#allocation2 + $0x130] sm:$0xff]
    %v100 = vld [vmem:[#allocation2 + $0x138] sm:$0xff]
    %v101 = vld [vmem:[#allocation2 + $0x140] sm:$0xff]
    %v102 = vld [vmem:[#allocation2 + $0x148] sm:$0xff]
    %v103 = vld [vmem:[#allocation2 + $0x150] sm:$0xff]
    %v104 = vld [vmem:[#allocation2 + $0x158] sm:$0xff]
    %v105 = vld [vmem:[#allocation2 + $0x160] sm:$0xff]
    %v106 = vld [vmem:[#allocation2 + $0x168] sm:$0xff]
    %v107 = vld [vmem:[#allocation2 + $0x170] sm:$0xff]
    %v108 = vld [vmem:[#allocation2 + $0x178] sm:$0xff]
    %v109 = vld [vmem:[#allocation2 + $0x180] sm:$0xff]
    %v110 = vld [vmem:[#allocation2 + $0x188] sm:$0xff]
    %v111 = vld [vmem:[#allocation2 + $0x190] sm:$0xff]
    %v112 = vld [vmem:[#allocation2 + $0x198] sm:$0xff]
    %v113 = vld [vmem:[#allocation2 + $0x1a0] sm:$0xff]
    %v114 = vld [vmem:[#allocation2 + $0x1a8] sm:$0xff]
    %v115 = vld [vmem:[#allocation2 + $0x1b0] sm:$0xff]
    %v116 = vld [vmem:[#allocation2 + $0x1b8] sm:$0xff]
    %vm117 = vcmask 523264
    %v119 = vsel %vm117, %v60, 0
    %121 = vmatpush.msra.mxu0 0.0
    %122 = vmatpush.msra.mxu0 0.0
    %123 = vmatpush.msra.mxu0 0.0
    %124 = vmatpush.msra.mxu0 0.0
    %125 = vmatpush.msra.mxu0 0.0
    %126 = vmatpush.msra.mxu0 0.0
    %127 = vmatpush.msra.mxu0 0.0
    %128 = vmatpush.msra.mxu0 0.0
    %129 = vmatpush.msra.mxu0 %v110
    %130 = vmatpush.msra.mxu0 %v103
    %131 = vmatpush.msra.mxu0 %v96
    %132 = vmatpush.msra.mxu0 %v89
    %133 = vmatpush.msra.mxu0 %v82
    %134 = vmatpush.msra.mxu0 %v75
    %135 = vmatpush.msra.mxu0 %v68
    %136 = vmatpush.msra.mxu0 %v61
    %137 = vmatmul.f32.gmra.mxu0 %v119
    %v138 = vpop.f32.mrf.mxu0
    %v139 = vadd.f32 0.0, %v138
    %140 = vdwg.mxu0
    %141 = vmatpush.msra.mxu0 0.0
    %142 = vmatpush.msra.mxu0 0.0
    %143 = vmatpush.msra.mxu0 0.0
    %144 = vmatpush.msra.mxu0 0.0
    %145 = vmatpush.msra.mxu0 0.0
    %146 = vmatpush.msra.mxu0 0.0
    %147 = vmatpush.msra.mxu0 0.0
    %148 = vmatpush.msra.mxu0 0.0
    %149 = vmatpush.msra.mxu0 %v111
    %150 = vmatpush.msra.mxu0 %v104
    %151 = vmatpush.msra.mxu0 %v97
    %152 = vmatpush.msra.mxu0 %v90
    %153 = vmatpush.msra.mxu0 %v83
    %154 = vmatpush.msra.mxu0 %v76
    %155 = vmatpush.msra.mxu0 %v69
    %156 = vmatpush.msra.mxu0 %v62
    %157 = vmatmul.f32.gmra.mxu0 %v119
    %v158 = vpop.f32.mrf.mxu0
    %v159 = vadd.f32 0.0, %v158
    %160 = vdwg.mxu0
    %161 = vmatpush.msra.mxu0 0.0
    %162 = vmatpush.msra.mxu0 0.0
    %163 = vmatpush.msra.mxu0 0.0
    %164 = vmatpush.msra.mxu0 0.0
    %165 = vmatpush.msra.mxu0 0.0
    %166 = vmatpush.msra.mxu0 0.0
    %167 = vmatpush.msra.mxu0 0.0
    %168 = vmatpush.msra.mxu0 0.0
    %169 = vmatpush.msra.mxu0 %v112
    %170 = vmatpush.msra.mxu0 %v105
    %171 = vmatpush.msra.mxu0 %v98
    %172 = vmatpush.msra.mxu0 %v91
    %173 = vmatpush.msra.mxu0 %v84
    %174 = vmatpush.msra.mxu0 %v77
    %175 = vmatpush.msra.mxu0 %v70
    %176 = vmatpush.msra.mxu0 %v63
    %177 = vmatmul.f32.gmra.mxu0 %v119
    %v178 = vpop.f32.mrf.mxu0
    %v179 = vadd.f32 0.0, %v178
    %180 = vdwg.mxu0
    %181 = vmatpush.msra.mxu0 0.0
    %182 = vmatpush.msra.mxu0 0.0
    %183 = vmatpush.msra.mxu0 0.0
    %184 = vmatpush.msra.mxu0 0.0
    %185 = vmatpush.msra.mxu0 0.0
    %186 = vmatpush.msra.mxu0 0.0
    %187 = vmatpush.msra.mxu0 0.0
    %188 = vmatpush.msra.mxu0 0.0
    %189 = vmatpush.msra.mxu0 %v113
    %190 = vmatpush.msra.mxu0 %v106
    %191 = vmatpush.msra.mxu0 %v99
    %192 = vmatpush.msra.mxu0 %v92
    %193 = vmatpush.msra.mxu0 %v85
    %194 = vmatpush.msra.mxu0 %v78
    %195 = vmatpush.msra.mxu0 %v71
    %196 = vmatpush.msra.mxu0 %v64
    %197 = vmatmul.f32.gmra.mxu0 %v119
    %v198 = vpop.f32.mrf.mxu0
    %v199 = vadd.f32 0.0, %v198
    %200 = vdwg.mxu0
    %201 = vmatpush.msra.mxu0 0.0
    %202 = vmatpush.msra.mxu0 0.0
    %203 = vmatpush.msra.mxu0 0.0
    %204 = vmatpush.msra.mxu0 0.0
    %205 = vmatpush.msra.mxu0 0.0
    %206 = vmatpush.msra.mxu0 0.0
    %207 = vmatpush.msra.mxu0 0.0
    %208 = vmatpush.msra.mxu0 0.0
    %209 = vmatpush.msra.mxu0 %v114
    %210 = vmatpush.msra.mxu0 %v107
    %211 = vmatpush.msra.mxu0 %v100
    %212 = vmatpush.msra.mxu0 %v93
    %213 = vmatpush.msra.mxu0 %v86
    %214 = vmatpush.msra.mxu0 %v79
    %215 = vmatpush.msra.mxu0 %v72
    %216 = vmatpush.msra.mxu0 %v65
    %217 = vmatmul.f32.gmra.mxu0 %v119
    %v218 = vpop.f32.mrf.mxu0
    %v219 = vadd.f32 0.0, %v218
    %220 = vdwg.mxu0
    %221 = vmatpush.msra.mxu0 0.0
    %222 = vmatpush.msra.mxu0 0.0
    %223 = vmatpush.msra.mxu0 0.0
    %224 = vmatpush.msra.mxu0 0.0
    %225 = vmatpush.msra.mxu0 0.0
    %226 = vmatpush.msra.mxu0 0.0
    %227 = vmatpush.msra.mxu0 0.0
    %228 = vmatpush.msra.mxu0 0.0
    %229 = vmatpush.msra.mxu0 %v115
    %230 = vmatpush.msra.mxu0 %v108
    %231 = vmatpush.msra.mxu0 %v101
    %232 = vmatpush.msra.mxu0 %v94
    %233 = vmatpush.msra.mxu0 %v87
    %234 = vmatpush.msra.mxu0 %v80
    %235 = vmatpush.msra.mxu0 %v73
    %236 = vmatpush.msra.mxu0 %v66
    %237 = vmatmul.f32.gmra.mxu0 %v119
    %v238 = vpop.f32.mrf.mxu0
    %v239 = vadd.f32 0.0, %v238
    %240 = vdwg.mxu0
    %241 = vmatpush.msra.mxu0 0.0
    %242 = vmatpush.msra.mxu0 0.0
    %243 = vmatpush.msra.mxu0 0.0
    %244 = vmatpush.msra.mxu0 0.0
    %245 = vmatpush.msra.mxu0 0.0
    %246 = vmatpush.msra.mxu0 0.0
    %247 = vmatpush.msra.mxu0 0.0
    %248 = vmatpush.msra.mxu0 0.0
    %249 = vmatpush.msra.mxu0 %v116
    %250 = vmatpush.msra.mxu0 %v109
    %251 = vmatpush.msra.mxu0 %v102
    %252 = vmatpush.msra.mxu0 %v95
    %253 = vmatpush.msra.mxu0 %v88
    %254 = vmatpush.msra.mxu0 %v81
    %255 = vmatpush.msra.mxu0 %v74
    %256 = vmatpush.msra.mxu0 %v67
    %257 = vmatmul.f32.gmra.mxu0 %v119
    %v258 = vpop.f32.mrf.mxu0
    %v259 = vadd.f32 0.0, %v258
    %260 = vdwg.mxu0
    %vm261 = vcmask 1041408
    %v262 = vsel %vm261, %v139, 0.0
    %v263 = vsel %vm261, %v159, 0.0
    %v264 = vadd.f32 %v262, %v263
    %v265 = vsel %vm261, %v179, 0.0
    %v266 = vadd.f32 %v264, %v265
    %v267 = vsel %vm261, %v199, 0.0
    %v268 = vadd.f32 %v266, %v267
    %v269 = vsel %vm261, %v219, 0.0
    %v270 = vadd.f32 %v268, %v269
    %v271 = vsel %vm261, %v239, 0.0
    %v272 = vadd.f32 %v270, %v271
    %vm273 = vcmask 123904
    %v274 = vsel %vm273, %v259, 0.0
    %v275 = vadd.f32 %v272, %v274
    %276 = vadd.xlane.f32.xlu0 %v275
    %v277 = vpop.xlane.xlu0 %276
    %v278 = vmul.f32 %v277, 0.0012755102
    %v279 = vmul.f32 %v139, %v139
    %v280 = vmul.f32 %v159, %v159
    %v281 = vmul.f32 %v179, %v179
    %v282 = vmul.f32 %v199, %v199
    %v283 = vmul.f32 %v219, %v219
    %v284 = vmul.f32 %v239, %v239
    %v285 = vmul.f32 %v259, %v259
    %v286 = vsel %vm261, %v279, 0.0
    %v287 = vsel %vm261, %v280, 0.0
    %v288 = vadd.f32 %v286, %v287
    %v289 = vsel %vm261, %v281, 0.0
    %v290 = vadd.f32 %v288, %v289
    %v291 = vsel %vm261, %v282, 0.0
    %v292 = vadd.f32 %v290, %v291
    %v293 = vsel %vm261, %v283, 0.0
    %v294 = vadd.f32 %v292, %v293
    %v295 = vsel %vm261, %v284, 0.0
    %v296 = vadd.f32 %v294, %v295
    %v297 = vsel %vm273, %v285, 0.0
    %v298 = vadd.f32 %v296, %v297
    %299 = vadd.xlane.f32.xlu0 %v298
    %v300 = vpop.xlane.xlu0 %299
    %v301 = vmul.f32 %v300, 0.0012755102
    %v302 = vmul.f32 %v278, %v278
    %v303 = vsub.f32 %v301, %v302
    %v304 = vadd.f32 %v303, 1e-05
    %v305 = vrsqrt.pop %v304
    %v306 = vmul.f32 %v305, %v304
    %v307 = vmul.f32 %v306, %v305
    %v308 = vmul.f32 0.5, %v307
    %v309 = vsub.f32 1.5, %v308
    %v310 = vmul.f32 %v305, %v309
    %vm311 = vweird.f32 %v304
    %vm312 = vweird.f32 %v305
    %vm313 = vmor %vm311, %vm312
    %v314 = vsel %vm313, %v305, %v310
    %v315 = vsub.f32 %v139, %v278
    %v316 = vsub.f32 %v159, %v278
    %v317 = vsub.f32 %v179, %v278
    %v318 = vsub.f32 %v199, %v278
    %v319 = vsub.f32 %v219, %v278
    %v320 = vsub.f32 %v239, %v278
    %v321 = vsub.f32 %v259, %v278
    %v322 = vmul.f32 %v315, %v314
    %v323 = vmul.f32 %v316, %v314
    %v324 = vmul.f32 %v317, %v314
    %v325 = vmul.f32 %v318, %v314
    %v326 = vmul.f32 %v319, %v314
    %v327 = vmul.f32 %v320, %v314
    %v328 = vmul.f32 %v321, %v314
    %v329 = vld [vmem:[#allocation4] sm:$0x7f]
    %v331 = vperm.slane %v329, 0
    %v332 = vperm.slane %v329, 1
    %v333 = vperm.slane %v329, 2
    %v334 = vperm.slane %v329, 3
    %v335 = vperm.slane %v329, 4
    %v336 = vperm.slane %v329, 5
    %v337 = vperm.slane %v329, 6
    %v345 = vmul.f32 %v322, %v331
    %v346 = vmul.f32 %v323, %v332
    %v347 = vmul.f32 %v324, %v333
    %v348 = vmul.f32 %v325, %v334
    %v349 = vmul.f32 %v326, %v335
    %v350 = vmul.f32 %v327, %v336
    %v351 = vmul.f32 %v328, %v337
    %v352 = vld [vmem:[#allocation6] sm:$0x7f]
    %v354 = vperm.slane %v352, 0
    %v355 = vperm.slane %v352, 1
    %v356 = vperm.slane %v352, 2
    %v357 = vperm.slane %v352, 3
    %v358 = vperm.slane %v352, 4
    %v359 = vperm.slane %v352, 5
    %v360 = vperm.slane %v352, 6
    %v368 = vadd.f32 %v345, %v354
    %v369 = vadd.f32 %v346, %v355
    %v370 = vadd.f32 %v347, %v356
    %v371 = vadd.f32 %v348, %v357
    %v372 = vadd.f32 %v349, %v358
    %v373 = vadd.f32 %v350, %v359
    %v374 = vadd.f32 %v351, %v360
    %v375 = vmul.f32 %v368, 0.5
    %v376 = vmul.f32 %v369, 0.5
    %v377 = vmul.f32 %v370, 0.5
    %v378 = vmul.f32 %v371, 0.5
    %v379 = vmul.f32 %v372, 0.5
    %v380 = vmul.f32 %v373, 0.5
    %v381 = vmul.f32 %v374, 0.5
    %v382 = vmul.f32 %v368, 0.70710677
    %v383 = vmul.f32 %v369, 0.70710677
    %v384 = vmul.f32 %v370, 0.70710677
    %v385 = vmul.f32 %v371, 0.70710677
    %v386 = vmul.f32 %v372, 0.70710677
    %v387 = vmul.f32 %v373, 0.70710677
    %v388 = vmul.f32 %v374, 0.70710677
    %vm389 = vcmp.ge.f32.partialorder %v382, 0.0
    %vm390 = vcmp.ge.f32.partialorder %v383, 0.0
    %vm391 = vcmp.ge.f32.partialorder %v384, 0.0
    %vm392 = vcmp.ge.f32.partialorder %v385, 0.0
    %vm393 = vcmp.ge.f32.partialorder %v386, 0.0
    %vm394 = vcmp.ge.f32.partialorder %v387, 0.0
    %vm395 = vcmp.ge.f32.partialorder %v388, 0.0
    %v396 = vsel %vm389, 1.0, -1.0
    %v397 = vsel %vm390, 1.0, -1.0
    %v398 = vsel %vm391, 1.0, -1.0
    %v399 = vsel %vm392, 1.0, -1.0
    %v400 = vsel %vm393, 1.0, -1.0
    %v401 = vsel %vm394, 1.0, -1.0
    %v402 = vsel %vm395, 1.0, -1.0
    %v403 = vand.u32 2147483647, %v382
    %v404 = vand.u32 2147483647, %v383
    %v405 = vand.u32 2147483647, %v384
    %v406 = vand.u32 2147483647, %v385
    %v407 = vand.u32 2147483647, %v386
    %v408 = vand.u32 2147483647, %v387
    %v409 = vand.u32 2147483647, %v388
    %v410 = vmul.f32 %v403, 0.3275911
    %v411 = vmul.f32 %v404, 0.3275911
    %v412 = vmul.f32 %v405, 0.3275911
    %v413 = vmul.f32 %v406, 0.3275911
    %v414 = vmul.f32 %v407, 0.3275911
    %v415 = vmul.f32 %v408, 0.3275911
    %v416 = vmul.f32 %v409, 0.3275911
    %v417 = vadd.f32 %v410, 1.0
    %v418 = vadd.f32 %v411, 1.0
    %v419 = vadd.f32 %v412, 1.0
    %v420 = vadd.f32 %v413, 1.0
    %v421 = vadd.f32 %v414, 1.0
    %v422 = vadd.f32 %v415, 1.0
    %v423 = vadd.f32 %v416, 1.0
    %v424 = vrcp.pop %v417
    %v425 = vmul.f32 %v417, %v424
    %v426 = vsub.f32 1.0, %v425
    %v427 = vmul.f32 %v424, %v426
    %v428 = vadd.f32 %v424, %v427
    %vm429 = vweird.f32 %v417
    %vm430 = vweird.f32 %v424
    %vm431 = vmor %vm429, %vm430
    %v432 = vsel %vm431, %v424, %v428
    %v433 = vand.u32 2147483647, %v417
    %vm434 = vcmp.eq.f32.partialorder %v433, 8.507059e+37
    %v435 = vand.u32 %v417, 2147483648
    %v436 = vor.u32 1.1754944e-38, %v435
    %v437 = vsel %vm434, %v436, %v432
    %v438 = vmul.f32 1.0, %v437
    %v439 = vrcp.pop %v418
    %v440 = vmul.f32 %v418, %v439
    %v441 = vsub.f32 1.0, %v440
    %v442 = vmul.f32 %v439, %v441
    %v443 = vadd.f32 %v439, %v442
    %vm444 = vweird.f32 %v418
    %vm445 = vweird.f32 %v439
    %vm446 = vmor %vm444, %vm445
    %v447 = vsel %vm446, %v439, %v443
    %v448 = vand.u32 2147483647, %v418
    %vm449 = vcmp.eq.f32.partialorder %v448, 8.507059e+37
    %v450 = vand.u32 %v418, 2147483648
    %v451 = vor.u32 1.1754944e-38, %v450
    %v452 = vsel %vm449, %v451, %v447
    %v453 = vmul.f32 1.0, %v452
    %v454 = vrcp.pop %v419
    %v455 = vmul.f32 %v419, %v454
    %v456 = vsub.f32 1.0, %v455
    %v457 = vmul.f32 %v454, %v456
    %v458 = vadd.f32 %v454, %v457
    %vm459 = vweird.f32 %v419
    %vm460 = vweird.f32 %v454
    %vm461 = vmor %vm459, %vm460
    %v462 = vsel %vm461, %v454, %v458
    %v463 = vand.u32 2147483647, %v419
    %vm464 = vcmp.eq.f32.partialorder %v463, 8.507059e+37
    %v465 = vand.u32 %v419, 2147483648
    %v466 = vor.u32 1.1754944e-38, %v465
    %v467 = vsel %vm464, %v466, %v462
    %v468 = vmul.f32 1.0, %v467
    %v469 = vrcp.pop %v420
    %v470 = vmul.f32 %v420, %v469
    %v471 = vsub.f32 1.0, %v470
    %v472 = vmul.f32 %v469, %v471
    %v473 = vadd.f32 %v469, %v472
    %vm474 = vweird.f32 %v420
    %vm475 = vweird.f32 %v469
    %vm476 = vmor %vm474, %vm475
    %v477 = vsel %vm476, %v469, %v473
    %v478 = vand.u32 2147483647, %v420
    %vm479 = vcmp.eq.f32.partialorder %v478, 8.507059e+37
    %v480 = vand.u32 %v420, 2147483648
    %v481 = vor.u32 1.1754944e-38, %v480
    %v482 = vsel %vm479, %v481, %v477
    %v483 = vmul.f32 1.0, %v482
    %v484 = vrcp.pop %v421
    %v485 = vmul.f32 %v421, %v484
    %v486 = vsub.f32 1.0, %v485
    %v487 = vmul.f32 %v484, %v486
    %v488 = vadd.f32 %v484, %v487
    %vm489 = vweird.f32 %v421
    %vm490 = vweird.f32 %v484
    %vm491 = vmor %vm489, %vm490
    %v492 = vsel %vm491, %v484, %v488
    %v493 = vand.u32 2147483647, %v421
    %vm494 = vcmp.eq.f32.partialorder %v493, 8.507059e+37
    %v495 = vand.u32 %v421, 2147483648
    %v496 = vor.u32 1.1754944e-38, %v495
    %v497 = vsel %vm494, %v496, %v492
    %v498 = vmul.f32 1.0, %v497
    %v499 = vrcp.pop %v422
    %v500 = vmul.f32 %v422, %v499
    %v501 = vsub.f32 1.0, %v500
    %v502 = vmul.f32 %v499, %v501
    %v503 = vadd.f32 %v499, %v502
    %vm504 = vweird.f32 %v422
    %vm505 = vweird.f32 %v499
    %vm506 = vmor %vm504, %vm505
    %v507 = vsel %vm506, %v499, %v503
    %v508 = vand.u32 2147483647, %v422
    %vm509 = vcmp.eq.f32.partialorder %v508, 8.507059e+37
    %v510 = vand.u32 %v422, 2147483648
    %v511 = vor.u32 1.1754944e-38, %v510
    %v512 = vsel %vm509, %v511, %v507
    %v513 = vmul.f32 1.0, %v512
    %v514 = vrcp.pop %v423
    %v515 = vmul.f32 %v423, %v514
    %v516 = vsub.f32 1.0, %v515
    %v517 = vmul.f32 %v514, %v516
    %v518 = vadd.f32 %v514, %v517
    %vm519 = vweird.f32 %v423
    %vm520 = vweird.f32 %v514
    %vm521 = vmor %vm519, %vm520
    %v522 = vsel %vm521, %v514, %v518
    %v523 = vand.u32 2147483647, %v423
    %vm524 = vcmp.eq.f32.partialorder %v523, 8.507059e+37
    %v525 = vand.u32 %v423, 2147483648
    %v526 = vor.u32 1.1754944e-38, %v525
    %v527 = vsel %vm524, %v526, %v522
    %v528 = vmul.f32 1.0, %v527
    %v529 = vmul.f32 %v438, 1.0614054
    %v530 = vmul.f32 %v453, 1.0614054
    %v531 = vmul.f32 %v468, 1.0614054
    %v532 = vmul.f32 %v483, 1.0614054
    %v533 = vmul.f32 %v498, 1.0614054
    %v534 = vmul.f32 %v513, 1.0614054
    %v535 = vmul.f32 %v528, 1.0614054
    %v536 = vadd.f32 %v529, -1.4531521
    %v537 = vadd.f32 %v530, -1.4531521
    %v538 = vadd.f32 %v531, -1.4531521
    %v539 = vadd.f32 %v532, -1.4531521
    %v540 = vadd.f32 %v533, -1.4531521
    %v541 = vadd.f32 %v534, -1.4531521
    %v542 = vadd.f32 %v535, -1.4531521
    %v543 = vmul.f32 %v438, %v536
    %v544 = vmul.f32 %v453, %v537
    %v545 = vmul.f32 %v468, %v538
    %v546 = vmul.f32 %v483, %v539
    %v547 = vmul.f32 %v498, %v540
    %v548 = vmul.f32 %v513, %v541
    %v549 = vmul.f32 %v528, %v542
    %v550 = vadd.f32 %v543, 1.4214138
    %v551 = vadd.f32 %v544, 1.4214138
    %v552 = vadd.f32 %v545, 1.4214138
    %v553 = vadd.f32 %v546, 1.4214138
    %v554 = vadd.f32 %v547, 1.4214138
    %v555 = vadd.f32 %v548, 1.4214138
    %v556 = vadd.f32 %v549, 1.4214138
    %v557 = vmul.f32 %v438, %v550
    %v558 = vmul.f32 %v453, %v551
    %v559 = vmul.f32 %v468, %v552
    %v560 = vmul.f32 %v483, %v553
    %v561 = vmul.f32 %v498, %v554
    %v562 = vmul.f32 %v513, %v555
    %v563 = vmul.f32 %v528, %v556
    %v564 = vadd.f32 %v557, -0.28449672
    %v565 = vadd.f32 %v558, -0.28449672
    %v566 = vadd.f32 %v559, -0.28449672
    %v567 = vadd.f32 %v560, -0.28449672
    %v568 = vadd.f32 %v561, -0.28449672
    %v569 = vadd.f32 %v562, -0.28449672
    %v570 = vadd.f32 %v563, -0.28449672
    %v571 = vmul.f32 %v438, %v564
    %v572 = vmul.f32 %v453, %v565
    %v573 = vmul.f32 %v468, %v566
    %v574 = vmul.f32 %v483, %v567
    %v575 = vmul.f32 %v498, %v568
    %v576 = vmul.f32 %v513, %v569
    %v577 = vmul.f32 %v528, %v570
    %v578 = vadd.f32 %v571, 0.2548296
    %v579 = vadd.f32 %v572, 0.2548296
    %v580 = vadd.f32 %v573, 0.2548296
    %v581 = vadd.f32 %v574, 0.2548296
    %v582 = vadd.f32 %v575, 0.2548296
    %v583 = vadd.f32 %v576, 0.2548296
    %v584 = vadd.f32 %v577, 0.2548296
    %v585 = vmul.f32 %v438, %v578
    %v586 = vmul.f32 %v453, %v579
    %v587 = vmul.f32 %v468, %v580
    %v588 = vmul.f32 %v483, %v581
    %v589 = vmul.f32 %v498, %v582
    %v590 = vmul.f32 %v513, %v583
    %v591 = vmul.f32 %v528, %v584
    %v592 = vsub.f32 0.0, %v403
    %v593 = vsub.f32 0.0, %v404
    %v594 = vsub.f32 0.0, %v405
    %v595 = vsub.f32 0.0, %v406
    %v596 = vsub.f32 0.0, %v407
    %v597 = vsub.f32 0.0, %v408
    %v598 = vsub.f32 0.0, %v409
    %v599 = vmul.f32 %v592, %v403
    %v600 = vmul.f32 %v593, %v404
    %v601 = vmul.f32 %v594, %v405
    %v602 = vmul.f32 %v595, %v406
    %v603 = vmul.f32 %v596, %v407
    %v604 = vmul.f32 %v597, %v408
    %v605 = vmul.f32 %v598, %v409
    %v606 = vmul.f32 %v599, 1.442695
    %v607 = vpow.pop %v606
    %v608 = vmul.f32 %v600, 1.442695
    %v609 = vpow.pop %v608
    %v610 = vmul.f32 %v601, 1.442695
    %v611 = vpow.pop %v610
    %v612 = vmul.f32 %v602, 1.442695
    %v613 = vpow.pop %v612
    %v614 = vmul.f32 %v603, 1.442695
    %v615 = vpow.pop %v614
    %v616 = vmul.f32 %v604, 1.442695
    %v617 = vpow.pop %v616
    %v618 = vmul.f32 %v605, 1.442695
    %v619 = vpow.pop %v618
    %v620 = vmul.f32 %v585, %v607
    %v621 = vmul.f32 %v586, %v609
    %v622 = vmul.f32 %v587, %v611
    %v623 = vmul.f32 %v588, %v613
    %v624 = vmul.f32 %v589, %v615
    %v625 = vmul.f32 %v590, %v617
    %v626 = vmul.f32 %v591, %v619
    %v627 = vsub.f32 1.0, %v620
    %v628 = vsub.f32 1.0, %v621
    %v629 = vsub.f32 1.0, %v622
    %v630 = vsub.f32 1.0, %v623
    %v631 = vsub.f32 1.0, %v624
    %v632 = vsub.f32 1.0, %v625
    %v633 = vsub.f32 1.0, %v626
    %v634 = vmul.f32 %v396, %v627
    %v635 = vmul.f32 %v397, %v628
    %v636 = vmul.f32 %v398, %v629
    %v637 = vmul.f32 %v399, %v630
    %v638 = vmul.f32 %v400, %v631
    %v639 = vmul.f32 %v401, %v632
    %v640 = vmul.f32 %v402, %v633
    %v641 = vadd.f32 %v634, 1.0
    %v642 = vadd.f32 %v635, 1.0
    %v643 = vadd.f32 %v636, 1.0
    %v644 = vadd.f32 %v637, 1.0
    %v645 = vadd.f32 %v638, 1.0
    %v646 = vadd.f32 %v639, 1.0
    %v647 = vadd.f32 %v640, 1.0
    %v648 = vmul.f32 %v375, %v641
    %v649 = vmul.f32 %v376, %v642
    %v650 = vmul.f32 %v377, %v643
    %v651 = vmul.f32 %v378, %v644
    %v652 = vmul.f32 %v379, %v645
    %v653 = vmul.f32 %v380, %v646
    %v654 = vmul.f32 %v381, %v647
    %v662 = vrot.slane %v649, 6
    %v663 = vrot.slane %v650, 4
    %v664 = vrot.slane %v651, 2
    %v665 = vrot.slane %v653, 6
    %v666 = vrot.slane %v654, 4
    %v667 = vsel %vm261, %v648, %v662
    %vm668 = vcmask 1045508
    %v669 = vsel %vm668, %v663, %v664
    %vm670 = vcmask 1043456
    %v671 = vsel %vm670, %v667, %v669
    %v672 = vsel %vm261, %v652, %v665
    %v673 = vsel %vm670, %v672, %v666
    %676 = vst [vmem:[%s4] sm:$0xff] %v671
    %vm677 = vcmask 1043458
    %vm678 = vmor %vm677, %vm261
    %vm679 = vcmask 128004
    %vm680 = vmor %vm679, %vm678
    %681 = vst.msk [vmem:[%s4 + $0x8] sm:$0x3f] %vm680, %v673
    // Predicated region
    $region30: #{generator_forward.2} parent=1 // pred_check
      _
    $region31: #{generator_forward.2} parent=1 // pred_check_branch
      %683 = sbr.rel (0) target = $region33
    $region32: #{generator_forward.2} parent=1 // pred_region
      _
    $region33: #{generator_forward.2} parent=1 // pred_fallthru
      _
    // Predicated region
    $region34: #{generator_forward.2} parent=1 // pred_check
      _
    $region35: #{generator_forward.2} parent=1 // pred_check_branch
      %685 = sbr.rel (0) target = $region37
    $region36: #{generator_forward.2} parent=1 // pred_region
      _
    $region37: #{generator_forward.2} parent=1 // pred_fallthru
      _
    %686 = vsyncpa [#allocation3], 1
    %687 = vsyncpa [#allocation5], 1

// kernel: generator_forward.3
$region0: #{generator_forward.3}
  #allocation0 [shape = 'u32[]', space=smem, size = 0x4, offset = 0x4, fixed_abs, tag = 'smem constant byte address 0x4 - core index']
  #allocation1 [shape = 'u32[72,128]{1,0:T(1,128)}', space=vmem, size = 0x9000, scoped, tag = 'internal scratch']
  #allocation2 [shape = 'f32[104,64]{1,0:T(8,128)}', space=vmem, size = 0xd000, scoped, tag = 'scratch operand']
  %s0 = inlined_call_operand.vmem [shape: f32[2,104,16], index: 0, kind: input, shape index: {}]
  %s1 = inlined_call_operand.vmem [shape: f32[9,16,64], index: 1, kind: input, shape index: {}]
  %s2 = inlined_call_operand.vmem [shape: f32[1,64], index: 2, kind: input, shape index: {}]
  %s3 = inlined_call_operand.vmem [shape: f32[1,64], index: 3, kind: input, shape index: {}]
  %s4 = inlined_call_operand.vmem [shape: f32[9,64,256], index: 4, kind: input, shape index: {}]
  %s5 = inlined_call_operand.vmem [shape: f32[1,256], index: 5, kind: input, shape index: {}]
  %s6 = inlined_call_operand.vmem [shape: f32[1,256], index: 6, kind: input, shape index: {}]
  %s7 = inlined_call_operand.vmem [shape: f32[256,16], index: 7, kind: input, shape index: {}]
  %s8 = inlined_call_operand.vmem [shape: f32[1,16], index: 8, kind: input, shape index: {}]
  %s9 = inlined_call_operand.vmem [shape: f32[81,1], index: 9, kind: input, shape index: {}]
  %s10 = inlined_call_operand.vmem [shape: f32[2,81,16], index: 10, kind: output, shape index: {}]
  %s11 = sld [smem:[#allocation0]]
  $region73: #{generator_forward.3} parent=0
    _
  %s13 = ssub.s32 1, %s11
  %s14 = scalar_select 0, %s13, %s11
  loop: start=0, step=1, limit=4
  $region2: #{generator_forward.3} parent=0 // loop_pre_header
    _
  $region3: #{generator_forward.3} parent=0 // loop_header
    %s16 = sphi 0, %s20
    %p17 = scmp.ge.s32.totalorder %s16, 4
    %s26 = sphi 0, %s28
    %s29 = sphi 0, %s26
    %s30 = sphi 0, %s29
    %s46 = sphi 0, %s30
    %s50 = sphi 0, %s50
    %s52 = sphi 0, %s50
    %s53 = sphi 0, %s52
    %s67 = sphi 0, %s53
    %s71 = sphi 0, %s71
    %s73 = sphi 0, %s71
    %s74 = sphi 0, %s73
    %s88 = sphi 0, %s74
    %s92 = sphi 0, %s92
    %s94 = sphi 0, %s92
    %s95 = sphi 0, %s94
    %s109 = sphi 0, %s95
    %s113 = sphi 0, %s113
    %s115 = sphi 0, %s113
    %s116 = sphi 0, %s115
    %s130 = sphi 0, %s116
    %s134 = sphi 0, %s134
    %s136 = sphi 0, %s134
    %s137 = sphi 0, %s136
    %s151 = sphi 0, %s137
    %s155 = sphi 0, %s155
    %s157 = sphi 0, %s155
    %s158 = sphi 0, %s157
    %s172 = sphi 0, %s158
    %s176 = sphi 0, %s176
    %s178 = sphi 0, %s176
    %s179 = sphi 0, %s178
    %s193 = sphi 0, %s179
    %s197 = sphi 0, %s197
    %s199 = sphi 0, %s197
    %s200 = sphi 0, %s199
    %s214 = sphi 0, %s200
    %s218 = sphi 0, %s218
    %s220 = sphi 0, %s218
    %s221 = sphi 0, %s220
    %s235 = sphi 0, %s221
    %s241 = sphi 0, %s243
    %s244 = sphi 0, %s241
    %s245 = sphi 0, %s244
    %s261 = sphi 0, %s245
  $region4: #{generator_forward.3} parent=0 // loop_header_branch
    %19 = sbr.rel (%p17) target = $region8
  $region5: #{generator_forward.3} parent=0 // loop_body
    %s21 = ssub.s32 %s16, 1
    %s22 = ssub.s32 %s16, 2
    %s23 = sadd.s32 %s16, 1
    %s24 = ssub.s32 %s16, %s23
    %p25 = scmp.eq.s32.totalorder %s24, 0
    %s27 = sadd.s32 %s26, 1
    %s28 = scalar_select %p25, %s26, %s27
    %p31 = pneg %p25
    %p32 = scmp.eq.s32.totalorder %s16, 1
    %p33 = por %p31, %p32
    %p34 = scmp.ne.s32.totalorder %s26, %s29
    %p35 = scmp.eq.s32.totalorder %s16, 0
    %p36 = por %p34, %p35
    %p37 = scmp.ne.s32.totalorder %s26, %s29
    %p38 = scmp.eq.s32.totalorder %s21, 1
    %p39 = por %p37, %p38
    %p40 = scmp.ne.s32.totalorder %s29, %s30
    %p41 = scmp.eq.s32.totalorder %s21, 0
    %p42 = por %p40, %p41
    %p43 = scmp.ne.s32.totalorder %s29, %s30
    %p44 = scmp.eq.s32.totalorder %s22, 1
    %p45 = por %p43, %p44
    %p47 = scmp.ne.s32.totalorder %s30, %s46
    %p48 = scmp.eq.s32.totalorder %s22, 0
    %p49 = por %p47, %p48
    %s51 = sadd.s32 %s50, 1
    %p54 = scmp.eq.s32.totalorder %s16, 1
    %p55 = scmp.ne.s32.totalorder %s50, %s52
    %p56 = scmp.eq.s32.totalorder %s16, 0
    %p57 = por %p55, %p56
    %p58 = scmp.ne.s32.totalorder %s50, %s52
    %p59 = scmp.eq.s32.totalorder %s21, 1
    %p60 = por %p58, %p59
    %p61 = scmp.ne.s32.totalorder %s52, %s53
    %p62 = scmp.eq.s32.totalorder %s21, 0
    %p63 = por %p61, %p62
    %p64 = scmp.ne.s32.totalorder %s52, %s53
    %p65 = scmp.eq.s32.totalorder %s22, 1
    %p66 = por %p64, %p65
    %p68 = scmp.ne.s32.totalorder %s53, %s67
    %p69 = scmp.eq.s32.totalorder %s22, 0
    %p70 = por %p68, %p69
    %s72 = sadd.s32 %s71, 1
    %p75 = scmp.eq.s32.totalorder %s16, 1
    %p76 = scmp.ne.s32.totalorder %s71, %s73
    %p77 = scmp.eq.s32.totalorder %s16, 0
    %p78 = por %p76, %p77
    %p79 = scmp.ne.s32.totalorder %s71, %s73
    %p80 = scmp.eq.s32.totalorder %s21, 1
    %p81 = por %p79, %p80
    %p82 = scmp.ne.s32.totalorder %s73, %s74
    %p83 = scmp.eq.s32.totalorder %s21, 0
    %p84 = por %p82, %p83
    %p85 = scmp.ne.s32.totalorder %s73, %s74
    %p86 = scmp.eq.s32.totalorder %s22, 1
    %p87 = por %p85, %p86
    %p89 = scmp.ne.s32.totalorder %s74, %s88
    %p90 = scmp.eq.s32.totalorder %s22, 0
    %p91 = por %p89, %p90
    %s93 = sadd.s32 %s92, 1
    %p96 = scmp.eq.s32.totalorder %s16, 1
    %p97 = scmp.ne.s32.totalorder %s92, %s94
    %p98 = scmp.eq.s32.totalorder %s16, 0
    %p99 = por %p97, %p98
    %p100 = scmp.ne.s32.totalorder %s92, %s94
    %p101 = scmp.eq.s32.totalorder %s21, 1
    %p102 = por %p100, %p101
    %p103 = scmp.ne.s32.totalorder %s94, %s95
    %p104 = scmp.eq.s32.totalorder %s21, 0
    %p105 = por %p103, %p104
    %p106 = scmp.ne.s32.totalorder %s94, %s95
    %p107 = scmp.eq.s32.totalorder %s22, 1
    %p108 = por %p106, %p107
    %p110 = scmp.ne.s32.totalorder %s95, %s109
    %p111 = scmp.eq.s32.totalorder %s22, 0
    %p112 = por %p110, %p111
    %s114 = sadd.s32 %s113, 1
    %p117 = scmp.eq.s32.totalorder %s16, 1
    %p118 = scmp.ne.s32.totalorder %s113, %s115
    %p119 = scmp.eq.s32.totalorder %s16, 0
    %p120 = por %p118, %p119
    %p121 = scmp.ne.s32.totalorder %s113, %s115
    %p122 = scmp.eq.s32.totalorder %s21, 1
    %p123 = por %p121, %p122
    %p124 = scmp.ne.s32.totalorder %s115, %s116
    %p125 = scmp.eq.s32.totalorder %s21, 0
    %p126 = por %p124, %p125
    %p127 = scmp.ne.s32.totalorder %s115, %s116
    %p128 = scmp.eq.s32.totalorder %s22, 1
    %p129 = por %p127, %p128
    %p131 = scmp.ne.s32.totalorder %s116, %s130
    %p132 = scmp.eq.s32.totalorder %s22, 0
    %p133 = por %p131, %p132
    %s135 = sadd.s32 %s134, 1
    %p138 = scmp.eq.s32.totalorder %s16, 1
    %p139 = scmp.ne.s32.totalorder %s134, %s136
    %p140 = scmp.eq.s32.totalorder %s16, 0
    %p141 = por %p139, %p140
    %p142 = scmp.ne.s32.totalorder %s134, %s136
    %p143 = scmp.eq.s32.totalorder %s21, 1
    %p144 = por %p142, %p143
    %p145 = scmp.ne.s32.totalorder %s136, %s137
    %p146 = scmp.eq.s32.totalorder %s21, 0
    %p147 = por %p145, %p146
    %p148 = scmp.ne.s32.totalorder %s136, %s137
    %p149 = scmp.eq.s32.totalorder %s22, 1
    %p150 = por %p148, %p149
    %p152 = scmp.ne.s32.totalorder %s137, %s151
    %p153 = scmp.eq.s32.totalorder %s22, 0
    %p154 = por %p152, %p153
    %s156 = sadd.s32 %s155, 1
    %p159 = scmp.eq.s32.totalorder %s16, 1
    %p160 = scmp.ne.s32.totalorder %s155, %s157
    %p161 = scmp.eq.s32.totalorder %s16, 0
    %p162 = por %p160, %p161
    %p163 = scmp.ne.s32.totalorder %s155, %s157
    %p164 = scmp.eq.s32.totalorder %s21, 1
    %p165 = por %p163, %p164
    %p166 = scmp.ne.s32.totalorder %s157, %s158
    %p167 = scmp.eq.s32.totalorder %s21, 0
    %p168 = por %p166, %p167
    %p169 = scmp.ne.s32.totalorder %s157, %s158
    %p170 = scmp.eq.s32.totalorder %s22, 1
    %p171 = por %p169, %p170
    %p173 = scmp.ne.s32.totalorder %s158, %s172
    %p174 = scmp.eq.s32.totalorder %s22, 0
    %p175 = por %p173, %p174
    %s177 = sadd.s32 %s176, 1
    %p180 = scmp.eq.s32.totalorder %s16, 1
    %p181 = scmp.ne.s32.totalorder %s176, %s178
    %p182 = scmp.eq.s32.totalorder %s16, 0
    %p183 = por %p181, %p182
    %p184 = scmp.ne.s32.totalorder %s176, %s178
    %p185 = scmp.eq.s32.totalorder %s21, 1
    %p186 = por %p184, %p185
    %p187 = scmp.ne.s32.totalorder %s178, %s179
    %p188 = scmp.eq.s32.totalorder %s21, 0
    %p189 = por %p187, %p188
    %p190 = scmp.ne.s32.totalorder %s178, %s179
    %p191 = scmp.eq.s32.totalorder %s22, 1
    %p192 = por %p190, %p191
    %p194 = scmp.ne.s32.totalorder %s179, %s193
    %p195 = scmp.eq.s32.totalorder %s22, 0
    %p196 = por %p194, %p195
    %s198 = sadd.s32 %s197, 1
    %p201 = scmp.eq.s32.totalorder %s16, 1
    %p202 = scmp.ne.s32.totalorder %s197, %s199
    %p203 = scmp.eq.s32.totalorder %s16, 0
    %p204 = por %p202, %p203
    %p205 = scmp.ne.s32.totalorder %s197, %s199
    %p206 = scmp.eq.s32.totalorder %s21, 1
    %p207 = por %p205, %p206
    %p208 = scmp.ne.s32.totalorder %s199, %s200
    %p209 = scmp.eq.s32.totalorder %s21, 0
    %p210 = por %p208, %p209
    %p211 = scmp.ne.s32.totalorder %s199, %s200
    %p212 = scmp.eq.s32.totalorder %s22, 1
    %p213 = por %p211, %p212
    %p215 = scmp.ne.s32.totalorder %s200, %s214
    %p216 = scmp.eq.s32.totalorder %s22, 0
    %p217 = por %p215, %p216
    %s219 = sadd.s32 %s218, 1
    %p222 = scmp.eq.s32.totalorder %s16, 1
    %p223 = scmp.ne.s32.totalorder %s218, %s220
    %p224 = scmp.eq.s32.totalorder %s16, 0
    %p225 = por %p223, %p224
    %p226 = scmp.ne.s32.totalorder %s218, %s220
    %p227 = scmp.eq.s32.totalorder %s21, 1
    %p228 = por %p226, %p227
    %p229 = scmp.ne.s32.totalorder %s220, %s221
    %p230 = scmp.eq.s32.totalorder %s21, 0
    %p231 = por %p229, %p230
    %p232 = scmp.ne.s32.totalorder %s220, %s221
    %p233 = scmp.eq.s32.totalorder %s22, 1
    %p234 = por %p232, %p233
    %p236 = scmp.ne.s32.totalorder %s221, %s235
    %p237 = scmp.eq.s32.totalorder %s22, 0
    %p238 = por %p236, %p237
    %s239 = ssub.s32 %s16, %s23
    %p240 = scmp.eq.s32.totalorder %s239, 0
    %s242 = sadd.s32 %s241, 1
    %s243 = scalar_select %p240, %s241, %s242
    %p246 = pneg %p240
    %p247 = scmp.eq.s32.totalorder %s16, 1
    %p248 = por %p246, %p247
    %p249 = scmp.ne.s32.totalorder %s241, %s244
    %p250 = scmp.eq.s32.totalorder %s16, 0
    %p251 = por %p249, %p250
    %p252 = scmp.ne.s32.totalorder %s241, %s244
    %p253 = scmp.eq.s32.totalorder %s21, 1
    %p254 = por %p252, %p253
    %p255 = scmp.ne.s32.totalorder %s244, %s245
    %p256 = scmp.eq.s32.totalorder %s21, 0
    %p257 = por %p255, %p256
    %p258 = scmp.ne.s32.totalorder %s244, %s245
    %p259 = scmp.eq.s32.totalorder %s22, 1
    %p260 = por %p258, %p259
    %p262 = scmp.ne.s32.totalorder %s245, %s261
    %p263 = scmp.eq.s32.totalorder %s22, 0
    %p264 = por %p262, %p263
    %p265 = scmp.le.s32.totalorder 1, %s16
    %p266 = scmp.lt.s32.totalorder %s16, 3
    %p267 = pnand %p265, %p266
    %p268 = pneg %p267
    // Predicated region
    $region9: #{generator_forward.3} parent=5 // pred_check
      _
    $region10: #{generator_forward.3} parent=5 // pred_check_branch
      %270 = sbr.rel (%p267) target = $region12
    $region11: #{generator_forward.3} parent=5 // pred_region
      %s271 = ssub.s32 %s16, 1
      // Predicated region
      $region13: #{generator_forward.3} parent=11 // pred_check
        %p272 = pneg %p63
      $region14: #{generator_forward.3} parent=11 // pred_check_branch
        %274 = sbr.rel (%p272) target = $region16
      $region15: #{generator_forward.3} parent=11 // pred_region
        _
      $region16: #{generator_forward.3} parent=11 // pred_fallthru
        _
      // Predicated region
      $region17: #{generator_forward.3} parent=11 // pred_check
        %p275 = pneg %p84
      $region18: #{generator_forward.3} parent=11 // pred_check_branch
        %277 = sbr.rel (%p275) target = $region20
      $region19: #{generator_forward.3} parent=11 // pred_region
        _
      $region20: #{generator_forward.3} parent=11 // pred_fallthru
        _
      // Predicated region
      $region21: #{generator_forward.3} parent=11 // pred_check
        %p278 = pneg %p105
      $region22: #{generator_forward.3} parent=11 // pred_check_branch
        %280 = sbr.rel (%p278) target = $region24
      $region23: #{generator_forward.3} parent=11 // pred_region
        _
      $region24: #{generator_forward.3} parent=11 // pred_fallthru
        _
      // Predicated region
      $region25: #{generator_forward.3} parent=11 // pred_check
        %p281 = pneg %p126
      $region26: #{generator_forward.3} parent=11 // pred_check_branch
        %283 = sbr.rel (%p281) target = $region28
      $region27: #{generator_forward.3} parent=11 // pred_region
        _
      $region28: #{generator_forward.3} parent=11 // pred_fallthru
        _
      // Predicated region
      $region29: #{generator_forward.3} parent=11 // pred_check
        %p284 = pneg %p147
      $region30: #{generator_forward.3} parent=11 // pred_check_branch
        %286 = sbr.rel (%p284) target = $region32
      $region31: #{generator_forward.3} parent=11 // pred_region
        _
      $region32: #{generator_forward.3} parent=11 // pred_fallthru
        _
      // Predicated region
      $region33: #{generator_forward.3} parent=11 // pred_check
        %p287 = pneg %p168
      $region34: #{generator_forward.3} parent=11 // pred_check_branch
        %289 = sbr.rel (%p287) target = $region36
      $region35: #{generator_forward.3} parent=11 // pred_region
        _
      $region36: #{generator_forward.3} parent=11 // pred_fallthru
        _
      // Predicated region
      $region37: #{generator_forward.3} parent=11 // pred_check
        %p290 = pneg %p189
      $region38: #{generator_forward.3} parent=11 // pred_check_branch
        %292 = sbr.rel (%p290) target = $region40
      $region39: #{generator_forward.3} parent=11 // pred_region
        _
      $region40: #{generator_forward.3} parent=11 // pred_fallthru
        _
      // Predicated region
      $region41: #{generator_forward.3} parent=11 // pred_check
        %p293 = pneg %p210
      $region42: #{generator_forward.3} parent=11 // pred_check_branch
        %295 = sbr.rel (%p293) target = $region44
      $region43: #{generator_forward.3} parent=11 // pred_region
        _
      $region44: #{generator_forward.3} parent=11 // pred_fallthru
        _
      // Predicated region
      $region45: #{generator_forward.3} parent=11 // pred_check
        %p296 = pneg %p231
      $region46: #{generator_forward.3} parent=11 // pred_check_branch
        %298 = sbr.rel (%p296) target = $region48
      $region47: #{generator_forward.3} parent=11 // pred_region
        _
      $region48: #{generator_forward.3} parent=11 // pred_fallthru
        _
    $region12: #{generator_forward.3} parent=5 // pred_fallthru
      _
    %p299 = scmp.lt.s32.totalorder %s16, 2
    // Predicated region
    $region49: #{generator_forward.3} parent=5 // pred_check
      %p300 = pneg %p299
    $region50: #{generator_forward.3} parent=5 // pred_check_branch
      %302 = sbr.rel (%p300) target = $region52
    $region51: #{generator_forward.3} parent=5 // pred_region
      // Predicated region
      $region53: #{generator_forward.3} parent=51 // pred_check
        %p303 = pneg %p36
      $region54: #{generator_forward.3} parent=51 // pred_check_branch
        %305 = sbr.rel (%p303) target = $region56
      $region55: #{generator_forward.3} parent=51 // pred_region
        %p306 = scmp.lt.s32.totalorder %s16, 1
        %s307 = scalar_select %p306, %s16, 1
        %s308 = smul.addr %s307, 13
        %s309 = smul.addr %s308, 8
        %s310 = scalar_lea.vmem %s0, %s309
      $region56: #{generator_forward.3} parent=51 // pred_fallthru
        _
    $region52: #{generator_forward.3} parent=5 // pred_fallthru
      _
    %p311 = scmp.le.s32.totalorder 1, %s16
    %p312 = scmp.lt.s32.totalorder %s16, 3
    %p313 = pnand %p311, %p312
    %p314 = pneg %p313
    // Predicated region
    $region57: #{generator_forward.3} parent=5 // pred_check
      _
    $region58: #{generator_forward.3} parent=5 // pred_check_branch
      %316 = sbr.rel (%p313) target = $region60
    $region59: #{generator_forward.3} parent=5 // pred_region
      %s317 = ssub.s32 %s16, 1
      %p318 = scmp.lt.s32.totalorder %s21, 1
      %s319 = scalar_select %p318, %s21, 1
      %s320 = smul.addr %s319, 13
      %s321 = smul.addr %s320, 8
      %s322 = scalar_lea.vmem %s0, %s321
      %p323 = pneg %p42
      %p324 = pneg %p39
      %p325 = pneg %p63
      %p326 = pneg %p60
      %p327 = pneg %p84
      %p328 = pneg %p81
      %p329 = pneg %p105
      %p330 = pneg %p102
      %p331 = pneg %p126
      %p332 = pneg %p123
      %p333 = pneg %p147
      %p334 = pneg %p144
      %p335 = pneg %p168
      %p336 = pneg %p165
      %p337 = pneg %p189
      %p338 = pneg %p186
      %p339 = pneg %p210
      %p340 = pneg %p207
      %p341 = pneg %p231
      %p342 = pneg %p228
      %p343 = pneg %p257
      %p344 = pneg %p254
      %p345 = scmp.lt.s32.totalorder %s21, 1
      %s346 = scalar_select %p345, %s21, 1
      %s347 = smul.addr %s346, 11
      %s348 = smul.addr %s347, 8
      %s349 = scalar_lea.vmem %s10, %s348
      %p350 = scmp.lt.s32.totalorder %s21, 1
      %s351 = scalar_select %p350, %s21, 1
      %s352 = smul.addr %s351, 13
      %s353 = smul.addr %s352, 8
      %s354 = scalar_lea.vmem %s0, %s353
      %p355 = scmp.lt.s32.totalorder %s21, 1
      %s356 = scalar_select %p355, %s21, 1
      %s357 = smul.addr %s356, 11
      %s358 = smul.addr %s357, 8
      %s359 = scalar_lea.vmem %s10, %s358
      %v360 = vld [vmem:[%s9] sm:$0xff]
      %v361 = vld [vmem:[%s9 + $0x8] sm:$0xff]
      %v362 = vld [vmem:[%s9 + $0x10] sm:$0xff]
      %v363 = vld [vmem:[%s9 + $0x18] sm:$0xff]
      %v364 = vld [vmem:[%s9 + $0x20] sm:$0xff]
      %v365 = vld [vmem:[%s9 + $0x28] sm:$0xff]
      %v366 = vld [vmem:[%s9 + $0x30] sm:$0xff]
      %v367 = vld [vmem:[%s9 + $0x38] sm:$0xff]
      %v368 = vld [vmem:[%s9 + $0x40] sm:$0xff]
      %v369 = vld [vmem:[%s9 + $0x48] sm:$0xff]
      %v370 = vld [vmem:[%s9 + $0x50] sm:$0x1]
      %v371 = vld [vmem:[%s354] sm:$0xff]
      %v372 = vld [vmem:[%s354 + $0x8] sm:$0xff]
      %v373 = vld [vmem:[%s354 + $0x10] sm:$0xff]
      %v374 = vld [vmem:[%s354 + $0x18] sm:$0xff]
      %v375 = vld [vmem:[%s354 + $0x20] sm:$0xff]
      %v376 = vld [vmem:[%s354 + $0x28] sm:$0xff]
      %v377 = vld [vmem:[%s354 + $0x30] sm:$0xff]
      %v378 = vld [vmem:[%s354 + $0x38] sm:$0xff]
      %v379 = vld [vmem:[%s354 + $0x40] sm:$0xff]
      %v380 = vld [vmem:[%s354 + $0x48] sm:$0xff]
      %v381 = vld [vmem:[%s354 + $0x50] sm:$0x1]
      %v382 = vld [vmem:[%s1] sm:$0xff]
      %v383 = vld [vmem:[%s1 + $0x8] sm:$0xff]
      %v384 = vld [vmem:[%s354 + $0x1] sm:$0xff]
      %v385 = vld [vmem:[%s354 + $0x9] sm:$0xff]
      %v386 = vld [vmem:[%s354 + $0x11] sm:$0xff]
      %v387 = vld [vmem:[%s354 + $0x19] sm:$0xff]
      %v388 = vld [vmem:[%s354 + $0x21] sm:$0xff]
      %v389 = vld [vmem:[%s354 + $0x29] sm:$0xff]
      %v390 = vld [vmem:[%s354 + $0x31] sm:$0xff]
      %v391 = vld [vmem:[%s354 + $0x39] sm:$0xff]
      %v392 = vld [vmem:[%s354 + $0x41] sm:$0xff]
      %v393 = vld [vmem:[%s354 + $0x49] sm:$0xff]
      %v394 = vld [vmem:[%s354 + $0x51] sm:$0x1]
      %s395 = scalar_lea.vmem %s1, 16
      %v396 = vld [vmem:[%s395] sm:$0xff]
      %v397 = vld [vmem:[%s395 + $0x8] sm:$0xff]
      %vm398 = vcmask 130048
      %v400 = vsel %vm398, %v384, 0
      %v403 = vsel %vm398, %v385, 0
      %v406 = vsel %vm398, %v386, 0
      %v409 = vsel %vm398, %v387, 0
      %v412 = vsel %vm398, %v388, 0
      %v415 = vsel %vm398, %v389, 0
      %v418 = vsel %vm398, %v390, 0
      %v421 = vsel %vm398, %v391, 0
      %v424 = vsel %vm398, %v392, 0
      %v427 = vsel %vm398, %v393, 0
      %v430 = vsel %vm398, %v394, 0
      %432 = vmatpush.msra.mxu0 0.0
      %433 = vmatpush.msra.mxu0 0.0
      %434 = vmatpush.msra.mxu0 0.0
      %435 = vmatpush.msra.mxu0 0.0
      %436 = vmatpush.msra.mxu0 0.0
      %437 = vmatpush.msra.mxu0 0.0
      %438 = vmatpush.msra.mxu0 0.0
      %439 = vmatpush.msra.mxu0 0.0
      %440 = vmatpush.msra.mxu0 0.0
      %441 = vmatpush.msra.mxu0 0.0
      %442 = vmatpush.msra.mxu0 0.0
      %443 = vmatpush.msra.mxu0 0.0
      %444 = vmatpush.msra.mxu0 0.0
      %445 = vmatpush.msra.mxu0 0.0
      %446 = vmatpush.msra.mxu0 %v397
      %447 = vmatpush.msra.mxu0 %v396
      %448 = vmatmul.f32.gmra.mxu0 %v400
      %v449 = vpop.f32.mrf.mxu0
      %v450 = vadd.f32 0.0, %v449
      %451 = vmatmul.f32.gmra.mxu0 %v403
      %v452 = vpop.f32.mrf.mxu0
      %v453 = vadd.f32 0.0, %v452
      %454 = vmatmul.f32.gmra.mxu0 %v406
      %v455 = vpop.f32.mrf.mxu0
      %v456 = vadd.f32 0.0, %v455
      %457 = vmatmul.f32.gmra.mxu0 %v409
      %v458 = vpop.f32.mrf.mxu0
      %v459 = vadd.f32 0.0, %v458
      %460 = vmatmul.f32.gmra.mxu0 %v412
      %v461 = vpop.f32.mrf.mxu0
      %v462 = vadd.f32 0.0, %v461
      %463 = vmatmul.f32.gmra.mxu0 %v415
      %v464 = vpop.f32.mrf.mxu0
      %v465 = vadd.f32 0.0, %v464
      %466 = vmatmul.f32.gmra.mxu0 %v418
      %v467 = vpop.f32.mrf.mxu0
      %v468 = vadd.f32 0.0, %v467
      %469 = vmatmul.f32.gmra.mxu0 %v421
      %v470 = vpop.f32.mrf.mxu0
      %v471 = vadd.f32 0.0, %v470
      %472 = vmatmul.f32.gmra.mxu0 %v424
      %v473 = vpop.f32.mrf.mxu0
      %v474 = vadd.f32 0.0, %v473
      %475 = vmatmul.f32.gmra.mxu0 %v427
      %v476 = vpop.f32.mrf.mxu0
      %v477 = vadd.f32 0.0, %v476
      %478 = vmatmul.f32.gmra.mxu0 %v430
      %v479 = vpop.f32.mrf.mxu0
      %v480 = vadd.f32 0.0, %v479
      %481 = vdwg.mxu0
      %v483 = vsel %vm398, %v371, 0
      %v486 = vsel %vm398, %v372, 0
      %v489 = vsel %vm398, %v373, 0
      %v492 = vsel %vm398, %v374, 0
      %v495 = vsel %vm398, %v375, 0
      %v498 = vsel %vm398, %v376, 0
      %v501 = vsel %vm398, %v377, 0
      %v504 = vsel %vm398, %v378, 0
      %v507 = vsel %vm398, %v379, 0
      %v510 = vsel %vm398, %v380, 0
      %v513 = vsel %vm398, %v381, 0
      %515 = vmatpush.msra.mxu0 0.0
      %516 = vmatpush.msra.mxu0 0.0
      %517 = vmatpush.msra.mxu0 0.0
      %518 = vmatpush.msra.mxu0 0.0
      %519 = vmatpush.msra.mxu0 0.0
      %520 = vmatpush.msra.mxu0 0.0
      %521 = vmatpush.msra.mxu0 0.0
      %522 = vmatpush.msra.mxu0 0.0
      %523 = vmatpush.msra.mxu0 0.0
      %524 = vmatpush.msra.mxu0 0.0
      %525 = vmatpush.msra.mxu0 0.0
      %526 = vmatpush.msra.mxu0 0.0
      %527 = vmatpush.msra.mxu0 0.0
      %528 = vmatpush.msra.mxu0 0.0
      %529 = vmatpush.msra.mxu0 %v383
      %530 = vmatpush.msra.mxu0 %v382
      %531 = vmatmul.f32.gmra.mxu0 %v483
      %v532 = vpop.f32.mrf.mxu0
      %v533 = vadd.f32 %v450, %v532
      %534 = vmatmul.f32.gmra.mxu0 %v486
      %v535 = vpop.f32.mrf.mxu0
      %v536 = vadd.f32 %v453, %v535
      %537 = vmatmul.f32.gmra.mxu0 %v489
      %v538 = vpop.f32.mrf.mxu0
      %v539 = vadd.f32 %v456, %v538
      %540 = vmatmul.f32.gmra.mxu0 %v492
      %v541 = vpop.f32.mrf.mxu0
      %v542 = vadd.f32 %v459, %v541
      %543 = vmatmul.f32.gmra.mxu0 %v495
      %v544 = vpop.f32.mrf.mxu0
      %v545 = vadd.f32 %v462, %v544
      %546 = vmatmul.f32.gmra.mxu0 %v498
      %v547 = vpop.f32.mrf.mxu0
      %v548 = vadd.f32 %v465, %v547
      %549 = vmatmul.f32.gmra.mxu0 %v501
      %v550 = vpop.f32.mrf.mxu0
      %v551 = vadd.f32 %v468, %v550
      %552 = vmatmul.f32.gmra.mxu0 %v504
      %v553 = vpop.f32.mrf.mxu0
      %v554 = vadd.f32 %v471, %v553
      %555 = vmatmul.f32.gmra.mxu0 %v507
      %v556 = vpop.f32.mrf.mxu0
      %v557 = vadd.f32 %v474, %v556
      %558 = vmatmul.f32.gmra.mxu0 %v510
      %v559 = vpop.f32.mrf.mxu0
      %v560 = vadd.f32 %v477, %v559
      %561 = vmatmul.f32.gmra.mxu0 %v513
      %v562 = vpop.f32.mrf.mxu0
      %v563 = vadd.f32 %v480, %v562
      %564 = vdwg.mxu0
      %v565 = vld [vmem:[%s354 + $0x2] sm:$0xff]
      %v566 = vld [vmem:[%s354 + $0xa] sm:$0xff]
      %v567 = vld [vmem:[%s354 + $0x12] sm:$0xff]
      %v568 = vld [vmem:[%s354 + $0x1a] sm:$0xff]
      %v569 = vld [vmem:[%s354 + $0x22] sm:$0xff]
      %v570 = vld [vmem:[%s354 + $0x2a] sm:$0xff]
      %v571 = vld [vmem:[%s354 + $0x32] sm:$0xff]
      %v572 = vld [vmem:[%s354 + $0x3a] sm:$0xff]
      %v573 = vld [vmem:[%s354 + $0x42] sm:$0xff]
      %v574 = vld [vmem:[%s354 + $0x4a] sm:$0xff]
      %v575 = vld [vmem:[%s354 + $0x52] sm:$0x1]
      %s576 = scalar_lea.vmem %s1, 32
      %v577 = vld [vmem:[%s576] sm:$0xff]
      %v578 = vld [vmem:[%s576 + $0x8] sm:$0xff]
      %v580 = vsel %vm398, %v565, 0
      %v583 = vsel %vm398, %v566, 0
      %v586 = vsel %vm398, %v567, 0
      %v589 = vsel %vm398, %v568, 0
      %v592 = vsel %vm398, %v569, 0
      %v595 = vsel %vm398, %v570, 0
      %v598 = vsel %vm398, %v571, 0
      %v601 = vsel %vm398, %v572, 0
      %v604 = vsel %vm398, %v573, 0
      %v607 = vsel %vm398, %v574, 0
      %v610 = vsel %vm398, %v575, 0
      %612 = vmatpush.msra.mxu0 0.0
      %613 = vmatpush.msra.mxu0 0.0
      %614 = vmatpush.msra.mxu0 0.0
      %615 = vmatpush.msra.mxu0 0.0
      %616 = vmatpush.msra.mxu0 0.0
      %617 = vmatpush.msra.mxu0 0.0
      %618 = vmatpush.msra.mxu0 0.0
      %619 = vmatpush.msra.mxu0 0.0
      %620 = vmatpush.msra.mxu0 0.0
      %621 = vmatpush.msra.mxu0 0.0
      %622 = vmatpush.msra.mxu0 0.0
      %623 = vmatpush.msra.mxu0 0.0
      %624 = vmatpush.msra.mxu0 0.0
      %625 = vmatpush.msra.mxu0 0.0
      %626 = vmatpush.msra.mxu0 %v578
      %627 = vmatpush.msra.mxu0 %v577
      %628 = vmatmul.f32.gmra.mxu0 %v580
      %v629 = vpop.f32.mrf.mxu0
      %v630 = vadd.f32 0.0, %v629
      %631 = vmatmul.f32.gmra.mxu0 %v583
      %v632 = vpop.f32.mrf.mxu0
      %v633 = vadd.f32 0.0, %v632
      %634 = vmatmul.f32.gmra.mxu0 %v586
      %v635 = vpop.f32.mrf.mxu0
      %v636 = vadd.f32 0.0, %v635
      %637 = vmatmul.f32.gmra.mxu0 %v589
      %v638 = vpop.f32.mrf.mxu0
      %v639 = vadd.f32 0.0, %v638
      %640 = vmatmul.f32.gmra.mxu0 %v592
      %v641 = vpop.f32.mrf.mxu0
      %v642 = vadd.f32 0.0, %v641
      %643 = vmatmul.f32.gmra.mxu0 %v595
      %v644 = vpop.f32.mrf.mxu0
      %v645 = vadd.f32 0.0, %v644
      %646 = vmatmul.f32.gmra.mxu0 %v598
      %v647 = vpop.f32.mrf.mxu0
      %v648 = vadd.f32 0.0, %v647
      %649 = vmatmul.f32.gmra.mxu0 %v601
      %v650 = vpop.f32.mrf.mxu0
      %v651 = vadd.f32 0.0, %v650
      %652 = vmatmul.f32.gmra.mxu0 %v604
      %v653 = vpop.f32.mrf.mxu0
      %v654 = vadd.f32 0.0, %v653
      %655 = vmatmul.f32.gmra.mxu0 %v607
      %v656 = vpop.f32.mrf.mxu0
      %v657 = vadd.f32 0.0, %v656
      %658 = vmatmul.f32.gmra.mxu0 %v610
      %v659 = vpop.f32.mrf.mxu0
      %v660 = vadd.f32 0.0, %v659
      %661 = vdwg.mxu0
      %v662 = vadd.f32 %v533, %v630
      %v663 = vadd.f32 %v536, %v633
      %v664 = vadd.f32 %v539, %v636
      %v665 = vadd.f32 %v542, %v639
      %v666 = vadd.f32 %v545, %v642
      %v667 = vadd.f32 %v548, %v645
      %v668 = vadd.f32 %v551, %v648
      %v669 = vadd.f32 %v554, %v651
      %v670 = vadd.f32 %v557, %v654
      %v671 = vadd.f32 %v560, %v657
      %v672 = vadd.f32 %v563, %v660
      %v673 = vld [vmem:[%s354 + $0x9] sm:$0xff]
      %v674 = vld [vmem:[%s354 + $0x11] sm:$0xff]
      %v675 = vld [vmem:[%s354 + $0x19] sm:$0xff]
      %v676 = vld [vmem:[%s354 + $0x21] sm:$0xff]
      %v677 = vld [vmem:[%s354 + $0x29] sm:$0xff]
      %v678 = vld [vmem:[%s354 + $0x31] sm:$0xff]
      %v679 = vld [vmem:[%s354 + $0x39] sm:$0xff]
      %v680 = vld [vmem:[%s354 + $0x41] sm:$0xff]
      %v681 = vld [vmem:[%s354 + $0x49] sm:$0xff]
      %v682 = vld [vmem:[%s354 + $0x51] sm:$0xff]
      %v683 = vld [vmem:[%s354 + $0x59] sm:$0x1]
      %s684 = scalar_lea.vmem %s1, 48
      %v685 = vld [vmem:[%s684] sm:$0xff]
      %v686 = vld [vmem:[%s684 + $0x8] sm:$0xff]
      %v688 = vsel %vm398, %v673, 0
      %v691 = vsel %vm398, %v674, 0
      %v694 = vsel %vm398, %v675, 0
      %v697 = vsel %vm398, %v676, 0
      %v700 = vsel %vm398, %v677, 0
      %v703 = vsel %vm398, %v678, 0
      %v706 = vsel %vm398, %v679, 0
      %v709 = vsel %vm398, %v680, 0
      %v712 = vsel %vm398, %v681, 0
      %v715 = vsel %vm398, %v682, 0
      %v718 = vsel %vm398, %v683, 0
      %720 = vmatpush.msra.mxu0 0.0
      %721 = vmatpush.msra.mxu0 0.0
      %722 = vmatpush.msra.mxu0 0.0
      %723 = vmatpush.msra.mxu0 0.0
      %724 = vmatpush.msra.mxu0 0.0
      %725 = vmatpush.msra.mxu0 0.0
      %726 = vmatpush.msra.mxu0 0.0
      %727 = vmatpush.msra.mxu0 0.0
      %728 = vmatpush.msra.mxu0 0.0
      %729 = vmatpush.msra.mxu0 0.0
      %730 = vmatpush.msra.mxu0 0.0
      %731 = vmatpush.msra.mxu0 0.0
      %732 = vmatpush.msra.mxu0 0.0
      %733 = vmatpush.msra.mxu0 0.0
      %734 = vmatpush.msra.mxu0 %v686
      %735 = vmatpush.msra.mxu0 %v685
      %736 = vmatmul.f32.gmra.mxu0 %v688
      %v737 = vpop.f32.mrf.mxu0
      %v738 = vadd.f32 0.0, %v737
      %739 = vmatmul.f32.gmra.mxu0 %v691
      %v740 = vpop.f32.mrf.mxu0
      %v741 = vadd.f32 0.0, %v740
      %742 = vmatmul.f32.gmra.mxu0 %v694
      %v743 = vpop.f32.mrf.mxu0
      %v744 = vadd.f32 0.0, %v743
      %745 = vmatmul.f32.gmra.mxu0 %v697
      %v746 = vpop.f32.mrf.mxu0
      %v747 = vadd.f32 0.0, %v746
      %748 = vmatmul.f32.gmra.mxu0 %v700
      %v749 = vpop.f32.mrf.mxu0
      %v750 = vadd.f32 0.0, %v749
      %751 = vmatmul.f32.gmra.mxu0 %v703
      %v752 = vpop.f32.mrf.mxu0
      %v753 = vadd.f32 0.0, %v752
      %754 = vmatmul.f32.gmra.mxu0 %v706
      %v755 = vpop.f32.mrf.mxu0
      %v756 = vadd.f32 0.0, %v755
      %757 = vmatmul.f32.gmra.mxu0 %v709
      %v758 = vpop.f32.mrf.mxu0
      %v759 = vadd.f32 0.0, %v758
      %760 = vmatmul.f32.gmra.mxu0 %v712
      %v761 = vpop.f32.mrf.mxu0
      %v762 = vadd.f32 0.0, %v761
      %763 = vmatmul.f32.gmra.mxu0 %v715
      %v764 = vpop.f32.mrf.mxu0
      %v765 = vadd.f32 0.0, %v764
      %766 = vmatmul.f32.gmra.mxu0 %v718
      %v767 = vpop.f32.mrf.mxu0
      %v768 = vadd.f32 0.0, %v767
      %769 = vdwg.mxu0
      %v770 = vadd.f32 %v662, %v738
      %v771 = vadd.f32 %v663, %v741
      %v772 = vadd.f32 %v664, %v744
      %v773 = vadd.f32 %v665, %v747
      %v774 = vadd.f32 %v666, %v750
      %v775 = vadd.f32 %v667, %v753
      %v776 = vadd.f32 %v668, %v756
      %v777 = vadd.f32 %v669, %v759
      %v778 = vadd.f32 %v670, %v762
      %v779 = vadd.f32 %v671, %v765
      %v780 = vadd.f32 %v672, %v768
      %v781 = vld [vmem:[%s354 + $0xa] sm:$0xff]
      %v782 = vld [vmem:[%s354 + $0x12] sm:$0xff]
      %v783 = vld [vmem:[%s354 + $0x1a] sm:$0xff]
      %v784 = vld [vmem:[%s354 + $0x22] sm:$0xff]
      %v785 = vld [vmem:[%s354 + $0x2a] sm:$0xff]
      %v786 = vld [vmem:[%s354 + $0x32] sm:$0xff]
      %v787 = vld [vmem:[%s354 + $0x3a] sm:$0xff]
      %v788 = vld [vmem:[%s354 + $0x42] sm:$0xff]
      %v789 = vld [vmem:[%s354 + $0x4a] sm:$0xff]
      %v790 = vld [vmem:[%s354 + $0x52] sm:$0xff]
      %v791 = vld [vmem:[%s354 + $0x5a] sm:$0x1]
      %s792 = scalar_lea.vmem %s1, 64
      %v793 = vld [vmem:[%s792] sm:$0xff]
      %v794 = vld [vmem:[%s792 + $0x8] sm:$0xff]
      %v796 = vsel %vm398, %v781, 0
      %v799 = vsel %vm398, %v782, 0
      %v802 = vsel %vm398, %v783, 0
      %v805 = vsel %vm398, %v784, 0
      %v808 = vsel %vm398, %v785, 0
      %v811 = vsel %vm398, %v786, 0
      %v814 = vsel %vm398, %v787, 0
      %v817 = vsel %vm398, %v788, 0
      %v820 = vsel %vm398, %v789, 0
      %v823 = vsel %vm398, %v790, 0
      %v826 = vsel %vm398, %v791, 0
      %828 = vmatpush.msra.mxu0 0.0
      %829 = vmatpush.msra.mxu0 0.0
      %830 = vmatpush.msra.mxu0 0.0
      %831 = vmatpush.msra.mxu0 0.0
      %832 = vmatpush.msra.mxu0 0.0
      %833 = vmatpush.msra.mxu0 0.0
      %834 = vmatpush.msra.mxu0 0.0
      %835 = vmatpush.msra.mxu0 0.0
      %836 = vmatpush.msra.mxu0 0.0
      %837 = vmatpush.msra.mxu0 0.0
      %838 = vmatpush.msra.mxu0 0.0
      %839 = vmatpush.msra.mxu0 0.0
      %840 = vmatpush.msra.mxu0 0.0
      %841 = vmatpush.msra.mxu0 0.0
      %842 = vmatpush.msra.mxu0 %v794
      %843 = vmatpush.msra.mxu0 %v793
      %844 = vmatmul.f32.gmra.mxu0 %v796
      %v845 = vpop.f32.mrf.mxu0
      %v846 = vadd.f32 0.0, %v845
      %847 = vmatmul.f32.gmra.mxu0 %v799
      %v848 = vpop.f32.mrf.mxu0
      %v849 = vadd.f32 0.0, %v848
      %850 = vmatmul.f32.gmra.mxu0 %v802
      %v851 = vpop.f32.mrf.mxu0
      %v852 = vadd.f32 0.0, %v851
      %853 = vmatmul.f32.gmra.mxu0 %v805
      %v854 = vpop.f32.mrf.mxu0
      %v855 = vadd.f32 0.0, %v854
      %856 = vmatmul.f32.gmra.mxu0 %v808
      %v857 = vpop.f32.mrf.mxu0
      %v858 = vadd.f32 0.0, %v857
      %859 = vmatmul.f32.gmra.mxu0 %v811
      %v860 = vpop.f32.mrf.mxu0
      %v861 = vadd.f32 0.0, %v860
      %862 = vmatmul.f32.gmra.mxu0 %v814
      %v863 = vpop.f32.mrf.mxu0
      %v864 = vadd.f32 0.0, %v863
      %865 = vmatmul.f32.gmra.mxu0 %v817
      %v866 = vpop.f32.mrf.mxu0
      %v867 = vadd.f32 0.0, %v866
      %868 = vmatmul.f32.gmra.mxu0 %v820
      %v869 = vpop.f32.mrf.mxu0
      %v870 = vadd.f32 0.0, %v869
      %871 = vmatmul.f32.gmra.mxu0 %v823
      %v872 = vpop.f32.mrf.mxu0
      %v873 = vadd.f32 0.0, %v872
      %874 = vmatmul.f32.gmra.mxu0 %v826
      %v875 = vpop.f32.mrf.mxu0
      %v876 = vadd.f32 0.0, %v875
      %877 = vdwg.mxu0
      %v878 = vadd.f32 %v770, %v846
      %v879 = vadd.f32 %v771, %v849
      %v880 = vadd.f32 %v772, %v852
      %v881 = vadd.f32 %v773, %v855
      %v882 = vadd.f32 %v774, %v858
      %v883 = vadd.f32 %v775, %v861
      %v884 = vadd.f32 %v776, %v864
      %v885 = vadd.f32 %v777, %v867
      %v886 = vadd.f32 %v778, %v870
      %v887 = vadd.f32 %v779, %v873
      %v888 = vadd.f32 %v780, %v876
      %v889 = vld [vmem:[%s354 + $0xb] sm:$0xff]
      %v890 = vld [vmem:[%s354 + $0x13] sm:$0xff]
      %v891 = vld [vmem:[%s354 + $0x1b] sm:$0xff]
      %v892 = vld [vmem:[%s354 + $0x23] sm:$0xff]
      %v893 = vld [vmem:[%s354 + $0x2b] sm:$0xff]
      %v894 = vld [vmem:[%s354 + $0x33] sm:$0xff]
      %v895 = vld [vmem:[%s354 + $0x3b] sm:$0xff]
      %v896 = vld [vmem:[%s354 + $0x43] sm:$0xff]
      %v897 = vld [vmem:[%s354 + $0x4b] sm:$0xff]
      %v898 = vld [vmem:[%s354 + $0x53] sm:$0xff]
      %v899 = vld [vmem:[%s354 + $0x5b] sm:$0x1]
      %s900 = scalar_lea.vmem %s1, 80
      %v901 = vld [vmem:[%s900] sm:$0xff]
      %v902 = vld [vmem:[%s900 + $0x8] sm:$0xff]
      %v904 = vsel %vm398, %v889, 0
      %v907 = vsel %vm398, %v890, 0
      %v910 = vsel %vm398, %v891, 0
      %v913 = vsel %vm398, %v892, 0
      %v916 = vsel %vm398, %v893, 0
      %v919 = vsel %vm398, %v894, 0
      %v922 = vsel %vm398, %v895, 0
      %v925 = vsel %vm398, %v896, 0
      %v928 = vsel %vm398, %v897, 0
      %v931 = vsel %vm398, %v898, 0
      %v934 = vsel %vm398, %v899, 0
      %936 = vmatpush.msra.mxu0 0.0
      %937 = vmatpush.msra.mxu0 0.0
      %938 = vmatpush.msra.mxu0 0.0
      %939 = vmatpush.msra.mxu0 0.0
      %940 = vmatpush.msra.mxu0 0.0
      %941 = vmatpush.msra.mxu0 0.0
      %942 = vmatpush.msra.mxu0 0.0
      %943 = vmatpush.msra.mxu0 0.0
      %944 = vmatpush.msra.mxu0 0.0
      %945 = vmatpush.msra.mxu0 0.0
      %946 = vmatpush.msra.mxu0 0.0
      %947 = vmatpush.msra.mxu0 0.0
      %948 = vmatpush.msra.mxu0 0.0
      %949 = vmatpush.msra.mxu0 0.0
      %950 = vmatpush.msra.mxu0 %v902
      %951 = vmatpush.msra.mxu0 %v901
      %952 = vmatmul.f32.gmra.mxu0 %v904
      %v953 = vpop.f32.mrf.mxu0
      %v954 = vadd.f32 0.0, %v953
      %955 = vmatmul.f32.gmra.mxu0 %v907
      %v956 = vpop.f32.mrf.mxu0
      %v957 = vadd.f32 0.0, %v956
      %958 = vmatmul.f32.gmra.mxu0 %v910
      %v959 = vpop.f32.mrf.mxu0
      %v960 = vadd.f32 0.0, %v959
      %961 = vmatmul.f32.gmra.mxu0 %v913
      %v962 = vpop.f32.mrf.mxu0
      %v963 = vadd.f32 0.0, %v962
      %964 = vmatmul.f32.gmra.mxu0 %v916
      %v965 = vpop.f32.mrf.mxu0
      %v966 = vadd.f32 0.0, %v965
      %967 = vmatmul.f32.gmra.mxu0 %v919
      %v968 = vpop.f32.mrf.mxu0
      %v969 = vadd.f32 0.0, %v968
      %970 = vmatmul.f32.gmra.mxu0 %v922
      %v971 = vpop.f32.mrf.mxu0
      %v972 = vadd.f32 0.0, %v971
      %973 = vmatmul.f32.gmra.mxu0 %v925
      %v974 = vpop.f32.mrf.mxu0
      %v975 = vadd.f32 0.0, %v974
      %976 = vmatmul.f32.gmra.mxu0 %v928
      %v977 = vpop.f32.mrf.mxu0
      %v978 = vadd.f32 0.0, %v977
      %979 = vmatmul.f32.gmra.mxu0 %v931
      %v980 = vpop.f32.mrf.mxu0
      %v981 = vadd.f32 0.0, %v980
      %982 = vmatmul.f32.gmra.mxu0 %v934
      %v983 = vpop.f32.mrf.mxu0
      %v984 = vadd.f32 0.0, %v983
      %985 = vdwg.mxu0
      %v986 = vadd.f32 %v878, %v954
      %v987 = vadd.f32 %v879, %v957
      %v988 = vadd.f32 %v880, %v960
      %v989 = vadd.f32 %v881, %v963
      %v990 = vadd.f32 %v882, %v966
      %v991 = vadd.f32 %v883, %v969
      %v992 = vadd.f32 %v884, %v972
      %v993 = vadd.f32 %v885, %v975
      %v994 = vadd.f32 %v886, %v978
      %v995 = vadd.f32 %v887, %v981
      %v996 = vadd.f32 %v888, %v984
      %v997 = vld [vmem:[%s354 + $0x12] sm:$0xff]
      %v998 = vld [vmem:[%s354 + $0x1a] sm:$0xff]
      %v999 = vld [vmem:[%s354 + $0x22] sm:$0xff]
      %v1000 = vld [vmem:[%s354 + $0x2a] sm:$0xff]
      %v1001 = vld [vmem:[%s354 + $0x32] sm:$0xff]
      %v1002 = vld [vmem:[%s354 + $0x3a] sm:$0xff]
      %v1003 = vld [vmem:[%s354 + $0x42] sm:$0xff]
      %v1004 = vld [vmem:[%s354 + $0x4a] sm:$0xff]
      %v1005 = vld [vmem:[%s354 + $0x52] sm:$0xff]
      %v1006 = vld [vmem:[%s354 + $0x5a] sm:$0xff]
      %v1007 = vld [vmem:[%s354 + $0x62] sm:$0x1]
      %s1008 = scalar_lea.vmem %s1, 96
      %v1009 = vld [vmem:[%s1008] sm:$0xff]
      %v1010 = vld [vmem:[%s1008 + $0x8] sm:$0xff]
      %v1012 = vsel %vm398, %v997, 0
      %v1015 = vsel %vm398, %v998, 0
      %v1018 = vsel %vm398, %v999, 0
      %v1021 = vsel %vm398, %v1000, 0
      %v1024 = vsel %vm398, %v1001, 0
      %v1027 = vsel %vm398, %v1002, 0
      %v1030 = vsel %vm398, %v1003, 0
      %v1033 = vsel %vm398, %v1004, 0
      %v1036 = vsel %vm398, %v1005, 0
      %v1039 = vsel %vm398, %v1006, 0
      %v1042 = vsel %vm398, %v1007, 0
      %1044 = vmatpush.msra.mxu0 0.0
      %1045 = vmatpush.msra.mxu0 0.0
      %1046 = vmatpush.msra.mxu0 0.0
      %1047 = vmatpush.msra.mxu0 0.0
      %1048 = vmatpush.msra.mxu0 0.0
      %1049 = vmatpush.msra.mxu0 0.0
      %1050 = vmatpush.msra.mxu0 0.0
      %1051 = vmatpush.msra.mxu0 0.0
      %1052 = vmatpush.msra.mxu0 0.0
      %1053 = vmatpush.msra.mxu0 0.0
      %1054 = vmatpush.msra.mxu0 0.0
      %1055 = vmatpush.msra.mxu0 0.0
      %1056 = vmatpush.msra.mxu0 0.0
      %1057 = vmatpush.msra.mxu0 0.0
      %1058 = vmatpush.msra.mxu0 %v1010
      %1059 = vmatpush.msra.mxu0 %v1009
      %1060 = vmatmul.f32.gmra.mxu0 %v1012
      %v1061 = vpop.f32.mrf.mxu0
      %v1062 = vadd.f32 0.0, %v1061
      %1063 = vmatmul.f32.gmra.mxu0 %v1015
      %v1064 = vpop.f32.mrf.mxu0
      %v1065 = vadd.f32 0.0, %v1064
      %1066 = vmatmul.f32.gmra.mxu0 %v1018
      %v1067 = vpop.f32.mrf.mxu0
      %v1068 = vadd.f32 0.0, %v1067
      %1069 = vmatmul.f32.gmra.mxu0 %v1021
      %v1070 = vpop.f32.mrf.mxu0
      %v1071 = vadd.f32 0.0, %v1070
      %1072 = vmatmul.f32.gmra.mxu0 %v1024
      %v1073 = vpop.f32.mrf.mxu0
      %v1074 = vadd.f32 0.0, %v1073
      %1075 = vmatmul.f32.gmra.mxu0 %v1027
      %v1076 = vpop.f32.mrf.mxu0
      %v1077 = vadd.f32 0.0, %v1076
      %1078 = vmatmul.f32.gmra.mxu0 %v1030
      %v1079 = vpop.f32.mrf.mxu0
      %v1080 = vadd.f32 0.0, %v1079
      %1081 = vmatmul.f32.gmra.mxu0 %v1033
      %v1082 = vpop.f32.mrf.mxu0
      %v1083 = vadd.f32 0.0, %v1082
      %1084 = vmatmul.f32.gmra.mxu0 %v1036
      %v1085 = vpop.f32.mrf.mxu0
      %v1086 = vadd.f32 0.0, %v1085
      %1087 = vmatmul.f32.gmra.mxu0 %v1039
      %v1088 = vpop.f32.mrf.mxu0
      %v1089 = vadd.f32 0.0, %v1088
      %1090 = vmatmul.f32.gmra.mxu0 %v1042
      %v1091 = vpop.f32.mrf.mxu0
      %v1092 = vadd.f32 0.0, %v1091
      %1093 = vdwg.mxu0
      %v1094 = vadd.f32 %v986, %v1062
      %v1095 = vadd.f32 %v987, %v1065
      %v1096 = vadd.f32 %v988, %v1068
      %v1097 = vadd.f32 %v989, %v1071
      %v1098 = vadd.f32 %v990, %v1074
      %v1099 = vadd.f32 %v991, %v1077
      %v1100 = vadd.f32 %v992, %v1080
      %v1101 = vadd.f32 %v993, %v1083
      %v1102 = vadd.f32 %v994, %v1086
      %v1103 = vadd.f32 %v995, %v1089
      %v1104 = vadd.f32 %v996, %v1092
      %v1105 = vld [vmem:[%s354 + $0x13] sm:$0xff]
      %v1106 = vld [vmem:[%s354 + $0x1b] sm:$0xff]
      %v1107 = vld [vmem:[%s354 + $0x23] sm:$0xff]
      %v1108 = vld [vmem:[%s354 + $0x2b] sm:$0xff]
      %v1109 = vld [vmem:[%s354 + $0x33] sm:$0xff]
      %v1110 = vld [vmem:[%s354 + $0x3b] sm:$0xff]
      %v1111 = vld [vmem:[%s354 + $0x43] sm:$0xff]
      %v1112 = vld [vmem:[%s354 + $0x4b] sm:$0xff]
      %v1113 = vld [vmem:[%s354 + $0x53] sm:$0xff]
      %v1114 = vld [vmem:[%s354 + $0x5b] sm:$0xff]
      %v1115 = vld [vmem:[%s354 + $0x63] sm:$0x1]
      %s1116 = scalar_lea.vmem %s1, 112
      %v1117 = vld [vmem:[%s1116] sm:$0xff]
      %v1118 = vld [vmem:[%s1116 + $0x8] sm:$0xff]
      %v1120 = vsel %vm398, %v1105, 0
      %v1123 = vsel %vm398, %v1106, 0
      %v1126 = vsel %vm398, %v1107, 0
      %v1129 = vsel %vm398, %v1108, 0
      %v1132 = vsel %vm398, %v1109, 0
      %v1135 = vsel %vm398, %v1110, 0
      %v1138 = vsel %vm398, %v1111, 0
      %v1141 = vsel %vm398, %v1112, 0
      %v1144 = vsel %vm398, %v1113, 0
      %v1147 = vsel %vm398, %v1114, 0
      %v1150 = vsel %vm398, %v1115, 0
      %1152 = vmatpush.msra.mxu0 0.0
      %1153 = vmatpush.msra.mxu0 0.0
      %1154 = vmatpush.msra.mxu0 0.0
      %1155 = vmatpush.msra.mxu0 0.0
      %1156 = vmatpush.msra.mxu0 0.0
      %1157 = vmatpush.msra.mxu0 0.0
      %1158 = vmatpush.msra.mxu0 0.0
      %1159 = vmatpush.msra.mxu0 0.0
      %1160 = vmatpush.msra.mxu0 0.0
      %1161 = vmatpush.msra.mxu0 0.0
      %1162 = vmatpush.msra.mxu0 0.0
      %1163 = vmatpush.msra.mxu0 0.0
      %1164 = vmatpush.msra.mxu0 0.0
      %1165 = vmatpush.msra.mxu0 0.0
      %1166 = vmatpush.msra.mxu0 %v1118
      %1167 = vmatpush.msra.mxu0 %v1117
      %1168 = vmatmul.f32.gmra.mxu0 %v1120
      %v1169 = vpop.f32.mrf.mxu0
      %v1170 = vadd.f32 0.0, %v1169
      %1171 = vmatmul.f32.gmra.mxu0 %v1123
      %v1172 = vpop.f32.mrf.mxu0
      %v1173 = vadd.f32 0.0, %v1172
      %1174 = vmatmul.f32.gmra.mxu0 %v1126
      %v1175 = vpop.f32.mrf.mxu0
      %v1176 = vadd.f32 0.0, %v1175
      %1177 = vmatmul.f32.gmra.mxu0 %v1129
      %v1178 = vpop.f32.mrf.mxu0
      %v1179 = vadd.f32 0.0, %v1178
      %1180 = vmatmul.f32.gmra.mxu0 %v1132
      %v1181 = vpop.f32.mrf.mxu0
      %v1182 = vadd.f32 0.0, %v1181
      %1183 = vmatmul.f32.gmra.mxu0 %v1135
      %v1184 = vpop.f32.mrf.mxu0
      %v1185 = vadd.f32 0.0, %v1184
      %1186 = vmatmul.f32.gmra.mxu0 %v1138
      %v1187 = vpop.f32.mrf.mxu0
      %v1188 = vadd.f32 0.0, %v1187
      %1189 = vmatmul.f32.gmra.mxu0 %v1141
      %v1190 = vpop.f32.mrf.mxu0
      %v1191 = vadd.f32 0.0, %v1190
      %1192 = vmatmul.f32.gmra.mxu0 %v1144
      %v1193 = vpop.f32.mrf.mxu0
      %v1194 = vadd.f32 0.0, %v1193
      %1195 = vmatmul.f32.gmra.mxu0 %v1147
      %v1196 = vpop.f32.mrf.mxu0
      %v1197 = vadd.f32 0.0, %v1196
      %1198 = vmatmul.f32.gmra.mxu0 %v1150
      %v1199 = vpop.f32.mrf.mxu0
      %v1200 = vadd.f32 0.0, %v1199
      %1201 = vdwg.mxu0
      %v1202 = vadd.f32 %v1094, %v1170
      %v1203 = vadd.f32 %v1095, %v1173
      %v1204 = vadd.f32 %v1096, %v1176
      %v1205 = vadd.f32 %v1097, %v1179
      %v1206 = vadd.f32 %v1098, %v1182
      %v1207 = vadd.f32 %v1099, %v1185
      %v1208 = vadd.f32 %v1100, %v1188
      %v1209 = vadd.f32 %v1101, %v1191
      %v1210 = vadd.f32 %v1102, %v1194
      %v1211 = vadd.f32 %v1103, %v1197
      %v1212 = vadd.f32 %v1104, %v1200
      %v1213 = vld [vmem:[%s354 + $0x14] sm:$0xff]
      %v1214 = vld [vmem:[%s354 + $0x1c] sm:$0xff]
      %v1215 = vld [vmem:[%s354 + $0x24] sm:$0xff]
      %v1216 = vld [vmem:[%s354 + $0x2c] sm:$0xff]
      %v1217 = vld [vmem:[%s354 + $0x34] sm:$0xff]
      %v1218 = vld [vmem:[%s354 + $0x3c] sm:$0xff]
      %v1219 = vld [vmem:[%s354 + $0x44] sm:$0xff]
      %v1220 = vld [vmem:[%s354 + $0x4c] sm:$0xff]
      %v1221 = vld [vmem:[%s354 + $0x54] sm:$0xff]
      %v1222 = vld [vmem:[%s354 + $0x5c] sm:$0xff]
      %v1223 = vld [vmem:[%s354 + $0x64] sm:$0x1]
      %s1224 = scalar_lea.vmem %s1, 128
      %v1225 = vld [vmem:[%s1224] sm:$0xff]
      %v1226 = vld [vmem:[%s1224 + $0x8] sm:$0xff]
      %v1228 = vsel %vm398, %v1213, 0
      %v1231 = vsel %vm398, %v1214, 0
      %v1234 = vsel %vm398, %v1215, 0
      %v1237 = vsel %vm398, %v1216, 0
      %v1240 = vsel %vm398, %v1217, 0
      %v1243 = vsel %vm398, %v1218, 0
      %v1246 = vsel %vm398, %v1219, 0
      %v1249 = vsel %vm398, %v1220, 0
      %v1252 = vsel %vm398, %v1221, 0
      %v1255 = vsel %vm398, %v1222, 0
      %v1258 = vsel %vm398, %v1223, 0
      %1260 = vmatpush.msra.mxu0 0.0
      %1261 = vmatpush.msra.mxu0 0.0
      %1262 = vmatpush.msra.mxu0 0.0
      %1263 = vmatpush.msra.mxu0 0.0
      %1264 = vmatpush.msra.mxu0 0.0
      %1265 = vmatpush.msra.mxu0 0.0
      %1266 = vmatpush.msra.mxu0 0.0
      %1267 = vmatpush.msra.mxu0 0.0
      %1268 = vmatpush.msra.mxu0 0.0
      %1269 = vmatpush.msra.mxu0 0.0
      %1270 = vmatpush.msra.mxu0 0.0
      %1271 = vmatpush.msra.mxu0 0.0
      %1272 = vmatpush.msra.mxu0 0.0
      %1273 = vmatpush.msra.mxu0 0.0
      %1274 = vmatpush.msra.mxu0 %v1226
      %1275 = vmatpush.msra.mxu0 %v1225
      %1276 = vmatmul.f32.gmra.mxu0 %v1228
      %v1277 = vpop.f32.mrf.mxu0
      %v1278 = vadd.f32 0.0, %v1277
      %1279 = vmatmul.f32.gmra.mxu0 %v1231
      %v1280 = vpop.f32.mrf.mxu0
      %v1281 = vadd.f32 0.0, %v1280
      %1282 = vmatmul.f32.gmra.mxu0 %v1234
      %v1283 = vpop.f32.mrf.mxu0
      %v1284 = vadd.f32 0.0, %v1283
      %1285 = vmatmul.f32.gmra.mxu0 %v1237
      %v1286 = vpop.f32.mrf.mxu0
      %v1287 = vadd.f32 0.0, %v1286
      %1288 = vmatmul.f32.gmra.mxu0 %v1240
      %v1289 = vpop.f32.mrf.mxu0
      %v1290 = vadd.f32 0.0, %v1289
      %1291 = vmatmul.f32.gmra.mxu0 %v1243
      %v1292 = vpop.f32.mrf.mxu0
      %v1293 = vadd.f32 0.0, %v1292
      %1294 = vmatmul.f32.gmra.mxu0 %v1246
      %v1295 = vpop.f32.mrf.mxu0
      %v1296 = vadd.f32 0.0, %v1295
      %1297 = vmatmul.f32.gmra.mxu0 %v1249
      %v1298 = vpop.f32.mrf.mxu0
      %v1299 = vadd.f32 0.0, %v1298
      %1300 = vmatmul.f32.gmra.mxu0 %v1252
      %v1301 = vpop.f32.mrf.mxu0
      %v1302 = vadd.f32 0.0, %v1301
      %1303 = vmatmul.f32.gmra.mxu0 %v1255
      %v1304 = vpop.f32.mrf.mxu0
      %v1305 = vadd.f32 0.0, %v1304
      %1306 = vmatmul.f32.gmra.mxu0 %v1258
      %v1307 = vpop.f32.mrf.mxu0
      %v1308 = vadd.f32 0.0, %v1307
      %1309 = vdwg.mxu0
      %v1310 = vadd.f32 %v1202, %v1278
      %v1311 = vadd.f32 %v1203, %v1281
      %v1312 = vadd.f32 %v1204, %v1284
      %v1313 = vadd.f32 %v1205, %v1287
      %v1314 = vadd.f32 %v1206, %v1290
      %v1315 = vadd.f32 %v1207, %v1293
      %v1316 = vadd.f32 %v1208, %v1296
      %v1317 = vadd.f32 %v1209, %v1299
      %v1318 = vadd.f32 %v1210, %v1302
      %v1319 = vadd.f32 %v1211, %v1305
      %v1320 = vadd.f32 %v1212, %v1308
      %1322 = vset.pattern.permute.xlu0 0
      %1323 = vperm.xlu0 %1322, %v360
      %v1324 = vpop.permute.xlu0 %1323
      %1327 = vset.pattern.permute.xlu0 0
      %1328 = vperm.xlu0 %1327, %v361
      %v1329 = vpop.permute.xlu0 %1328
      %1332 = vset.pattern.permute.xlu0 0
      %1333 = vperm.xlu0 %1332, %v362
      %v1334 = vpop.permute.xlu0 %1333
      %1337 = vset.pattern.permute.xlu0 0
      %1338 = vperm.xlu0 %1337, %v363
      %v1339 = vpop.permute.xlu0 %1338
      %1342 = vset.pattern.permute.xlu0 0
      %1343 = vperm.xlu0 %1342, %v364
      %v1344 = vpop.permute.xlu0 %1343
      %1347 = vset.pattern.permute.xlu0 0
      %1348 = vperm.xlu0 %1347, %v365
      %v1349 = vpop.permute.xlu0 %1348
      %1352 = vset.pattern.permute.xlu0 0
      %1353 = vperm.xlu0 %1352, %v366
      %v1354 = vpop.permute.xlu0 %1353
      %1357 = vset.pattern.permute.xlu0 0
      %1358 = vperm.xlu0 %1357, %v367
      %v1359 = vpop.permute.xlu0 %1358
      %1362 = vset.pattern.permute.xlu0 0
      %1363 = vperm.xlu0 %1362, %v368
      %v1364 = vpop.permute.xlu0 %1363
      %1367 = vset.pattern.permute.xlu0 0
      %1368 = vperm.xlu0 %1367, %v369
      %v1369 = vpop.permute.xlu0 %1368
      %1372 = vset.pattern.permute.xlu0 0
      %1373 = vperm.xlu0 %1372, %v370
      %v1374 = vpop.permute.xlu0 %1373
      %v1376 = vmul.f32 %v1310, %v1324
      %v1377 = vmul.f32 %v1311, %v1329
      %v1378 = vmul.f32 %v1312, %v1334
      %v1379 = vmul.f32 %v1313, %v1339
      %v1380 = vmul.f32 %v1314, %v1344
      %v1381 = vmul.f32 %v1315, %v1349
      %v1382 = vmul.f32 %v1316, %v1354
      %v1383 = vmul.f32 %v1317, %v1359
      %v1384 = vmul.f32 %v1318, %v1364
      %v1385 = vmul.f32 %v1319, %v1369
      %v1386 = vmul.f32 %v1320, %v1374
      %vm1387 = vcmask 523264
      %v1388 = vsel %vm1387, %v1376, 0.0
      %v1389 = vsel %vm1387, %v1377, 0.0
      %v1390 = vadd.f32 %v1388, %v1389
      %v1391 = vsel %vm1387, %v1378, 0.0
      %v1392 = vadd.f32 %v1390, %v1391
      %v1393 = vsel %vm1387, %v1379, 0.0
      %v1394 = vadd.f32 %v1392, %v1393
      %v1395 = vsel %vm1387, %v1380, 0.0
      %v1396 = vadd.f32 %v1394, %v1395
      %v1397 = vsel %vm1387, %v1381, 0.0
      %v1398 = vadd.f32 %v1396, %v1397
      %v1399 = vsel %vm1387, %v1382, 0.0
      %v1400 = vadd.f32 %v1398, %v1399
      %v1401 = vsel %vm1387, %v1383, 0.0
      %v1402 = vadd.f32 %v1400, %v1401
      %v1403 = vsel %vm1387, %v1384, 0.0
      %v1404 = vadd.f32 %v1402, %v1403
      %v1405 = vsel %vm1387, %v1385, 0.0
      %v1406 = vadd.f32 %v1404, %v1405
      %vm1407 = vcmask 516096
      %v1408 = vsel %vm1407, %v1386, 0.0
      %v1409 = vadd.f32 %v1406, %v1408
      %1410 = vadd.xlane.f32.xlu0 %v1409
      %v1411 = vpop.xlane.xlu0 %1410
      %v1412 = vrot.slane %v1411, 4
      %v1413 = vadd.f32 %v1411, %v1412
      %v1414 = vrot.slane %v1413, 2
      %v1415 = vadd.f32 %v1413, %v1414
      %v1416 = vrot.slane %v1415, 1
      %v1417 = vadd.f32 %v1415, %v1416
      %s1418 = vtos %v1417
      %v1419 = vstv %s1418
      %v1420 = vrcp.pop 3136.0
      %v1421 = vmul.f32 3136.0, %v1420
      %v1422 = vsub.f32 1.0, %v1421
      %v1423 = vmul.f32 %v1420, %v1422
      %v1424 = vadd.f32 %v1420, %v1423
      %vm1425 = vweird.f32 %v1420
      %v1426 = vsel %vm1425, %v1420, %v1424
      %v1427 = vmul.f32 %v1419, %v1426
      %v1428 = vmul.f32 %v1310, %v1310
      %v1429 = vmul.f32 %v1311, %v1311
      %v1430 = vmul.f32 %v1312, %v1312
      %v1431 = vmul.f32 %v1313, %v1313
      %v1432 = vmul.f32 %v1314, %v1314
      %v1433 = vmul.f32 %v1315, %v1315
      %v1434 = vmul.f32 %v1316, %v1316
      %v1435 = vmul.f32 %v1317, %v1317
      %v1436 = vmul.f32 %v1318, %v1318
      %v1437 = vmul.f32 %v1319, %v1319
      %v1438 = vmul.f32 %v1320, %v1320
      %v1439 = vmul.f32 %v1428, %v1324
      %v1440 = vmul.f32 %v1429, %v1329
      %v1441 = vmul.f32 %v1430, %v1334
      %v1442 = vmul.f32 %v1431, %v1339
      %v1443 = vmul.f32 %v1432, %v1344
      %v1444 = vmul.f32 %v1433, %v1349
      %v1445 = vmul.f32 %v1434, %v1354
      %v1446 = vmul.f32 %v1435, %v1359
      %v1447 = vmul.f32 %v1436, %v1364
      %v1448 = vmul.f32 %v1437, %v1369
      %v1449 = vmul.f32 %v1438, %v1374
      %v1450 = vsel %vm1387, %v1439, 0.0
      %v1451 = vsel %vm1387, %v1440, 0.0
      %v1452 = vadd.f32 %v1450, %v1451
      %v1453 = vsel %vm1387, %v1441, 0.0
      %v1454 = vadd.f32 %v1452, %v1453
      %v1455 = vsel %vm1387, %v1442, 0.0
      %v1456 = vadd.f32 %v1454, %v1455
      %v1457 = vsel %vm1387, %v1443, 0.0
      %v1458 = vadd.f32 %v1456, %v1457
      %v1459 = vsel %vm1387, %v1444, 0.0
      %v1460 = vadd.f32 %v1458, %v1459
      %v1461 = vsel %vm1387, %v1445, 0.0
      %v1462 = vadd.f32 %v1460, %v1461
      %v1463 = vsel %vm1387, %v1446, 0.0
      %v1464 = vadd.f32 %v1462, %v1463
      %v1465 = vsel %vm1387, %v1447, 0.0
      %v1466 = vadd.f32 %v1464, %v1465
      %v1467 = vsel %vm1387, %v1448, 0.0
      %v1468 = vadd.f32 %v1466, %v1467
      %v1469 = vsel %vm1407, %v1449, 0.0
      %v1470 = vadd.f32 %v1468, %v1469
      %1471 = vadd.xlane.f32.xlu0 %v1470
      %v1472 = vpop.xlane.xlu0 %1471
      %v1473 = vrot.slane %v1472, 4
      %v1474 = vadd.f32 %v1472, %v1473
      %v1475 = vrot.slane %v1474, 2
      %v1476 = vadd.f32 %v1474, %v1475
      %v1477 = vrot.slane %v1476, 1
      %v1478 = vadd.f32 %v1476, %v1477
      %s1479 = vtos %v1478
      %v1480 = vstv %s1479
      %v1481 = vmul.f32 %v1480, %v1426
      %v1482 = vmul.f32 %v1427, %v1427
      %v1483 = vsub.f32 %v1481, %v1482
      %v1484 = vadd.f32 %v1483, 1e-05
      %v1485 = vrsqrt.pop %v1484
      %v1486 = vmul.f32 %v1485, %v1484
      %v1487 = vmul.f32 %v1486, %v1485
      %v1488 = vmul.f32 0.5, %v1487
      %v1489 = vsub.f32 1.5, %v1488
      %v1490 = vmul.f32 %v1485, %v1489
      %vm1491 = vweird.f32 %v1484
      %vm1492 = vweird.f32 %v1485
      %vm1493 = vmor %vm1491, %vm1492
      %v1494 = vsel %vm1493, %v1485, %v1490
      %v1495 = vsub.f32 %v1310, %v1427
      %v1496 = vsub.f32 %v1311, %v1427
      %v1497 = vsub.f32 %v1312, %v1427
      %v1498 = vsub.f32 %v1313, %v1427
      %v1499 = vsub.f32 %v1314, %v1427
      %v1500 = vsub.f32 %v1315, %v1427
      %v1501 = vsub.f32 %v1316, %v1427
      %v1502 = vsub.f32 %v1317, %v1427
      %v1503 = vsub.f32 %v1318, %v1427
      %v1504 = vsub.f32 %v1319, %v1427
      %v1505 = vsub.f32 %v1320, %v1427
      %v1506 = vmul.f32 %v1495, %v1494
      %v1507 = vmul.f32 %v1496, %v1494
      %v1508 = vmul.f32 %v1497, %v1494
      %v1509 = vmul.f32 %v1498, %v1494
      %v1510 = vmul.f32 %v1499, %v1494
      %v1511 = vmul.f32 %v1500, %v1494
      %v1512 = vmul.f32 %v1501, %v1494
      %v1513 = vmul.f32 %v1502, %v1494
      %v1514 = vmul.f32 %v1503, %v1494
      %v1515 = vmul.f32 %v1504, %v1494
      %v1516 = vmul.f32 %v1505, %v1494
      %v1517 = vld [vmem:[%s2] sm:$0x1]
      %v1519 = vperm.slane %v1517, 0
      %v1521 = vmul.f32 %v1506, %v1519
      %v1522 = vmul.f32 %v1507, %v1519
      %v1523 = vmul.f32 %v1508, %v1519
      %v1524 = vmul.f32 %v1509, %v1519
      %v1525 = vmul.f32 %v1510, %v1519
      %v1526 = vmul.f32 %v1511, %v1519
      %v1527 = vmul.f32 %v1512, %v1519
      %v1528 = vmul.f32 %v1513, %v1519
      %v1529 = vmul.f32 %v1514, %v1519
      %v1530 = vmul.f32 %v1515, %v1519
      %v1531 = vmul.f32 %v1516, %v1519
      %v1532 = vld [vmem:[%s3] sm:$0x1]
      %v1534 = vperm.slane %v1532, 0
      %v1536 = vadd.f32 %v1521, %v1534
      %v1537 = vadd.f32 %v1522, %v1534
      %v1538 = vadd.f32 %v1523, %v1534
      %v1539 = vadd.f32 %v1524, %v1534
      %v1540 = vadd.f32 %v1525, %v1534
      %v1541 = vadd.f32 %v1526, %v1534
      %v1542 = vadd.f32 %v1527, %v1534
      %v1543 = vadd.f32 %v1528, %v1534
      %v1544 = vadd.f32 %v1529, %v1534
      %v1545 = vadd.f32 %v1530, %v1534
      %v1546 = vadd.f32 %v1531, %v1534
      %v1547 = vmul.f32 %v1536, 0.5
      %v1548 = vmul.f32 %v1537, 0.5
      %v1549 = vmul.f32 %v1538, 0.5
      %v1550 = vmul.f32 %v1539, 0.5
      %v1551 = vmul.f32 %v1540, 0.5
      %v1552 = vmul.f32 %v1541, 0.5
      %v1553 = vmul.f32 %v1542, 0.5
      %v1554 = vmul.f32 %v1543, 0.5
      %v1555 = vmul.f32 %v1544, 0.5
      %v1556 = vmul.f32 %v1545, 0.5
      %v1557 = vmul.f32 %v1546, 0.5
      %v1558 = vmul.f32 %v1536, 0.70710677
      %v1559 = vmul.f32 %v1537, 0.70710677
      %v1560 = vmul.f32 %v1538, 0.70710677
      %v1561 = vmul.f32 %v1539, 0.70710677
      %v1562 = vmul.f32 %v1540, 0.70710677
      %v1563 = vmul.f32 %v1541, 0.70710677
      %v1564 = vmul.f32 %v1542, 0.70710677
      %v1565 = vmul.f32 %v1543, 0.70710677
      %v1566 = vmul.f32 %v1544, 0.70710677
      %v1567 = vmul.f32 %v1545, 0.70710677
      %v1568 = vmul.f32 %v1546, 0.70710677
      %vm1569 = vcmp.ge.f32.partialorder %v1558, 0.0
      %vm1570 = vcmp.ge.f32.partialorder %v1559, 0.0
      %vm1571 = vcmp.ge.f32.partialorder %v1560, 0.0
      %vm1572 = vcmp.ge.f32.partialorder %v1561, 0.0
      %vm1573 = vcmp.ge.f32.partialorder %v1562, 0.0
      %vm1574 = vcmp.ge.f32.partialorder %v1563, 0.0
      %vm1575 = vcmp.ge.f32.partialorder %v1564, 0.0
      %vm1576 = vcmp.ge.f32.partialorder %v1565, 0.0
      %vm1577 = vcmp.ge.f32.partialorder %v1566, 0.0
      %vm1578 = vcmp.ge.f32.partialorder %v1567, 0.0
      %vm1579 = vcmp.ge.f32.partialorder %v1568, 0.0
      %v1580 = vsel %vm1569, 1.0, -1.0
      %v1581 = vsel %vm1570, 1.0, -1.0
      %v1582 = vsel %vm1571, 1.0, -1.0
      %v1583 = vsel %vm1572, 1.0, -1.0
      %v1584 = vsel %vm1573, 1.0, -1.0
      %v1585 = vsel %vm1574, 1.0, -1.0
      %v1586 = vsel %vm1575, 1.0, -1.0
      %v1587 = vsel %vm1576, 1.0, -1.0
      %v1588 = vsel %vm1577, 1.0, -1.0
      %v1589 = vsel %vm1578, 1.0, -1.0
      %v1590 = vsel %vm1579, 1.0, -1.0
      %v1591 = vand.u32 2147483647, %v1558
      %v1592 = vand.u32 2147483647, %v1559
      %v1593 = vand.u32 2147483647, %v1560
      %v1594 = vand.u32 2147483647, %v1561
      %v1595 = vand.u32 2147483647, %v1562
      %v1596 = vand.u32 2147483647, %v1563
      %v1597 = vand.u32 2147483647, %v1564
      %v1598 = vand.u32 2147483647, %v1565
      %v1599 = vand.u32 2147483647, %v1566
      %v1600 = vand.u32 2147483647, %v1567
      %v1601 = vand.u32 2147483647, %v1568
      %v1602 = vmul.f32 %v1591, 0.3275911
      %v1603 = vmul.f32 %v1592, 0.3275911
      %v1604 = vmul.f32 %v1593, 0.3275911
      %v1605 = vmul.f32 %v1594, 0.3275911
      %v1606 = vmul.f32 %v1595, 0.3275911
      %v1607 = vmul.f32 %v1596, 0.3275911
      %v1608 = vmul.f32 %v1597, 0.3275911
      %v1609 = vmul.f32 %v1598, 0.3275911
      %v1610 = vmul.f32 %v1599, 0.3275911
      %v1611 = vmul.f32 %v1600, 0.3275911
      %v1612 = vmul.f32 %v1601, 0.3275911
      %v1613 = vadd.f32 %v1602, 1.0
      %v1614 = vadd.f32 %v1603, 1.0
      %v1615 = vadd.f32 %v1604, 1.0
      %v1616 = vadd.f32 %v1605, 1.0
      %v1617 = vadd.f32 %v1606, 1.0
      %v1618 = vadd.f32 %v1607, 1.0
      %v1619 = vadd.f32 %v1608, 1.0
      %v1620 = vadd.f32 %v1609, 1.0
      %v1621 = vadd.f32 %v1610, 1.0
      %v1622 = vadd.f32 %v1611, 1.0
      %v1623 = vadd.f32 %v1612, 1.0
      %v1624 = vrcp.pop %v1613
      %v1625 = vmul.f32 %v1613, %v1624
      %v1626 = vsub.f32 1.0, %v1625
      %v1627 = vmul.f32 %v1624, %v1626
      %v1628 = vadd.f32 %v1624, %v1627
      %vm1629 = vweird.f32 %v1613
      %vm1630 = vweird.f32 %v1624
      %vm1631 = vmor %vm1629, %vm1630
      %v1632 = vsel %vm1631, %v1624, %v1628
      %v1633 = vand.u32 2147483647, %v1613
      %vm1634 = vcmp.eq.f32.partialorder %v1633, 8.507059e+37
      %v1635 = vand.u32 %v1613, 2147483648
      %v1636 = vor.u32 1.1754944e-38, %v1635
      %v1637 = vsel %vm1634, %v1636, %v1632
      %v1638 = vmul.f32 1.0, %v1637
      %v1639 = vrcp.pop %v1614
      %v1640 = vmul.f32 %v1614, %v1639
      %v1641 = vsub.f32 1.0, %v1640
      %v1642 = vmul.f32 %v1639, %v1641
      %v1643 = vadd.f32 %v1639, %v1642
      %vm1644 = vweird.f32 %v1614
      %vm1645 = vweird.f32 %v1639
      %vm1646 = vmor %vm1644, %vm1645
      %v1647 = vsel %vm1646, %v1639, %v1643
      %v1648 = vand.u32 2147483647, %v1614
      %vm1649 = vcmp.eq.f32.partialorder %v1648, 8.507059e+37
      %v1650 = vand.u32 %v1614, 2147483648
      %v1651 = vor.u32 1.1754944e-38, %v1650
      %v1652 = vsel %vm1649, %v1651, %v1647
      %v1653 = vmul.f32 1.0, %v1652
      %v1654 = vrcp.pop %v1615
      %v1655 = vmul.f32 %v1615, %v1654
      %v1656 = vsub.f32 1.0, %v1655
      %v1657 = vmul.f32 %v1654, %v1656
      %v1658 = vadd.f32 %v1654, %v1657
      %vm1659 = vweird.f32 %v1615
      %vm1660 = vweird.f32 %v1654
      %vm1661 = vmor %vm1659, %vm1660
      %v1662 = vsel %vm1661, %v1654, %v1658
      %v1663 = vand.u32 2147483647, %v1615
      %vm1664 = vcmp.eq.f32.partialorder %v1663, 8.507059e+37
      %v1665 = vand.u32 %v1615, 2147483648
      %v1666 = vor.u32 1.1754944e-38, %v1665
      %v1667 = vsel %vm1664, %v1666, %v1662
      %v1668 = vmul.f32 1.0, %v1667
      %v1669 = vrcp.pop %v1616
      %v1670 = vmul.f32 %v1616, %v1669
      %v1671 = vsub.f32 1.0, %v1670
      %v1672 = vmul.f32 %v1669, %v1671
      %v1673 = vadd.f32 %v1669, %v1672
      %vm1674 = vweird.f32 %v1616
      %vm1675 = vweird.f32 %v1669
      %vm1676 = vmor %vm1674, %vm1675
      %v1677 = vsel %vm1676, %v1669, %v1673
      %v1678 = vand.u32 2147483647, %v1616
      %vm1679 = vcmp.eq.f32.partialorder %v1678, 8.507059e+37
      %v1680 = vand.u32 %v1616, 2147483648
      %v1681 = vor.u32 1.1754944e-38, %v1680
      %v1682 = vsel %vm1679, %v1681, %v1677
      %v1683 = vmul.f32 1.0, %v1682
      %v1684 = vrcp.pop %v1617
      %v1685 = vmul.f32 %v1617, %v1684
      %v1686 = vsub.f32 1.0, %v1685
      %v1687 = vmul.f32 %v1684, %v1686
      %v1688 = vadd.f32 %v1684, %v1687
      %vm1689 = vweird.f32 %v1617
      %vm1690 = vweird.f32 %v1684
      %vm1691 = vmor %vm1689, %vm1690
      %v1692 = vsel %vm1691, %v1684, %v1688
      %v1693 = vand.u32 2147483647, %v1617
      %vm1694 = vcmp.eq.f32.partialorder %v1693, 8.507059e+37
      %v1695 = vand.u32 %v1617, 2147483648
      %v1696 = vor.u32 1.1754944e-38, %v1695
      %v1697 = vsel %vm1694, %v1696, %v1692
      %v1698 = vmul.f32 1.0, %v1697
      %v1699 = vrcp.pop %v1618
      %v1700 = vmul.f32 %v1618, %v1699
      %v1701 = vsub.f32 1.0, %v1700
      %v1702 = vmul.f32 %v1699, %v1701
      %v1703 = vadd.f32 %v1699, %v1702
      %vm1704 = vweird.f32 %v1618
      %vm1705 = vweird.f32 %v1699
      %vm1706 = vmor %vm1704, %vm1705
      %v1707 = vsel %vm1706, %v1699, %v1703
      %v1708 = vand.u32 2147483647, %v1618
      %vm1709 = vcmp.eq.f32.partialorder %v1708, 8.507059e+37
      %v1710 = vand.u32 %v1618, 2147483648
      %v1711 = vor.u32 1.1754944e-38, %v1710
      %v1712 = vsel %vm1709, %v1711, %v1707
      %v1713 = vmul.f32 1.0, %v1712
      %v1714 = vrcp.pop %v1619
      %v1715 = vmul.f32 %v1619, %v1714
      %v1716 = vsub.f32 1.0, %v1715
      %v1717 = vmul.f32 %v1714, %v1716
      %v1718 = vadd.f32 %v1714, %v1717
      %vm1719 = vweird.f32 %v1619
      %vm1720 = vweird.f32 %v1714
      %vm1721 = vmor %vm1719, %vm1720
      %v1722 = vsel %vm1721, %v1714, %v1718
      %v1723 = vand.u32 2147483647, %v1619
      %vm1724 = vcmp.eq.f32.partialorder %v1723, 8.507059e+37
      %v1725 = vand.u32 %v1619, 2147483648
      %v1726 = vor.u32 1.1754944e-38, %v1725
      %v1727 = vsel %vm1724, %v1726, %v1722
      %v1728 = vmul.f32 1.0, %v1727
      %v1729 = vrcp.pop %v1620
      %v1730 = vmul.f32 %v1620, %v1729
      %v1731 = vsub.f32 1.0, %v1730
      %v1732 = vmul.f32 %v1729, %v1731
      %v1733 = vadd.f32 %v1729, %v1732
      %vm1734 = vweird.f32 %v1620
      %vm1735 = vweird.f32 %v1729
      %vm1736 = vmor %vm1734, %vm1735
      %v1737 = vsel %vm1736, %v1729, %v1733
      %v1738 = vand.u32 2147483647, %v1620
      %vm1739 = vcmp.eq.f32.partialorder %v1738, 8.507059e+37
      %v1740 = vand.u32 %v1620, 2147483648
      %v1741 = vor.u32 1.1754944e-38, %v1740
      %v1742 = vsel %vm1739, %v1741, %v1737
      %v1743 = vmul.f32 1.0, %v1742
      %v1744 = vrcp.pop %v1621
      %v1745 = vmul.f32 %v1621, %v1744
      %v1746 = vsub.f32 1.0, %v1745
      %v1747 = vmul.f32 %v1744, %v1746
      %v1748 = vadd.f32 %v1744, %v1747
      %vm1749 = vweird.f32 %v1621
      %vm1750 = vweird.f32 %v1744
      %vm1751 = vmor %vm1749, %vm1750
      %v1752 = vsel %vm1751, %v1744, %v1748
      %v1753 = vand.u32 2147483647, %v1621
      %vm1754 = vcmp.eq.f32.partialorder %v1753, 8.507059e+37
      %v1755 = vand.u32 %v1621, 2147483648
      %v1756 = vor.u32 1.1754944e-38, %v1755
      %v1757 = vsel %vm1754, %v1756, %v1752
      %v1758 = vmul.f32 1.0, %v1757
      %v1759 = vrcp.pop %v1622
      %v1760 = vmul.f32 %v1622, %v1759
      %v1761 = vsub.f32 1.0, %v1760
      %v1762 = vmul.f32 %v1759, %v1761
      %v1763 = vadd.f32 %v1759, %v1762
      %vm1764 = vweird.f32 %v1622
      %vm1765 = vweird.f32 %v1759
      %vm1766 = vmor %vm1764, %vm1765
      %v1767 = vsel %vm1766, %v1759, %v1763
      %v1768 = vand.u32 2147483647, %v1622
      %vm1769 = vcmp.eq.f32.partialorder %v1768, 8.507059e+37
      %v1770 = vand.u32 %v1622, 2147483648
      %v1771 = vor.u32 1.1754944e-38, %v1770
      %v1772 = vsel %vm1769, %v1771, %v1767
      %v1773 = vmul.f32 1.0, %v1772
      %v1774 = vrcp.pop %v1623
      %v1775 = vmul.f32 %v1623, %v1774
      %v1776 = vsub.f32 1.0, %v1775
      %v1777 = vmul.f32 %v1774, %v1776
      %v1778 = vadd.f32 %v1774, %v1777
      %vm1779 = vweird.f32 %v1623
      %vm1780 = vweird.f32 %v1774
      %vm1781 = vmor %vm1779, %vm1780
      %v1782 = vsel %vm1781, %v1774, %v1778
      %v1783 = vand.u32 2147483647, %v1623
      %vm1784 = vcmp.eq.f32.partialorder %v1783, 8.507059e+37
      %v1785 = vand.u32 %v1623, 2147483648
      %v1786 = vor.u32 1.1754944e-38, %v1785
      %v1787 = vsel %vm1784, %v1786, %v1782
      %v1788 = vmul.f32 1.0, %v1787
      %v1789 = vmul.f32 %v1638, 1.0614054
      %v1790 = vmul.f32 %v1653, 1.0614054
      %v1791 = vmul.f32 %v1668, 1.0614054
      %v1792 = vmul.f32 %v1683, 1.0614054
      %v1793 = vmul.f32 %v1698, 1.0614054
      %v1794 = vmul.f32 %v1713, 1.0614054
      %v1795 = vmul.f32 %v1728, 1.0614054
      %v1796 = vmul.f32 %v1743, 1.0614054
      %v1797 = vmul.f32 %v1758, 1.0614054
      %v1798 = vmul.f32 %v1773, 1.0614054
      %v1799 = vmul.f32 %v1788, 1.0614054
      %v1800 = vadd.f32 %v1789, -1.4531521
      %v1801 = vadd.f32 %v1790, -1.4531521
      %v1802 = vadd.f32 %v1791, -1.4531521
      %v1803 = vadd.f32 %v1792, -1.4531521
      %v1804 = vadd.f32 %v1793, -1.4531521
      %v1805 = vadd.f32 %v1794, -1.4531521
      %v1806 = vadd.f32 %v1795, -1.4531521
      %v1807 = vadd.f32 %v1796, -1.4531521
      %v1808 = vadd.f32 %v1797, -1.4531521
      %v1809 = vadd.f32 %v1798, -1.4531521
      %v1810 = vadd.f32 %v1799, -1.4531521
      %v1811 = vmul.f32 %v1638, %v1800
      %v1812 = vmul.f32 %v1653, %v1801
      %v1813 = vmul.f32 %v1668, %v1802
      %v1814 = vmul.f32 %v1683, %v1803
      %v1815 = vmul.f32 %v1698, %v1804
      %v1816 = vmul.f32 %v1713, %v1805
      %v1817 = vmul.f32 %v1728, %v1806
      %v1818 = vmul.f32 %v1743, %v1807
      %v1819 = vmul.f32 %v1758, %v1808
      %v1820 = vmul.f32 %v1773, %v1809
      %v1821 = vmul.f32 %v1788, %v1810
      %v1822 = vadd.f32 %v1811, 1.4214138
      %v1823 = vadd.f32 %v1812, 1.4214138
      %v1824 = vadd.f32 %v1813, 1.4214138
      %v1825 = vadd.f32 %v1814, 1.4214138
      %v1826 = vadd.f32 %v1815, 1.4214138
      %v1827 = vadd.f32 %v1816, 1.4214138
      %v1828 = vadd.f32 %v1817, 1.4214138
      %v1829 = vadd.f32 %v1818, 1.4214138
      %v1830 = vadd.f32 %v1819, 1.4214138
      %v1831 = vadd.f32 %v1820, 1.4214138
      %v1832 = vadd.f32 %v1821, 1.4214138
      %v1833 = vmul.f32 %v1638, %v1822
      %v1834 = vmul.f32 %v1653, %v1823
      %v1835 = vmul.f32 %v1668, %v1824
      %v1836 = vmul.f32 %v1683, %v1825
      %v1837 = vmul.f32 %v1698, %v1826
      %v1838 = vmul.f32 %v1713, %v1827
      %v1839 = vmul.f32 %v1728, %v1828
      %v1840 = vmul.f32 %v1743, %v1829
      %v1841 = vmul.f32 %v1758, %v1830
      %v1842 = vmul.f32 %v1773, %v1831
      %v1843 = vmul.f32 %v1788, %v1832
      %v1844 = vadd.f32 %v1833, -0.28449672
      %v1845 = vadd.f32 %v1834, -0.28449672
      %v1846 = vadd.f32 %v1835, -0.28449672
      %v1847 = vadd.f32 %v1836, -0.28449672
      %v1848 = vadd.f32 %v1837, -0.28449672
      %v1849 = vadd.f32 %v1838, -0.28449672
      %v1850 = vadd.f32 %v1839, -0.28449672
      %v1851 = vadd.f32 %v1840, -0.28449672
      %v1852 = vadd.f32 %v1841, -0.28449672
      %v1853 = vadd.f32 %v1842, -0.28449672
      %v1854 = vadd.f32 %v1843, -0.28449672
      %v1855 = vmul.f32 %v1638, %v1844
      %v1856 = vmul.f32 %v1653, %v1845
      %v1857 = vmul.f32 %v1668, %v1846
      %v1858 = vmul.f32 %v1683, %v1847
      %v1859 = vmul.f32 %v1698, %v1848
      %v1860 = vmul.f32 %v1713, %v1849
      %v1861 = vmul.f32 %v1728, %v1850
      %v1862 = vmul.f32 %v1743, %v1851
      %v1863 = vmul.f32 %v1758, %v1852
      %v1864 = vmul.f32 %v1773, %v1853
      %v1865 = vmul.f32 %v1788, %v1854
      %v1866 = vadd.f32 %v1855, 0.2548296
      %v1867 = vadd.f32 %v1856, 0.2548296
      %v1868 = vadd.f32 %v1857, 0.2548296
      %v1869 = vadd.f32 %v1858, 0.2548296
      %v1870 = vadd.f32 %v1859, 0.2548296
      %v1871 = vadd.f32 %v1860, 0.2548296
      %v1872 = vadd.f32 %v1861, 0.2548296
      %v1873 = vadd.f32 %v1862, 0.2548296
      %v1874 = vadd.f32 %v1863, 0.2548296
      %v1875 = vadd.f32 %v1864, 0.2548296
      %v1876 = vadd.f32 %v1865, 0.2548296
      %v1877 = vmul.f32 %v1638, %v1866
      %v1878 = vmul.f32 %v1653, %v1867
      %v1879 = vmul.f32 %v1668, %v1868
      %v1880 = vmul.f32 %v1683, %v1869
      %v1881 = vmul.f32 %v1698, %v1870
      %v1882 = vmul.f32 %v1713, %v1871
      %v1883 = vmul.f32 %v1728, %v1872
      %v1884 = vmul.f32 %v1743, %v1873
      %v1885 = vmul.f32 %v1758, %v1874
      %v1886 = vmul.f32 %v1773, %v1875
      %v1887 = vmul.f32 %v1788, %v1876
      %v1888 = vsub.f32 0.0, %v1591
      %v1889 = vsub.f32 0.0, %v1592
      %v1890 = vsub.f32 0.0, %v1593
      %v1891 = vsub.f32 0.0, %v1594
      %v1892 = vsub.f32 0.0, %v1595
      %v1893 = vsub.f32 0.0, %v1596
      %v1894 = vsub.f32 0.0, %v1597
      %v1895 = vsub.f32 0.0, %v1598
      %v1896 = vsub.f32 0.0, %v1599
      %v1897 = vsub.f32 0.0, %v1600
      %v1898 = vsub.f32 0.0, %v1601
      %v1899 = vmul.f32 %v1888, %v1591
      %v1900 = vmul.f32 %v1889, %v1592
      %v1901 = vmul.f32 %v1890, %v1593
      %v1902 = vmul.f32 %v1891, %v1594
      %v1903 = vmul.f32 %v1892, %v1595
      %v1904 = vmul.f32 %v1893, %v1596
      %v1905 = vmul.f32 %v1894, %v1597
      %v1906 = vmul.f32 %v1895, %v1598
      %v1907 = vmul.f32 %v1896, %v1599
      %v1908 = vmul.f32 %v1897, %v1600
      %v1909 = vmul.f32 %v1898, %v1601
      %v1910 = vmul.f32 %v1899, 1.442695
      %v1911 = vpow.pop %v1910
      %v1912 = vmul.f32 %v1900, 1.442695
      %v1913 = vpow.pop %v1912
      %v1914 = vmul.f32 %v1901, 1.442695
      %v1915 = vpow.pop %v1914
      %v1916 = vmul.f32 %v1902, 1.442695
      %v1917 = vpow.pop %v1916
      %v1918 = vmul.f32 %v1903, 1.442695
      %v1919 = vpow.pop %v1918
      %v1920 = vmul.f32 %v1904, 1.442695
      %v1921 = vpow.pop %v1920
      %v1922 = vmul.f32 %v1905, 1.442695
      %v1923 = vpow.pop %v1922
      %v1924 = vmul.f32 %v1906, 1.442695
      %v1925 = vpow.pop %v1924
      %v1926 = vmul.f32 %v1907, 1.442695
      %v1927 = vpow.pop %v1926
      %v1928 = vmul.f32 %v1908, 1.442695
      %v1929 = vpow.pop %v1928
      %v1930 = vmul.f32 %v1909, 1.442695
      %v1931 = vpow.pop %v1930
      %v1932 = vmul.f32 %v1877, %v1911
      %v1933 = vmul.f32 %v1878, %v1913
      %v1934 = vmul.f32 %v1879, %v1915
      %v1935 = vmul.f32 %v1880, %v1917
      %v1936 = vmul.f32 %v1881, %v1919
      %v1937 = vmul.f32 %v1882, %v1921
      %v1938 = vmul.f32 %v1883, %v1923
      %v1939 = vmul.f32 %v1884, %v1925
      %v1940 = vmul.f32 %v1885, %v1927
      %v1941 = vmul.f32 %v1886, %v1929
      %v1942 = vmul.f32 %v1887, %v1931
      %v1943 = vsub.f32 1.0, %v1932
      %v1944 = vsub.f32 1.0, %v1933
      %v1945 = vsub.f32 1.0, %v1934
      %v1946 = vsub.f32 1.0, %v1935
      %v1947 = vsub.f32 1.0, %v1936
      %v1948 = vsub.f32 1.0, %v1937
      %v1949 = vsub.f32 1.0, %v1938
      %v1950 = vsub.f32 1.0, %v1939
      %v1951 = vsub.f32 1.0, %v1940
      %v1952 = vsub.f32 1.0, %v1941
      %v1953 = vsub.f32 1.0, %v1942
      %v1954 = vmul.f32 %v1580, %v1943
      %v1955 = vmul.f32 %v1581, %v1944
      %v1956 = vmul.f32 %v1582, %v1945
      %v1957 = vmul.f32 %v1583, %v1946
      %v1958 = vmul.f32 %v1584, %v1947
      %v1959 = vmul.f32 %v1585, %v1948
      %v1960 = vmul.f32 %v1586, %v1949
      %v1961 = vmul.f32 %v1587, %v1950
      %v1962 = vmul.f32 %v1588, %v1951
      %v1963 = vmul.f32 %v1589, %v1952
      %v1964 = vmul.f32 %v1590, %v1953
      %v1965 = vadd.f32 %v1954, 1.0
      %v1966 = vadd.f32 %v1955, 1.0
      %v1967 = vadd.f32 %v1956, 1.0
      %v1968 = vadd.f32 %v1957, 1.0
      %v1969 = vadd.f32 %v1958, 1.0
      %v1970 = vadd.f32 %v1959, 1.0
      %v1971 = vadd.f32 %v1960, 1.0
      %v1972 = vadd.f32 %v1961, 1.0
      %v1973 = vadd.f32 %v1962, 1.0
      %v1974 = vadd.f32 %v1963, 1.0
      %v1975 = vadd.f32 %v1964, 1.0
      %v1976 = vmul.f32 %v1547, %v1965
      %v1977 = vmul.f32 %v1548, %v1966
      %v1978 = vmul.f32 %v1549, %v1967
      %v1979 = vmul.f32 %v1550, %v1968
      %v1980 = vmul.f32 %v1551, %v1969
      %v1981 = vmul.f32 %v1552, %v1970
      %v1982 = vmul.f32 %v1553, %v1971
      %v1983 = vmul.f32 %v1554, %v1972
      %v1984 = vmul.f32 %v1555, %v1973
      %v1985 = vmul.f32 %v1556, %v1974
      %v1986 = vmul.f32 %v1557, %v1975
      %v1987 = vmul.f32 %v1976, %v1324
      %v1988 = vmul.f32 %v1977, %v1329
      %v1989 = vmul.f32 %v1978, %v1334
      %v1990 = vmul.f32 %v1979, %v1339
      %v1991 = vmul.f32 %v1980, %v1344
      %v1992 = vmul.f32 %v1981, %v1349
      %v1993 = vmul.f32 %v1982, %v1354
      %v1994 = vmul.f32 %v1983, %v1359
      %v1995 = vmul.f32 %v1984, %v1364
      %v1996 = vmul.f32 %v1985, %v1369
      %v1997 = vmul.f32 %v1986, %v1374
      %1998 = vst.msk [vmem:[#allocation2] sm:$0xff] %vm1387, 0.0
      %vm1999 = vcmask 517120
      %2000 = vst.msk [vmem:[#allocation2 + $0x8] sm:$0x3] %vm1999, 0.0
      %2001 = vst.msk [vmem:[#allocation2 + $0xa] sm:$0xff] %vm1387, %v1987
      %2002 = vst.msk [vmem:[#allocation2 + $0x12] sm:$0xff] %vm1387, %v1988
      %2003 = vst.msk [vmem:[#allocation2 + $0x1a] sm:$0xff] %vm1387, %v1989
      %2004 = vst.msk [vmem:[#allocation2 + $0x22] sm:$0xff] %vm1387, %v1990
      %2005 = vst.msk [vmem:[#allocation2 + $0x2a] sm:$0xff] %vm1387, %v1991
      %2006 = vst.msk [vmem:[#allocation2 + $0x32] sm:$0xff] %vm1387, %v1992
      %2007 = vst.msk [vmem:[#allocation2 + $0x3a] sm:$0xff] %vm1387, %v1993
      %2008 = vst.msk [vmem:[#allocation2 + $0x42] sm:$0xff] %vm1387, %v1994
      %2009 = vst.msk [vmem:[#allocation2 + $0x4a] sm:$0xff] %vm1387, %v1995
      %2010 = vst.msk [vmem:[#allocation2 + $0x52] sm:$0xff] %vm1387, %v1996
      %2011 = vst.msk [vmem:[#allocation2 + $0x5a] sm:$0x1] %vm1407, %v1997
      %2012 = vst.msk [vmem:[#allocation2 + $0x5b] sm:$0xff] %vm1387, 0.0
      %vm2013 = vcmask 520192
      %2014 = vst.msk [vmem:[#allocation2 + $0x63] sm:$0x1f] %vm2013, 0.0
      %v2015 = vld [vmem:[#allocation2] sm:$0xff]
      %v2016 = vld [vmem:[#allocation2 + $0x8] sm:$0xff]
      %v2017 = vld [vmem:[#allocation2 + $0x10] sm:$0xff]
      %v2018 = vld [vmem:[#allocation2 + $0x18] sm:$0xff]
      %v2019 = vld [vmem:[#allocation2 + $0x20] sm:$0xff]
      %v2020 = vld [vmem:[#allocation2 + $0x28] sm:$0xff]
      %v2021 = vld [vmem:[#allocation2 + $0x30] sm:$0xff]
      %v2022 = vld [vmem:[#allocation2 + $0x38] sm:$0xff]
      %v2023 = vld [vmem:[#allocation2 + $0x40] sm:$0xff]
      %v2024 = vld [vmem:[#allocation2 + $0x48] sm:$0xff]
      %v2025 = vld [vmem:[#allocation2 + $0x50] sm:$0x1]
      %v2026 = vld [vmem:[%s4] sm:$0xff]
      %v2027 = vld [vmem:[%s4 + $0x8] sm:$0xff]
      %v2028 = vld [vmem:[%s4 + $0x10] sm:$0xff]
      %v2029 = vld [vmem:[%s4 + $0x18] sm:$0xff]
      %v2030 = vld [vmem:[%s4 + $0x20] sm:$0xff]
      %v2031 = vld [vmem:[%s4 + $0x28] sm:$0xff]
      %v2032 = vld [vmem:[%s4 + $0x30] sm:$0xff]
      %v2033 = vld [vmem:[%s4 + $0x38] sm:$0xff]
      %v2034 = vld [vmem:[%s4 + $0x40] sm:$0xff]
      %v2035 = vld [vmem:[%s4 + $0x48] sm:$0xff]
      %v2036 = vld [vmem:[%s4 + $0x50] sm:$0xff]
      %v2037 = vld [vmem:[%s4 + $0x58] sm:$0xff]
      %v2038 = vld [vmem:[%s4 + $0x60] sm:$0xff]
      %v2039 = vld [vmem:[%s4 + $0x68] sm:$0xff]
      %v2040 = vld [vmem:[%s4 + $0x70] sm:$0xff]
      %v2041 = vld [vmem:[%s4 + $0x78] sm:$0xff]
      %v2042 = vld [vmem:[#allocation2 + $0x1] sm:$0xff]
      %v2043 = vld [vmem:[#allocation2 + $0x9] sm:$0xff]
      %v2044 = vld [vmem:[#allocation2 + $0x11] sm:$0xff]
      %v2045 = vld [vmem:[#allocation2 + $0x19] sm:$0xff]
      %v2046 = vld [vmem:[#allocation2 + $0x21] sm:$0xff]
      %v2047 = vld [vmem:[#allocation2 + $0x29] sm:$0xff]
      %v2048 = vld [vmem:[#allocation2 + $0x31] sm:$0xff]
      %v2049 = vld [vmem:[#allocation2 + $0x39] sm:$0xff]
      %v2050 = vld [vmem:[#allocation2 + $0x41] sm:$0xff]
      %v2051 = vld [vmem:[#allocation2 + $0x49] sm:$0xff]
      %v2052 = vld [vmem:[#allocation2 + $0x51] sm:$0x1]
      %s2053 = scalar_lea.vmem %s4, 128
      %v2054 = vld [vmem:[%s2053] sm:$0xff]
      %v2055 = vld [vmem:[%s2053 + $0x8] sm:$0xff]
      %v2056 = vld [vmem:[%s2053 + $0x10] sm:$0xff]
      %v2057 = vld [vmem:[%s2053 + $0x18] sm:$0xff]
      %v2058 = vld [vmem:[%s2053 + $0x20] sm:$0xff]
      %v2059 = vld [vmem:[%s2053 + $0x28] sm:$0xff]
      %v2060 = vld [vmem:[%s2053 + $0x30] sm:$0xff]
      %v2061 = vld [vmem:[%s2053 + $0x38] sm:$0xff]
      %v2062 = vld [vmem:[%s2053 + $0x40] sm:$0xff]
      %v2063 = vld [vmem:[%s2053 + $0x48] sm:$0xff]
      %v2064 = vld [vmem:[%s2053 + $0x50] sm:$0xff]
      %v2065 = vld [vmem:[%s2053 + $0x58] sm:$0xff]
      %v2066 = vld [vmem:[%s2053 + $0x60] sm:$0xff]
      %v2067 = vld [vmem:[%s2053 + $0x68] sm:$0xff]
      %v2068 = vld [vmem:[%s2053 + $0x70] sm:$0xff]
      %v2069 = vld [vmem:[%s2053 + $0x78] sm:$0xff]
      %v2071 = vsel %vm1387, %v2042, 0
      %v2074 = vsel %vm1387, %v2043, 0
      %v2077 = vsel %vm1387, %v2044, 0
      %v2080 = vsel %vm1387, %v2045, 0
      %v2083 = vsel %vm1387, %v2046, 0
      %v2086 = vsel %vm1387, %v2047, 0
      %v2089 = vsel %vm1387, %v2048, 0
      %v2092 = vsel %vm1387, %v2049, 0
      %v2095 = vsel %vm1387, %v2050, 0
      %v2098 = vsel %vm1387, %v2051, 0
      %v2101 = vsel %vm1387, %v2052, 0
      %2103 = vmatpush.msra.mxu0 0.0
      %2104 = vmatpush.msra.mxu0 0.0
      %2105 = vmatpush.msra.mxu0 0.0
      %2106 = vmatpush.msra.mxu0 0.0
      %2107 = vmatpush.msra.mxu0 0.0
      %2108 = vmatpush.msra.mxu0 0.0
      %2109 = vmatpush.msra.mxu0 0.0
      %2110 = vmatpush.msra.mxu0 0.0
      %2111 = vmatpush.msra.mxu0 %v2068
      %2112 = vmatpush.msra.mxu0 %v2066
      %2113 = vmatpush.msra.mxu0 %v2064
      %2114 = vmatpush.msra.mxu0 %v2062
      %2115 = vmatpush.msra.mxu0 %v2060
      %2116 = vmatpush.msra.mxu0 %v2058
      %2117 = vmatpush.msra.mxu0 %v2056
      %2118 = vmatpush.msra.mxu0 %v2054
      %2119 = vmatmul.f32.gmra.mxu0 %v2071
      %v2120 = vpop.f32.mrf.mxu0
      %v2121 = vadd.f32 0.0, %v2120
      %2122 = vmatmul.f32.gmra.mxu0 %v2074
      %v2123 = vpop.f32.mrf.mxu0
      %v2124 = vadd.f32 0.0, %v2123
      %2125 = vmatmul.f32.gmra.mxu0 %v2077
      %v2126 = vpop.f32.mrf.mxu0
      %v2127 = vadd.f32 0.0, %v2126
      %2128 = vmatmul.f32.gmra.mxu0 %v2080
      %v2129 = vpop.f32.mrf.mxu0
      %v2130 = vadd.f32 0.0, %v2129
      %2131 = vmatmul.f32.gmra.mxu0 %v2083
      %v2132 = vpop.f32.mrf.mxu0
      %v2133 = vadd.f32 0.0, %v2132
      %2134 = vmatmul.f32.gmra.mxu0 %v2086
      %v2135 = vpop.f32.mrf.mxu0
      %v2136 = vadd.f32 0.0, %v2135
      %2137 = vmatmul.f32.gmra.mxu0 %v2089
      %v2138 = vpop.f32.mrf.mxu0
      %v2139 = vadd.f32 0.0, %v2138
      %2140 = vmatmul.f32.gmra.mxu0 %v2092
      %v2141 = vpop.f32.mrf.mxu0
      %v2142 = vadd.f32 0.0, %v2141
      %2143 = vmatmul.f32.gmra.mxu0 %v2095
      %v2144 = vpop.f32.mrf.mxu0
      %v2145 = vadd.f32 0.0, %v2144
      %2146 = vmatmul.f32.gmra.mxu0 %v2098
      %v2147 = vpop.f32.mrf.mxu0
      %v2148 = vadd.f32 0.0, %v2147
      %2149 = vmatmul.f32.gmra.mxu0 %v2101
      %v2150 = vpop.f32.mrf.mxu0
      %v2151 = vadd.f32 0.0, %v2150
      %2152 = vdwg.mxu0
      %2153 = vmatpush.msra.mxu0 0.0
      %2154 = vmatpush.msra.mxu0 0.0
      %2155 = vmatpush.msra.mxu0 0.0
      %2156 = vmatpush.msra.mxu0 0.0
      %2157 = vmatpush.msra.mxu0 0.0
      %2158 = vmatpush.msra.mxu0 0.0
      %2159 = vmatpush.msra.mxu0 0.0
      %2160 = vmatpush.msra.mxu0 0.0
      %2161 = vmatpush.msra.mxu0 %v2069
      %2162 = vmatpush.msra.mxu0 %v2067
      %2163 = vmatpush.msra.mxu0 %v2065
      %2164 = vmatpush.msra.mxu0 %v2063
      %2165 = vmatpush.msra.mxu0 %v2061
      %2166 = vmatpush.msra.mxu0 %v2059
      %2167 = vmatpush.msra.mxu0 %v2057
      %2168 = vmatpush.msra.mxu0 %v2055
      %2169 = vmatmul.f32.gmra.mxu0 %v2071
      %v2170 = vpop.f32.mrf.mxu0
      %v2171 = vadd.f32 0.0, %v2170
      %2172 = vmatmul.f32.gmra.mxu0 %v2074
      %v2173 = vpop.f32.mrf.mxu0
      %v2174 = vadd.f32 0.0, %v2173
      %2175 = vmatmul.f32.gmra.mxu0 %v2077
      %v2176 = vpop.f32.mrf.mxu0
      %v2177 = vadd.f32 0.0, %v2176
      %2178 = vmatmul.f32.gmra.mxu0 %v2080
      %v2179 = vpop.f32.mrf.mxu0
      %v2180 = vadd.f32 0.0, %v2179
      %2181 = vmatmul.f32.gmra.mxu0 %v2083
      %v2182 = vpop.f32.mrf.mxu0
      %v2183 = vadd.f32 0.0, %v2182
      %2184 = vmatmul.f32.gmra.mxu0 %v2086
      %v2185 = vpop.f32.mrf.mxu0
      %v2186 = vadd.f32 0.0, %v2185
      %2187 = vmatmul.f32.gmra.mxu0 %v2089
      %v2188 = vpop.f32.mrf.mxu0
      %v2189 = vadd.f32 0.0, %v2188
      %2190 = vmatmul.f32.gmra.mxu0 %v2092
      %v2191 = vpop.f32.mrf.mxu0
      %v2192 = vadd.f32 0.0, %v2191
      %2193 = vmatmul.f32.gmra.mxu0 %v2095
      %v2194 = vpop.f32.mrf.mxu0
      %v2195 = vadd.f32 0.0, %v2194
      %2196 = vmatmul.f32.gmra.mxu0 %v2098
      %v2197 = vpop.f32.mrf.mxu0
      %v2198 = vadd.f32 0.0, %v2197
      %2199 = vmatmul.f32.gmra.mxu0 %v2101
      %v2200 = vpop.f32.mrf.mxu0
      %v2201 = vadd.f32 0.0, %v2200
      %2202 = vdwg.mxu0
      %v2204 = vsel %vm1387, %v2015, 0
      %v2207 = vsel %vm1387, %v2016, 0
      %v2210 = vsel %vm1387, %v2017, 0
      %v2213 = vsel %vm1387, %v2018, 0
      %v2216 = vsel %vm1387, %v2019, 0
      %v2219 = vsel %vm1387, %v2020, 0
      %v2222 = vsel %vm1387, %v2021, 0
      %v2225 = vsel %vm1387, %v2022, 0
      %v2228 = vsel %vm1387, %v2023, 0
      %v2231 = vsel %vm1387, %v2024, 0
      %v2234 = vsel %vm1387, %v2025, 0
      %2236 = vmatpush.msra.mxu0 0.0
      %2237 = vmatpush.msra.mxu0 0.0
      %2238 = vmatpush.msra.mxu0 0.0
      %2239 = vmatpush.msra.mxu0 0.0
      %2240 = vmatpush.msra.mxu0 0.0
      %2241 = vmatpush.msra.mxu0 0.0
      %2242 = vmatpush.msra.mxu0 0.0
      %2243 = vmatpush.msra.mxu0 0.0
      %2244 = vmatpush.msra.mxu0 %v2040
      %2245 = vmatpush.msra.mxu0 %v2038
      %2246 = vmatpush.msra.mxu0 %v2036
      %2247 = vmatpush.msra.mxu0 %v2034
      %2248 = vmatpush.msra.mxu0 %v2032
      %2249 = vmatpush.msra.mxu0 %v2030
      %2250 = vmatpush.msra.mxu0 %v2028
      %2251 = vmatpush.msra.mxu0 %v2026
      %2252 = vmatmul.f32.gmra.mxu0 %v2204
      %v2253 = vpop.f32.mrf.mxu0
      %v2254 = vadd.f32 %v2121, %v2253
      %2255 = vmatmul.f32.gmra.mxu0 %v2207
      %v2256 = vpop.f32.mrf.mxu0
      %v2257 = vadd.f32 %v2124, %v2256
      %2258 = vmatmul.f32.gmra.mxu0 %v2210
      %v2259 = vpop.f32.mrf.mxu0
      %v2260 = vadd.f32 %v2127, %v2259
      %2261 = vmatmul.f32.gmra.mxu0 %v2213
      %v2262 = vpop.f32.mrf.mxu0
      %v2263 = vadd.f32 %v2130, %v2262
      %2264 = vmatmul.f32.gmra.mxu0 %v2216
      %v2265 = vpop.f32.mrf.mxu0
      %v2266 = vadd.f32 %v2133, %v2265
      %2267 = vmatmul.f32.gmra.mxu0 %v2219
      %v2268 = vpop.f32.mrf.mxu0
      %v2269 = vadd.f32 %v2136, %v2268
      %2270 = vmatmul.f32.gmra.mxu0 %v2222
      %v2271 = vpop.f32.mrf.mxu0
      %v2272 = vadd.f32 %v2139, %v2271
      %2273 = vmatmul.f32.gmra.mxu0 %v2225
      %v2274 = vpop.f32.mrf.mxu0
      %v2275 = vadd.f32 %v2142, %v2274
      %2276 = vmatmul.f32.gmra.mxu0 %v2228
      %v2277 = vpop.f32.mrf.mxu0
      %v2278 = vadd.f32 %v2145, %v2277
      %2279 = vmatmul.f32.gmra.mxu0 %v2231
      %v2280 = vpop.f32.mrf.mxu0
      %v2281 = vadd.f32 %v2148, %v2280
      %2282 = vmatmul.f32.gmra.mxu0 %v2234
      %v2283 = vpop.f32.mrf.mxu0
      %v2284 = vadd.f32 %v2151, %v2283
      %2285 = vdwg.mxu0
      %2286 = vmatpush.msra.mxu0 0.0
      %2287 = vmatpush.msra.mxu0 0.0
      %2288 = vmatpush.msra.mxu0 0.0
      %2289 = vmatpush.msra.mxu0 0.0
      %2290 = vmatpush.msra.mxu0 0.0
      %2291 = vmatpush.msra.mxu0 0.0
      %2292 = vmatpush.msra.mxu0 0.0
      %2293 = vmatpush.msra.mxu0 0.0
      %2294 = vmatpush.msra.mxu0 %v2041
      %2295 = vmatpush.msra.mxu0 %v2039
      %2296 = vmatpush.msra.mxu0 %v2037
      %2297 = vmatpush.msra.mxu0 %v2035
      %2298 = vmatpush.msra.mxu0 %v2033
      %2299 = vmatpush.msra.mxu0 %v2031
      %2300 = vmatpush.msra.mxu0 %v2029
      %2301 = vmatpush.msra.mxu0 %v2027
      %2302 = vmatmul.f32.gmra.mxu0 %v2204
      %v2303 = vpop.f32.mrf.mxu0
      %v2304 = vadd.f32 %v2171, %v2303
      %2305 = vmatmul.f32.gmra.mxu0 %v2207
      %v2306 = vpop.f32.mrf.mxu0
      %v2307 = vadd.f32 %v2174, %v2306
      %2308 = vmatmul.f32.gmra.mxu0 %v2210
      %v2309 = vpop.f32.mrf.mxu0
      %v2310 = vadd.f32 %v2177, %v2309
      %2311 = vmatmul.f32.gmra.mxu0 %v2213
      %v2312 = vpop.f32.mrf.mxu0
      %v2313 = vadd.f32 %v2180, %v2312
      %2314 = vmatmul.f32.gmra.mxu0 %v2216
      %v2315 = vpop.f32.mrf.mxu0
      %v2316 = vadd.f32 %v2183, %v2315
      %2317 = vmatmul.f32.gmra.mxu0 %v2219
      %v2318 = vpop.f32.mrf.mxu0
      %v2319 = vadd.f32 %v2186, %v2318
      %2320 = vmatmul.f32.gmra.mxu0 %v2222
      %v2321 = vpop.f32.mrf.mxu0
      %v2322 = vadd.f32 %v2189, %v2321
      %2323 = vmatmul.f32.gmra.mxu0 %v2225
      %v2324 = vpop.f32.mrf.mxu0
      %v2325 = vadd.f32 %v2192, %v2324
      %2326 = vmatmul.f32.gmra.mxu0 %v2228
      %v2327 = vpop.f32.mrf.mxu0
      %v2328 = vadd.f32 %v2195, %v2327
      %2329 = vmatmul.f32.gmra.mxu0 %v2231
      %v2330 = vpop.f32.mrf.mxu0
      %v2331 = vadd.f32 %v2198, %v2330
      %2332 = vmatmul.f32.gmra.mxu0 %v2234
      %v2333 = vpop.f32.mrf.mxu0
      %v2334 = vadd.f32 %v2201, %v2333
      %2335 = vdwg.mxu0
      %v2336 = vld [vmem:[#allocation2 + $0x2] sm:$0xff]
      %v2337 = vld [vmem:[#allocation2 + $0xa] sm:$0xff]
      %v2338 = vld [vmem:[#allocation2 + $0x12] sm:$0xff]
      %v2339 = vld [vmem:[#allocation2 + $0x1a] sm:$0xff]
      %v2340 = vld [vmem:[#allocation2 + $0x22] sm:$0xff]
      %v2341 = vld [vmem:[#allocation2 + $0x2a] sm:$0xff]
      %v2342 = vld [vmem:[#allocation2 + $0x32] sm:$0xff]
      %v2343 = vld [vmem:[#allocation2 + $0x3a] sm:$0xff]
      %v2344 = vld [vmem:[#allocation2 + $0x42] sm:$0xff]
      %v2345 = vld [vmem:[#allocation2 + $0x4a] sm:$0xff]
      %v2346 = vld [vmem:[#allocation2 + $0x52] sm:$0x1]
      %s2347 = scalar_lea.vmem %s4, 256
      %v2348 = vld [vmem:[%s2347] sm:$0xff]
      %v2349 = vld [vmem:[%s2347 + $0x8] sm:$0xff]
      %v2350 = vld [vmem:[%s2347 + $0x10] sm:$0xff]
      %v2351 = vld [vmem:[%s2347 + $0x18] sm:$0xff]
      %v2352 = vld [vmem:[%s2347 + $0x20] sm:$0xff]
      %v2353 = vld [vmem:[%s2347 + $0x28] sm:$0xff]
      %v2354 = vld [vmem:[%s2347 + $0x30] sm:$0xff]
      %v2355 = vld [vmem:[%s2347 + $0x38] sm:$0xff]
      %v2356 = vld [vmem:[%s2347 + $0x40] sm:$0xff]
      %v2357 = vld [vmem:[%s2347 + $0x48] sm:$0xff]
      %v2358 = vld [vmem:[%s2347 + $0x50] sm:$0xff]
      %v2359 = vld [vmem:[%s2347 + $0x58] sm:$0xff]
      %v2360 = vld [vmem:[%s2347 + $0x60] sm:$0xff]
      %v2361 = vld [vmem:[%s2347 + $0x68] sm:$0xff]
      %v2362 = vld [vmem:[%s2347 + $0x70] sm:$0xff]
      %v2363 = vld [vmem:[%s2347 + $0x78] sm:$0xff]
      %v2365 = vsel %vm1387, %v2336, 0
      %v2368 = vsel %vm1387, %v2337, 0
      %v2371 = vsel %vm1387, %v2338, 0
      %v2374 = vsel %vm1387, %v2339, 0
      %v2377 = vsel %vm1387, %v2340, 0
      %v2380 = vsel %vm1387, %v2341, 0
      %v2383 = vsel %vm1387, %v2342, 0
      %v2386 = vsel %vm1387, %v2343, 0
      %v2389 = vsel %vm1387, %v2344, 0
      %v2392 = vsel %vm1387, %v2345, 0
      %v2395 = vsel %vm1387, %v2346, 0
      %2397 = vmatpush.msra.mxu0 0.0
      %2398 = vmatpush.msra.mxu0 0.0
      %2399 = vmatpush.msra.mxu0 0.0
      %2400 = vmatpush.msra.mxu0 0.0
      %2401 = vmatpush.msra.mxu0 0.0
      %2402 = vmatpush.msra.mxu0 0.0
      %2403 = vmatpush.msra.mxu0 0.0
      %2404 = vmatpush.msra.mxu0 0.0
      %2405 = vmatpush.msra.mxu0 %v2362
      %2406 = vmatpush.msra.mxu0 %v2360
      %2407 = vmatpush.msra.mxu0 %v2358
      %2408 = vmatpush.msra.mxu0 %v2356
      %2409 = vmatpush.msra.mxu0 %v2354
      %2410 = vmatpush.msra.mxu0 %v2352
      %2411 = vmatpush.msra.mxu0 %v2350
      %2412 = vmatpush.msra.mxu0 %v2348
      %2413 = vmatmul.f32.gmra.mxu0 %v2365
      %v2414 = vpop.f32.mrf.mxu0
      %v2415 = vadd.f32 0.0, %v2414
      %2416 = vmatmul.f32.gmra.mxu0 %v2368
      %v2417 = vpop.f32.mrf.mxu0
      %v2418 = vadd.f32 0.0, %v2417
      %2419 = vmatmul.f32.gmra.mxu0 %v2371
      %v2420 = vpop.f32.mrf.mxu0
      %v2421 = vadd.f32 0.0, %v2420
      %2422 = vmatmul.f32.gmra.mxu0 %v2374
      %v2423 = vpop.f32.mrf.mxu0
      %v2424 = vadd.f32 0.0, %v2423
      %2425 = vmatmul.f32.gmra.mxu0 %v2377
      %v2426 = vpop.f32.mrf.mxu0
      %v2427 = vadd.f32 0.0, %v2426
      %2428 = vmatmul.f32.gmra.mxu0 %v2380
      %v2429 = vpop.f32.mrf.mxu0
      %v2430 = vadd.f32 0.0, %v2429
      %2431 = vmatmul.f32.gmra.mxu0 %v2383
      %v2432 = vpop.f32.mrf.mxu0
      %v2433 = vadd.f32 0.0, %v2432
      %2434 = vmatmul.f32.gmra.mxu0 %v2386
      %v2435 = vpop.f32.mrf.mxu0
      %v2436 = vadd.f32 0.0, %v2435
      %2437 = vmatmul.f32.gmra.mxu0 %v2389
      %v2438 = vpop.f32.mrf.mxu0
      %v2439 = vadd.f32 0.0, %v2438
      %2440 = vmatmul.f32.gmra.mxu0 %v2392
      %v2441 = vpop.f32.mrf.mxu0
      %v2442 = vadd.f32 0.0, %v2441
      %2443 = vmatmul.f32.gmra.mxu0 %v2395
      %v2444 = vpop.f32.mrf.mxu0
      %v2445 = vadd.f32 0.0, %v2444
      %2446 = vdwg.mxu0
      %2447 = vmatpush.msra.mxu0 0.0
      %2448 = vmatpush.msra.mxu0 0.0
      %2449 = vmatpush.msra.mxu0 0.0
      %2450 = vmatpush.msra.mxu0 0.0
      %2451 = vmatpush.msra.mxu0 0.0
      %2452 = vmatpush.msra.mxu0 0.0
      %2453 = vmatpush.msra.mxu0 0.0
      %2454 = vmatpush.msra.mxu0 0.0
      %2455 = vmatpush.msra.mxu0 %v2363
      %2456 = vmatpush.msra.mxu0 %v2361
      %2457 = vmatpush.msra.mxu0 %v2359
      %2458 = vmatpush.msra.mxu0 %v2357
      %2459 = vmatpush.msra.mxu0 %v2355
      %2460 = vmatpush.msra.mxu0 %v2353
      %2461 = vmatpush.msra.mxu0 %v2351
      %2462 = vmatpush.msra.mxu0 %v2349
      %2463 = vmatmul.f32.gmra.mxu0 %v2365
      %v2464 = vpop.f32.mrf.mxu0
      %v2465 = vadd.f32 0.0, %v2464
      %2466 = vmatmul.f32.gmra.mxu0 %v2368
      %v2467 = vpop.f32.mrf.mxu0
      %v2468 = vadd.f32 0.0, %v2467
      %2469 = vmatmul.f32.gmra.mxu0 %v2371
      %v2470 = vpop.f32.mrf.mxu0
      %v2471 = vadd.f32 0.0, %v2470
      %2472 = vmatmul.f32.gmra.mxu0 %v2374
      %v2473 = vpop.f32.mrf.mxu0
      %v2474 = vadd.f32 0.0, %v2473
      %2475 = vmatmul.f32.gmra.mxu0 %v2377
      %v2476 = vpop.f32.mrf.mxu0
      %v2477 = vadd.f32 0.0, %v2476
      %2478 = vmatmul.f32.gmra.mxu0 %v2380
      %v2479 = vpop.f32.mrf.mxu0
      %v2480 = vadd.f32 0.0, %v2479
      %2481 = vmatmul.f32.gmra.mxu0 %v2383
      %v2482 = vpop.f32.mrf.mxu0
      %v2483 = vadd.f32 0.0, %v2482
      %2484 = vmatmul.f32.gmra.mxu0 %v2386
      %v2485 = vpop.f32.mrf.mxu0
      %v2486 = vadd.f32 0.0, %v2485
      %2487 = vmatmul.f32.gmra.mxu0 %v2389
      %v2488 = vpop.f32.mrf.mxu0
      %v2489 = vadd.f32 0.0, %v2488
      %2490 = vmatmul.f32.gmra.mxu0 %v2392
      %v2491 = vpop.f32.mrf.mxu0
      %v2492 = vadd.f32 0.0, %v2491
      %2493 = vmatmul.f32.gmra.mxu0 %v2395
      %v2494 = vpop.f32.mrf.mxu0
      %v2495 = vadd.f32 0.0, %v2494
      %2496 = vdwg.mxu0
      %v2497 = vadd.f32 %v2254, %v2415
      %v2498 = vadd.f32 %v2304, %v2465
      %v2499 = vadd.f32 %v2257, %v2418
      %v2500 = vadd.f32 %v2307, %v2468
      %v2501 = vadd.f32 %v2260, %v2421
      %v2502 = vadd.f32 %v2310, %v2471
      %v2503 = vadd.f32 %v2263, %v2424
      %v2504 = vadd.f32 %v2313, %v2474
      %v2505 = vadd.f32 %v2266, %v2427
      %v2506 = vadd.f32 %v2316, %v2477
      %v2507 = vadd.f32 %v2269, %v2430
      %v2508 = vadd.f32 %v2319, %v2480
      %v2509 = vadd.f32 %v2272, %v2433
      %v2510 = vadd.f32 %v2322, %v2483
      %v2511 = vadd.f32 %v2275, %v2436
      %v2512 = vadd.f32 %v2325, %v2486
      %v2513 = vadd.f32 %v2278, %v2439
      %v2514 = vadd.f32 %v2328, %v2489
      %v2515 = vadd.f32 %v2281, %v2442
      %v2516 = vadd.f32 %v2331, %v2492
      %v2517 = vadd.f32 %v2284, %v2445
      %v2518 = vadd.f32 %v2334, %v2495
      %v2519 = vld [vmem:[#allocation2 + $0x9] sm:$0xff]
      %v2520 = vld [vmem:[#allocation2 + $0x11] sm:$0xff]
      %v2521 = vld [vmem:[#allocation2 + $0x19] sm:$0xff]
      %v2522 = vld [vmem:[#allocation2 + $0x21] sm:$0xff]
      %v2523 = vld [vmem:[#allocation2 + $0x29] sm:$0xff]
      %v2524 = vld [vmem:[#allocation2 + $0x31] sm:$0xff]
      %v2525 = vld [vmem:[#allocation2 + $0x39] sm:$0xff]
      %v2526 = vld [vmem:[#allocation2 + $0x41] sm:$0xff]
      %v2527 = vld [vmem:[#allocation2 + $0x49] sm:$0xff]
      %v2528 = vld [vmem:[#allocation2 + $0x51] sm:$0xff]
      %v2529 = vld [vmem:[#allocation2 + $0x59] sm:$0x1]
      %s2530 = scalar_lea.vmem %s4, 384
      %v2531 = vld [vmem:[%s2530] sm:$0xff]
      %v2532 = vld [vmem:[%s2530 + $0x8] sm:$0xff]
      %v2533 = vld [vmem:[%s2530 + $0x10] sm:$0xff]
      %v2534 = vld [vmem:[%s2530 + $0x18] sm:$0xff]
      %v2535 = vld [vmem:[%s2530 + $0x20] sm:$0xff]
      %v2536 = vld [vmem:[%s2530 + $0x28] sm:$0xff]
      %v2537 = vld [vmem:[%s2530 + $0x30] sm:$0xff]
      %v2538 = vld [vmem:[%s2530 + $0x38] sm:$0xff]
      %v2539 = vld [vmem:[%s2530 + $0x40] sm:$0xff]
      %v2540 = vld [vmem:[%s2530 + $0x48] sm:$0xff]
      %v2541 = vld [vmem:[%s2530 + $0x50] sm:$0xff]
      %v2542 = vld [vmem:[%s2530 + $0x58] sm:$0xff]
      %v2543 = vld [vmem:[%s2530 + $0x60] sm:$0xff]
      %v2544 = vld [vmem:[%s2530 + $0x68] sm:$0xff]
      %v2545 = vld [vmem:[%s2530 + $0x70] sm:$0xff]
      %v2546 = vld [vmem:[%s2530 + $0x78] sm:$0xff]
      %v2548 = vsel %vm1387, %v2519, 0
      %v2551 = vsel %vm1387, %v2520, 0
      %v2554 = vsel %vm1387, %v2521, 0
      %v2557 = vsel %vm1387, %v2522, 0
      %v2560 = vsel %vm1387, %v2523, 0
      %v2563 = vsel %vm1387, %v2524, 0
      %v2566 = vsel %vm1387, %v2525, 0
      %v2569 = vsel %vm1387, %v2526, 0
      %v2572 = vsel %vm1387, %v2527, 0
      %v2575 = vsel %vm1387, %v2528, 0
      %v2578 = vsel %vm1387, %v2529, 0
      %2580 = vmatpush.msra.mxu0 0.0
      %2581 = vmatpush.msra.mxu0 0.0
      %2582 = vmatpush.msra.mxu0 0.0
      %2583 = vmatpush.msra.mxu0 0.0
      %2584 = vmatpush.msra.mxu0 0.0
      %2585 = vmatpush.msra.mxu0 0.0
      %2586 = vmatpush.msra.mxu0 0.0
      %2587 = vmatpush.msra.mxu0 0.0
      %2588 = vmatpush.msra.mxu0 %v2545
      %2589 = vmatpush.msra.mxu0 %v2543
      %2590 = vmatpush.msra.mxu0 %v2541
      %2591 = vmatpush.msra.mxu0 %v2539
      %2592 = vmatpush.msra.mxu0 %v2537
      %2593 = vmatpush.msra.mxu0 %v2535
      %2594 = vmatpush.msra.mxu0 %v2533
      %2595 = vmatpush.msra.mxu0 %v2531
      %2596 = vmatmul.f32.gmra.mxu0 %v2548
      %v2597 = vpop.f32.mrf.mxu0
      %v2598 = vadd.f32 0.0, %v2597
      %2599 = vmatmul.f32.gmra.mxu0 %v2551
      %v2600 = vpop.f32.mrf.mxu0
      %v2601 = vadd.f32 0.0, %v2600
      %2602 = vmatmul.f32.gmra.mxu0 %v2554
      %v2603 = vpop.f32.mrf.mxu0
      %v2604 = vadd.f32 0.0, %v2603
      %2605 = vmatmul.f32.gmra.mxu0 %v2557
      %v2606 = vpop.f32.mrf.mxu0
      %v2607 = vadd.f32 0.0, %v2606
      %2608 = vmatmul.f32.gmra.mxu0 %v2560
      %v2609 = vpop.f32.mrf.mxu0
      %v2610 = vadd.f32 0.0, %v2609
      %2611 = vmatmul.f32.gmra.mxu0 %v2563
      %v2612 = vpop.f32.mrf.mxu0
      %v2613 = vadd.f32 0.0, %v2612
      %2614 = vmatmul.f32.gmra.mxu0 %v2566
      %v2615 = vpop.f32.mrf.mxu0
      %v2616 = vadd.f32 0.0, %v2615
      %2617 = vmatmul.f32.gmra.mxu0 %v2569
      %v2618 = vpop.f32.mrf.mxu0
      %v2619 = vadd.f32 0.0, %v2618
      %2620 = vmatmul.f32.gmra.mxu0 %v2572
      %v2621 = vpop.f32.mrf.mxu0
      %v2622 = vadd.f32 0.0, %v2621
      %2623 = vmatmul.f32.gmra.mxu0 %v2575
      %v2624 = vpop.f32.mrf.mxu0
      %v2625 = vadd.f32 0.0, %v2624
      %2626 = vmatmul.f32.gmra.mxu0 %v2578
      %v2627 = vpop.f32.mrf.mxu0
      %v2628 = vadd.f32 0.0, %v2627
      %2629 = vdwg.mxu0
      %2630 = vmatpush.msra.mxu0 0.0
      %2631 = vmatpush.msra.mxu0 0.0
      %2632 = vmatpush.msra.mxu0 0.0
      %2633 = vmatpush.msra.mxu0 0.0
      %2634 = vmatpush.msra.mxu0 0.0
      %2635 = vmatpush.msra.mxu0 0.0
      %2636 = vmatpush.msra.mxu0 0.0
      %2637 = vmatpush.msra.mxu0 0.0
      %2638 = vmatpush.msra.mxu0 %v2546
      %2639 = vmatpush.msra.mxu0 %v2544
      %2640 = vmatpush.msra.mxu0 %v2542
      %2641 = vmatpush.msra.mxu0 %v2540
      %2642 = vmatpush.msra.mxu0 %v2538
      %2643 = vmatpush.msra.mxu0 %v2536
      %2644 = vmatpush.msra.mxu0 %v2534
      %2645 = vmatpush.msra.mxu0 %v2532
      %2646 = vmatmul.f32.gmra.mxu0 %v2548
      %v2647 = vpop.f32.mrf.mxu0
      %v2648 = vadd.f32 0.0, %v2647
      %2649 = vmatmul.f32.gmra.mxu0 %v2551
      %v2650 = vpop.f32.mrf.mxu0
      %v2651 = vadd.f32 0.0, %v2650
      %2652 = vmatmul.f32.gmra.mxu0 %v2554
      %v2653 = vpop.f32.mrf.mxu0
      %v2654 = vadd.f32 0.0, %v2653
      %2655 = vmatmul.f32.gmra.mxu0 %v2557
      %v2656 = vpop.f32.mrf.mxu0
      %v2657 = vadd.f32 0.0, %v2656
      %2658 = vmatmul.f32.gmra.mxu0 %v2560
      %v2659 = vpop.f32.mrf.mxu0
      %v2660 = vadd.f32 0.0, %v2659
      %2661 = vmatmul.f32.gmra.mxu0 %v2563
      %v2662 = vpop.f32.mrf.mxu0
      %v2663 = vadd.f32 0.0, %v2662
      %2664 = vmatmul.f32.gmra.mxu0 %v2566
      %v2665 = vpop.f32.mrf.mxu0
      %v2666 = vadd.f32 0.0, %v2665
      %2667 = vmatmul.f32.gmra.mxu0 %v2569
      %v2668 = vpop.f32.mrf.mxu0
      %v2669 = vadd.f32 0.0, %v2668
      %2670 = vmatmul.f32.gmra.mxu0 %v2572
      %v2671 = vpop.f32.mrf.mxu0
      %v2672 = vadd.f32 0.0, %v2671
      %2673 = vmatmul.f32.gmra.mxu0 %v2575
      %v2674 = vpop.f32.mrf.mxu0
      %v2675 = vadd.f32 0.0, %v2674
      %2676 = vmatmul.f32.gmra.mxu0 %v2578
      %v2677 = vpop.f32.mrf.mxu0
      %v2678 = vadd.f32 0.0, %v2677
      %2679 = vdwg.mxu0
      %v2680 = vadd.f32 %v2497, %v2598
      %v2681 = vadd.f32 %v2498, %v2648
      %v2682 = vadd.f32 %v2499, %v2601
      %v2683 = vadd.f32 %v2500, %v2651
      %v2684 = vadd.f32 %v2501, %v2604
      %v2685 = vadd.f32 %v2502, %v2654
      %v2686 = vadd.f32 %v2503, %v2607
      %v2687 = vadd.f32 %v2504, %v2657
      %v2688 = vadd.f32 %v2505, %v2610
      %v2689 = vadd.f32 %v2506, %v2660
      %v2690 = vadd.f32 %v2507, %v2613
      %v2691 = vadd.f32 %v2508, %v2663
      %v2692 = vadd.f32 %v2509, %v2616
      %v2693 = vadd.f32 %v2510, %v2666
      %v2694 = vadd.f32 %v2511, %v2619
      %v2695 = vadd.f32 %v2512, %v2669
      %v2696 = vadd.f32 %v2513, %v2622
      %v2697 = vadd.f32 %v2514, %v2672
      %v2698 = vadd.f32 %v2515, %v2625
      %v2699 = vadd.f32 %v2516, %v2675
      %v2700 = vadd.f32 %v2517, %v2628
      %v2701 = vadd.f32 %v2518, %v2678
      %v2702 = vld [vmem:[#allocation2 + $0xa] sm:$0xff]
      %v2703 = vld [vmem:[#allocation2 + $0x12] sm:$0xff]
      %v2704 = vld [vmem:[#allocation2 + $0x1a] sm:$0xff]
      %v2705 = vld [vmem:[#allocation2 + $0x22] sm:$0xff]
      %v2706 = vld [vmem:[#allocation2 + $0x2a] sm:$0xff]
      %v2707 = vld [vmem:[#allocation2 + $0x32] sm:$0xff]
      %v2708 = vld [vmem:[#allocation2 + $0x3a] sm:$0xff]
      %v2709 = vld [vmem:[#allocation2 + $0x42] sm:$0xff]
      %v2710 = vld [vmem:[#allocation2 + $0x4a] sm:$0xff]
      %v2711 = vld [vmem:[#allocation2 + $0x52] sm:$0xff]
      %v2712 = vld [vmem:[#allocation2 + $0x5a] sm:$0x1]
      %s2713 = scalar_lea.vmem %s4, 512
      %v2714 = vld [vmem:[%s2713] sm:$0xff]
      %v2715 = vld [vmem:[%s2713 + $0x8] sm:$0xff]
      %v2716 = vld [vmem:[%s2713 + $0x10] sm:$0xff]
      %v2717 = vld [vmem:[%s2713 + $0x18] sm:$0xff]
      %v2718 = vld [vmem:[%s2713 + $0x20] sm:$0xff]
      %v2719 = vld [vmem:[%s2713 + $0x28] sm:$0xff]
      %v2720 = vld [vmem:[%s2713 + $0x30] sm:$0xff]
      %v2721 = vld [vmem:[%s2713 + $0x38] sm:$0xff]
      %v2722 = vld [vmem:[%s2713 + $0x40] sm:$0xff]
      %v2723 = vld [vmem:[%s2713 + $0x48] sm:$0xff]
      %v2724 = vld [vmem:[%s2713 + $0x50] sm:$0xff]
      %v2725 = vld [vmem:[%s2713 + $0x58] sm:$0xff]
      %v2726 = vld [vmem:[%s2713 + $0x60] sm:$0xff]
      %v2727 = vld [vmem:[%s2713 + $0x68] sm:$0xff]
      %v2728 = vld [vmem:[%s2713 + $0x70] sm:$0xff]
      %v2729 = vld [vmem:[%s2713 + $0x78] sm:$0xff]
      %v2731 = vsel %vm1387, %v2702, 0
      %v2734 = vsel %vm1387, %v2703, 0
      %v2737 = vsel %vm1387, %v2704, 0
      %v2740 = vsel %vm1387, %v2705, 0
      %v2743 = vsel %vm1387, %v2706, 0
      %v2746 = vsel %vm1387, %v2707, 0
      %v2749 = vsel %vm1387, %v2708, 0
      %v2752 = vsel %vm1387, %v2709, 0
      %v2755 = vsel %vm1387, %v2710, 0
      %v2758 = vsel %vm1387, %v2711, 0
      %v2761 = vsel %vm1387, %v2712, 0
      %2763 = vmatpush.msra.mxu0 0.0
      %2764 = vmatpush.msra.mxu0 0.0
      %2765 = vmatpush.msra.mxu0 0.0
      %2766 = vmatpush.msra.mxu0 0.0
      %2767 = vmatpush.msra.mxu0 0.0
      %2768 = vmatpush.msra.mxu0 0.0
      %2769 = vmatpush.msra.mxu0 0.0
      %2770 = vmatpush.msra.mxu0 0.0
      %2771 = vmatpush.msra.mxu0 %v2728
      %2772 = vmatpush.msra.mxu0 %v2726
      %2773 = vmatpush.msra.mxu0 %v2724
      %2774 = vmatpush.msra.mxu0 %v2722
      %2775 = vmatpush.msra.mxu0 %v2720
      %2776 = vmatpush.msra.mxu0 %v2718
      %2777 = vmatpush.msra.mxu0 %v2716
      %2778 = vmatpush.msra.mxu0 %v2714
      %2779 = vmatmul.f32.gmra.mxu0 %v2731
      %v2780 = vpop.f32.mrf.mxu0
      %v2781 = vadd.f32 0.0, %v2780
      %2782 = vmatmul.f32.gmra.mxu0 %v2734
      %v2783 = vpop.f32.mrf.mxu0
      %v2784 = vadd.f32 0.0, %v2783
      %2785 = vmatmul.f32.gmra.mxu0 %v2737
      %v2786 = vpop.f32.mrf.mxu0
      %v2787 = vadd.f32 0.0, %v2786
      %2788 = vmatmul.f32.gmra.mxu0 %v2740
      %v2789 = vpop.f32.mrf.mxu0
      %v2790 = vadd.f32 0.0, %v2789
      %2791 = vmatmul.f32.gmra.mxu0 %v2743
      %v2792 = vpop.f32.mrf.mxu0
      %v2793 = vadd.f32 0.0, %v2792
      %2794 = vmatmul.f32.gmra.mxu0 %v2746
      %v2795 = vpop.f32.mrf.mxu0
      %v2796 = vadd.f32 0.0, %v2795
      %2797 = vmatmul.f32.gmra.mxu0 %v2749
      %v2798 = vpop.f32.mrf.mxu0
      %v2799 = vadd.f32 0.0, %v2798
      %2800 = vmatmul.f32.gmra.mxu0 %v2752
      %v2801 = vpop.f32.mrf.mxu0
      %v2802 = vadd.f32 0.0, %v2801
      %2803 = vmatmul.f32.gmra.mxu0 %v2755
      %v2804 = vpop.f32.mrf.mxu0
      %v2805 = vadd.f32 0.0, %v2804
      %2806 = vmatmul.f32.gmra.mxu0 %v2758
      %v2807 = vpop.f32.mrf.mxu0
      %v2808 = vadd.f32 0.0, %v2807
      %2809 = vmatmul.f32.gmra.mxu0 %v2761
      %v2810 = vpop.f32.mrf.mxu0
      %v2811 = vadd.f32 0.0, %v2810
      %2812 = vdwg.mxu0
      %2813 = vmatpush.msra.mxu0 0.0
      %2814 = vmatpush.msra.mxu0 0.0
      %2815 = vmatpush.msra.mxu0 0.0
      %2816 = vmatpush.msra.mxu0 0.0
      %2817 = vmatpush.msra.mxu0 0.0
      %2818 = vmatpush.msra.mxu0 0.0
      %2819 = vmatpush.msra.mxu0 0.0
      %2820 = vmatpush.msra.mxu0 0.0
      %2821 = vmatpush.msra.mxu0 %v2729
      %2822 = vmatpush.msra.mxu0 %v2727
      %2823 = vmatpush.msra.mxu0 %v2725
      %2824 = vmatpush.msra.mxu0 %v2723
      %2825 = vmatpush.msra.mxu0 %v2721
      %2826 = vmatpush.msra.mxu0 %v2719
      %2827 = vmatpush.msra.mxu0 %v2717
      %2828 = vmatpush.msra.mxu0 %v2715
      %2829 = vmatmul.f32.gmra.mxu0 %v2731
      %v2830 = vpop.f32.mrf.mxu0
      %v2831 = vadd.f32 0.0, %v2830
      %2832 = vmatmul.f32.gmra.mxu0 %v2734
      %v2833 = vpop.f32.mrf.mxu0
      %v2834 = vadd.f32 0.0, %v2833
      %2835 = vmatmul.f32.gmra.mxu0 %v2737
      %v2836 = vpop.f32.mrf.mxu0
      %v2837 = vadd.f32 0.0, %v2836
      %2838 = vmatmul.f32.gmra.mxu0 %v2740
      %v2839 = vpop.f32.mrf.mxu0
      %v2840 = vadd.f32 0.0, %v2839
      %2841 = vmatmul.f32.gmra.mxu0 %v2743
      %v2842 = vpop.f32.mrf.mxu0
      %v2843 = vadd.f32 0.0, %v2842
      %2844 = vmatmul.f32.gmra.mxu0 %v2746
      %v2845 = vpop.f32.mrf.mxu0
      %v2846 = vadd.f32 0.0, %v2845
      %2847 = vmatmul.f32.gmra.mxu0 %v2749
      %v2848 = vpop.f32.mrf.mxu0
      %v2849 = vadd.f32 0.0, %v2848
      %2850 = vmatmul.f32.gmra.mxu0 %v2752
      %v2851 = vpop.f32.mrf.mxu0
      %v2852 = vadd.f32 0.0, %v2851
      %2853 = vmatmul.f32.gmra.mxu0 %v2755
      %v2854 = vpop.f32.mrf.mxu0
      %v2855 = vadd.f32 0.0, %v2854
      %2856 = vmatmul.f32.gmra.mxu0 %v2758
      %v2857 = vpop.f32.mrf.mxu0
      %v2858 = vadd.f32 0.0, %v2857
      %2859 = vmatmul.f32.gmra.mxu0 %v2761
      %v2860 = vpop.f32.mrf.mxu0
      %v2861 = vadd.f32 0.0, %v2860
      %2862 = vdwg.mxu0
      %v2863 = vadd.f32 %v2680, %v2781
      %v2864 = vadd.f32 %v2681, %v2831
      %v2865 = vadd.f32 %v2682, %v2784
      %v2866 = vadd.f32 %v2683, %v2834
      %v2867 = vadd.f32 %v2684, %v2787
      %v2868 = vadd.f32 %v2685, %v2837
      %v2869 = vadd.f32 %v2686, %v2790
      %v2870 = vadd.f32 %v2687, %v2840
      %v2871 = vadd.f32 %v2688, %v2793
      %v2872 = vadd.f32 %v2689, %v2843
      %v2873 = vadd.f32 %v2690, %v2796
      %v2874 = vadd.f32 %v2691, %v2846
      %v2875 = vadd.f32 %v2692, %v2799
      %v2876 = vadd.f32 %v2693, %v2849
      %v2877 = vadd.f32 %v2694, %v2802
      %v2878 = vadd.f32 %v2695, %v2852
      %v2879 = vadd.f32 %v2696, %v2805
      %v2880 = vadd.f32 %v2697, %v2855
      %v2881 = vadd.f32 %v2698, %v2808
      %v2882 = vadd.f32 %v2699, %v2858
      %v2883 = vadd.f32 %v2700, %v2811
      %v2884 = vadd.f32 %v2701, %v2861
      %v2885 = vld [vmem:[#allocation2 + $0xb] sm:$0xff]
      %v2886 = vld [vmem:[#allocation2 + $0x13] sm:$0xff]
      %v2887 = vld [vmem:[#allocation2 + $0x1b] sm:$0xff]
      %v2888 = vld [vmem:[#allocation2 + $0x23] sm:$0xff]
      %v2889 = vld [vmem:[#allocation2 + $0x2b] sm:$0xff]
      %v2890 = vld [vmem:[#allocation2 + $0x33] sm:$0xff]
      %v2891 = vld [vmem:[#allocation2 + $0x3b] sm:$0xff]
      %v2892 = vld [vmem:[#allocation2 + $0x43] sm:$0xff]
      %v2893 = vld [vmem:[#allocation2 + $0x4b] sm:$0xff]
      %v2894 = vld [vmem:[#allocation2 + $0x53] sm:$0xff]
      %v2895 = vld [vmem:[#allocation2 + $0x5b] sm:$0x1]
      %s2896 = scalar_lea.vmem %s4, 640
      %v2897 = vld [vmem:[%s2896] sm:$0xff]
      %v2898 = vld [vmem:[%s2896 + $0x8] sm:$0xff]
      %v2899 = vld [vmem:[%s2896 + $0x10] sm:$0xff]
      %v2900 = vld [vmem:[%s2896 + $0x18] sm:$0xff]
      %v2901 = vld [vmem:[%s2896 + $0x20] sm:$0xff]
      %v2902 = vld [vmem:[%s2896 + $0x28] sm:$0xff]
      %v2903 = vld [vmem:[%s2896 + $0x30] sm:$0xff]
      %v2904 = vld [vmem:[%s2896 + $0x38] sm:$0xff]
      %v2905 = vld [vmem:[%s2896 + $0x40] sm:$0xff]
      %v2906 = vld [vmem:[%s2896 + $0x48] sm:$0xff]
      %v2907 = vld [vmem:[%s2896 + $0x50] sm:$0xff]
      %v2908 = vld [vmem:[%s2896 + $0x58] sm:$0xff]
      %v2909 = vld [vmem:[%s2896 + $0x60] sm:$0xff]
      %v2910 = vld [vmem:[%s2896 + $0x68] sm:$0xff]
      %v2911 = vld [vmem:[%s2896 + $0x70] sm:$0xff]
      %v2912 = vld [vmem:[%s2896 + $0x78] sm:$0xff]
      %v2914 = vsel %vm1387, %v2885, 0
      %v2917 = vsel %vm1387, %v2886, 0
      %v2920 = vsel %vm1387, %v2887, 0
      %v2923 = vsel %vm1387, %v2888, 0
      %v2926 = vsel %vm1387, %v2889, 0
      %v2929 = vsel %vm1387, %v2890, 0
      %v2932 = vsel %vm1387, %v2891, 0
      %v2935 = vsel %vm1387, %v2892, 0
      %v2938 = vsel %vm1387, %v2893, 0
      %v2941 = vsel %vm1387, %v2894, 0
      %v2944 = vsel %vm1387, %v2895, 0
      %2946 = vmatpush.msra.mxu0 0.0
      %2947 = vmatpush.msra.mxu0 0.0
      %2948 = vmatpush.msra.mxu0 0.0
      %2949 = vmatpush.msra.mxu0 0.0
      %2950 = vmatpush.msra.mxu0 0.0
      %2951 = vmatpush.msra.mxu0 0.0
      %2952 = vmatpush.msra.mxu0 0.0
      %2953 = vmatpush.msra.mxu0 0.0
      %2954 = vmatpush.msra.mxu0 %v2911
      %2955 = vmatpush.msra.mxu0 %v2909
      %2956 = vmatpush.msra.mxu0 %v2907
      %2957 = vmatpush.msra.mxu0 %v2905
      %2958 = vmatpush.msra.mxu0 %v2903
      %2959 = vmatpush.msra.mxu0 %v2901
      %2960 = vmatpush.msra.mxu0 %v2899
      %2961 = vmatpush.msra.mxu0 %v2897
      %2962 = vmatmul.f32.gmra.mxu0 %v2914
      %v2963 = vpop.f32.mrf.mxu0
      %v2964 = vadd.f32 0.0, %v2963
      %2965 = vmatmul.f32.gmra.mxu0 %v2917
      %v2966 = vpop.f32.mrf.mxu0
      %v2967 = vadd.f32 0.0, %v2966
      %2968 = vmatmul.f32.gmra.mxu0 %v2920
      %v2969 = vpop.f32.mrf.mxu0
      %v2970 = vadd.f32 0.0, %v2969
      %2971 = vmatmul.f32.gmra.mxu0 %v2923
      %v2972 = vpop.f32.mrf.mxu0
      %v2973 = vadd.f32 0.0, %v2972
      %2974 = vmatmul.f32.gmra.mxu0 %v2926
      %v2975 = vpop.f32.mrf.mxu0
      %v2976 = vadd.f32 0.0, %v2975
      %2977 = vmatmul.f32.gmra.mxu0 %v2929
      %v2978 = vpop.f32.mrf.mxu0
      %v2979 = vadd.f32 0.0, %v2978
      %2980 = vmatmul.f32.gmra.mxu0 %v2932
      %v2981 = vpop.f32.mrf.mxu0
      %v2982 = vadd.f32 0.0, %v2981
      %2983 = vmatmul.f32.gmra.mxu0 %v2935
      %v2984 = vpop.f32.mrf.mxu0
      %v2985 = vadd.f32 0.0, %v2984
      %2986 = vmatmul.f32.gmra.mxu0 %v2938
      %v2987 = vpop.f32.mrf.mxu0
      %v2988 = vadd.f32 0.0, %v2987
      %2989 = vmatmul.f32.gmra.mxu0 %v2941
      %v2990 = vpop.f32.mrf.mxu0
      %v2991 = vadd.f32 0.0, %v2990
      %2992 = vmatmul.f32.gmra.mxu0 %v2944
      %v2993 = vpop.f32.mrf.mxu0
      %v2994 = vadd.f32 0.0, %v2993
      %2995 = vdwg.mxu0
      %2996 = vmatpush.msra.mxu0 0.0
      %2997 = vmatpush.msra.mxu0 0.0
      %2998 = vmatpush.msra.mxu0 0.0
      %2999 = vmatpush.msra.mxu0 0.0
      %3000 = vmatpush.msra.mxu0 0.0
      %3001 = vmatpush.msra.mxu0 0.0
      %3002 = vmatpush.msra.mxu0 0.0
      %3003 = vmatpush.msra.mxu0 0.0
      %3004 = vmatpush.msra.mxu0 %v2912
      %3005 = vmatpush.msra.mxu0 %v2910
      %3006 = vmatpush.msra.mxu0 %v2908
      %3007 = vmatpush.msra.mxu0 %v2906
      %3008 = vmatpush.msra.mxu0 %v2904
      %3009 = vmatpush.msra.mxu0 %v2902
      %3010 = vmatpush.msra.mxu0 %v2900
      %3011 = vmatpush.msra.mxu0 %v2898
      %3012 = vmatmul.f32.gmra.mxu0 %v2914
      %v3013 = vpop.f32.mrf.mxu0
      %v3014 = vadd.f32 0.0, %v3013
      %3015 = vmatmul.f32.gmra.mxu0 %v2917
      %v3016 = vpop.f32.mrf.mxu0
      %v3017 = vadd.f32 0.0, %v3016
      %3018 = vmatmul.f32.gmra.mxu0 %v2920
      %v3019 = vpop.f32.mrf.mxu0
      %v3020 = vadd.f32 0.0, %v3019
      %3021 = vmatmul.f32.gmra.mxu0 %v2923
      %v3022 = vpop.f32.mrf.mxu0
      %v3023 = vadd.f32 0.0, %v3022
      %3024 = vmatmul.f32.gmra.mxu0 %v2926
      %v3025 = vpop.f32.mrf.mxu0
      %v3026 = vadd.f32 0.0, %v3025
      %3027 = vmatmul.f32.gmra.mxu0 %v2929
      %v3028 = vpop.f32.mrf.mxu0
      %v3029 = vadd.f32 0.0, %v3028
      %3030 = vmatmul.f32.gmra.mxu0 %v2932
      %v3031 = vpop.f32.mrf.mxu0
      %v3032 = vadd.f32 0.0, %v3031
      %3033 = vmatmul.f32.gmra.mxu0 %v2935
      %v3034 = vpop.f32.mrf.mxu0
      %v3035 = vadd.f32 0.0, %v3034
      %3036 = vmatmul.f32.gmra.mxu0 %v2938
      %v3037 = vpop.f32.mrf.mxu0
      %v3038 = vadd.f32 0.0, %v3037
      %3039 = vmatmul.f32.gmra.mxu0 %v2941
      %v3040 = vpop.f32.mrf.mxu0
      %v3041 = vadd.f32 0.0, %v3040
      %3042 = vmatmul.f32.gmra.mxu0 %v2944
      %v3043 = vpop.f32.mrf.mxu0
      %v3044 = vadd.f32 0.0, %v3043
      %3045 = vdwg.mxu0
      %v3046 = vadd.f32 %v2863, %v2964
      %v3047 = vadd.f32 %v2864, %v3014
      %v3048 = vadd.f32 %v2865, %v2967
      %v3049 = vadd.f32 %v2866, %v3017
      %v3050 = vadd.f32 %v2867, %v2970
      %v3051 = vadd.f32 %v2868, %v3020
      %v3052 = vadd.f32 %v2869, %v2973
      %v3053 = vadd.f32 %v2870, %v3023
      %v3054 = vadd.f32 %v2871, %v2976
      %v3055 = vadd.f32 %v2872, %v3026
      %v3056 = vadd.f32 %v2873, %v2979
      %v3057 = vadd.f32 %v2874, %v3029
      %v3058 = vadd.f32 %v2875, %v2982
      %v3059 = vadd.f32 %v2876, %v3032
      %v3060 = vadd.f32 %v2877, %v2985
      %v3061 = vadd.f32 %v2878, %v3035
      %v3062 = vadd.f32 %v2879, %v2988
      %v3063 = vadd.f32 %v2880, %v3038
      %v3064 = vadd.f32 %v2881, %v2991
      %v3065 = vadd.f32 %v2882, %v3041
      %v3066 = vadd.f32 %v2883, %v2994
      %v3067 = vadd.f32 %v2884, %v3044
      %v3068 = vld [vmem:[#allocation2 + $0x12] sm:$0xff]
      %v3069 = vld [vmem:[#allocation2 + $0x1a] sm:$0xff]
      %v3070 = vld [vmem:[#allocation2 + $0x22] sm:$0xff]
      %v3071 = vld [vmem:[#allocation2 + $0x2a] sm:$0xff]
      %v3072 = vld [vmem:[#allocation2 + $0x32] sm:$0xff]
      %v3073 = vld [vmem:[#allocation2 + $0x3a] sm:$0xff]
      %v3074 = vld [vmem:[#allocation2 + $0x42] sm:$0xff]
      %v3075 = vld [vmem:[#allocation2 + $0x4a] sm:$0xff]
      %v3076 = vld [vmem:[#allocation2 + $0x52] sm:$0xff]
      %v3077 = vld [vmem:[#allocation2 + $0x5a] sm:$0xff]
      %v3078 = vld [vmem:[#allocation2 + $0x62] sm:$0x1]
      %s3079 = scalar_lea.vmem %s4, 768
      %v3080 = vld [vmem:[%s3079] sm:$0xff]
      %v3081 = vld [vmem:[%s3079 + $0x8] sm:$0xff]
      %v3082 = vld [vmem:[%s3079 + $0x10] sm:$0xff]
      %v3083 = vld [vmem:[%s3079 + $0x18] sm:$0xff]
      %v3084 = vld [vmem:[%s3079 + $0x20] sm:$0xff]
      %v3085 = vld [vmem:[%s3079 + $0x28] sm:$0xff]
      %v3086 = vld [vmem:[%s3079 + $0x30] sm:$0xff]
      %v3087 = vld [vmem:[%s3079 + $0x38] sm:$0xff]
      %v3088 = vld [vmem:[%s3079 + $0x40] sm:$0xff]
      %v3089 = vld [vmem:[%s3079 + $0x48] sm:$0xff]
      %v3090 = vld [vmem:[%s3079 + $0x50] sm:$0xff]
      %v3091 = vld [vmem:[%s3079 + $0x58] sm:$0xff]
      %v3092 = vld [vmem:[%s3079 + $0x60] sm:$0xff]
      %v3093 = vld [vmem:[%s3079 + $0x68] sm:$0xff]
      %v3094 = vld [vmem:[%s3079 + $0x70] sm:$0xff]
      %v3095 = vld [vmem:[%s3079 + $0x78] sm:$0xff]
      %v3097 = vsel %vm1387, %v3068, 0
      %v3100 = vsel %vm1387, %v3069, 0
      %v3103 = vsel %vm1387, %v3070, 0
      %v3106 = vsel %vm1387, %v3071, 0
      %v3109 = vsel %vm1387, %v3072, 0
      %v3112 = vsel %vm1387, %v3073, 0
      %v3115 = vsel %vm1387, %v3074, 0
      %v3118 = vsel %vm1387, %v3075, 0
      %v3121 = vsel %vm1387, %v3076, 0
      %v3124 = vsel %vm1387, %v3077, 0
      %v3127 = vsel %vm1387, %v3078, 0
      %3129 = vmatpush.msra.mxu0 0.0
      %3130 = vmatpush.msra.mxu0 0.0
      %3131 = vmatpush.msra.mxu0 0.0
      %3132 = vmatpush.msra.mxu0 0.0
      %3133 = vmatpush.msra.mxu0 0.0
      %3134 = vmatpush.msra.mxu0 0.0
      %3135 = vmatpush.msra.mxu0 0.0
      %3136 = vmatpush.msra.mxu0 0.0
      %3137 = vmatpush.msra.mxu0 %v3094
      %3138 = vmatpush.msra.mxu0 %v3092
      %3139 = vmatpush.msra.mxu0 %v3090
      %3140 = vmatpush.msra.mxu0 %v3088
      %3141 = vmatpush.msra.mxu0 %v3086
      %3142 = vmatpush.msra.mxu0 %v3084
      %3143 = vmatpush.msra.mxu0 %v3082
      %3144 = vmatpush.msra.mxu0 %v3080
      %3145 = vmatmul.f32.gmra.mxu0 %v3097
      %v3146 = vpop.f32.mrf.mxu0
      %v3147 = vadd.f32 0.0, %v3146
      %3148 = vmatmul.f32.gmra.mxu0 %v3100
      %v3149 = vpop.f32.mrf.mxu0
      %v3150 = vadd.f32 0.0, %v3149
      %3151 = vmatmul.f32.gmra.mxu0 %v3103
      %v3152 = vpop.f32.mrf.mxu0
      %v3153 = vadd.f32 0.0, %v3152
      %3154 = vmatmul.f32.gmra.mxu0 %v3106
      %v3155 = vpop.f32.mrf.mxu0
      %v3156 = vadd.f32 0.0, %v3155
      %3157 = vmatmul.f32.gmra.mxu0 %v3109
      %v3158 = vpop.f32.mrf.mxu0
      %v3159 = vadd.f32 0.0, %v3158
      %3160 = vmatmul.f32.gmra.mxu0 %v3112
      %v3161 = vpop.f32.mrf.mxu0
      %v3162 = vadd.f32 0.0, %v3161
      %3163 = vmatmul.f32.gmra.mxu0 %v3115
      %v3164 = vpop.f32.mrf.mxu0
      %v3165 = vadd.f32 0.0, %v3164
      %3166 = vmatmul.f32.gmra.mxu0 %v3118
      %v3167 = vpop.f32.mrf.mxu0
      %v3168 = vadd.f32 0.0, %v3167
      %3169 = vmatmul.f32.gmra.mxu0 %v3121
      %v3170 = vpop.f32.mrf.mxu0
      %v3171 = vadd.f32 0.0, %v3170
      %3172 = vmatmul.f32.gmra.mxu0 %v3124
      %v3173 = vpop.f32.mrf.mxu0
      %v3174 = vadd.f32 0.0, %v3173
      %3175 = vmatmul.f32.gmra.mxu0 %v3127
      %v3176 = vpop.f32.mrf.mxu0
      %v3177 = vadd.f32 0.0, %v3176
      %3178 = vdwg.mxu0
      %3179 = vmatpush.msra.mxu0 0.0
      %3180 = vmatpush.msra.mxu0 0.0
      %3181 = vmatpush.msra.mxu0 0.0
      %3182 = vmatpush.msra.mxu0 0.0
      %3183 = vmatpush.msra.mxu0 0.0
      %3184 = vmatpush.msra.mxu0 0.0
      %3185 = vmatpush.msra.mxu0 0.0
      %3186 = vmatpush.msra.mxu0 0.0
      %3187 = vmatpush.msra.mxu0 %v3095
      %3188 = vmatpush.msra.mxu0 %v3093
      %3189 = vmatpush.msra.mxu0 %v3091
      %3190 = vmatpush.msra.mxu0 %v3089
      %3191 = vmatpush.msra.mxu0 %v3087
      %3192 = vmatpush.msra.mxu0 %v3085
      %3193 = vmatpush.msra.mxu0 %v3083
      %3194 = vmatpush.msra.mxu0 %v3081
      %3195 = vmatmul.f32.gmra.mxu0 %v3097
      %v3196 = vpop.f32.mrf.mxu0
      %v3197 = vadd.f32 0.0, %v3196
      %3198 = vmatmul.f32.gmra.mxu0 %v3100
      %v3199 = vpop.f32.mrf.mxu0
      %v3200 = vadd.f32 0.0, %v3199
      %3201 = vmatmul.f32.gmra.mxu0 %v3103
      %v3202 = vpop.f32.mrf.mxu0
      %v3203 = vadd.f32 0.0, %v3202
      %3204 = vmatmul.f32.gmra.mxu0 %v3106
      %v3205 = vpop.f32.mrf.mxu0
      %v3206 = vadd.f32 0.0, %v3205
      %3207 = vmatmul.f32.gmra.mxu0 %v3109
      %v3208 = vpop.f32.mrf.mxu0
      %v3209 = vadd.f32 0.0, %v3208
      %3210 = vmatmul.f32.gmra.mxu0 %v3112
      %v3211 = vpop.f32.mrf.mxu0
      %v3212 = vadd.f32 0.0, %v3211
      %3213 = vmatmul.f32.gmra.mxu0 %v3115
      %v3214 = vpop.f32.mrf.mxu0
      %v3215 = vadd.f32 0.0, %v3214
      %3216 = vmatmul.f32.gmra.mxu0 %v3118
      %v3217 = vpop.f32.mrf.mxu0
      %v3218 = vadd.f32 0.0, %v3217
      %3219 = vmatmul.f32.gmra.mxu0 %v3121
      %v3220 = vpop.f32.mrf.mxu0
      %v3221 = vadd.f32 0.0, %v3220
      %3222 = vmatmul.f32.gmra.mxu0 %v3124
      %v3223 = vpop.f32.mrf.mxu0
      %v3224 = vadd.f32 0.0, %v3223
      %3225 = vmatmul.f32.gmra.mxu0 %v3127
      %v3226 = vpop.f32.mrf.mxu0
      %v3227 = vadd.f32 0.0, %v3226
      %3228 = vdwg.mxu0
      %v3229 = vadd.f32 %v3046, %v3147
      %v3230 = vadd.f32 %v3047, %v3197
      %v3231 = vadd.f32 %v3048, %v3150
      %v3232 = vadd.f32 %v3049, %v3200
      %v3233 = vadd.f32 %v3050, %v3153
      %v3234 = vadd.f32 %v3051, %v3203
      %v3235 = vadd.f32 %v3052, %v3156
      %v3236 = vadd.f32 %v3053, %v3206
      %v3237 = vadd.f32 %v3054, %v3159
      %v3238 = vadd.f32 %v3055, %v3209
      %v3239 = vadd.f32 %v3056, %v3162
      %v3240 = vadd.f32 %v3057, %v3212
      %v3241 = vadd.f32 %v3058, %v3165
      %v3242 = vadd.f32 %v3059, %v3215
      %v3243 = vadd.f32 %v3060, %v3168
      %v3244 = vadd.f32 %v3061, %v3218
      %v3245 = vadd.f32 %v3062, %v3171
      %v3246 = vadd.f32 %v3063, %v3221
      %v3247 = vadd.f32 %v3064, %v3174
      %v3248 = vadd.f32 %v3065, %v3224
      %v3249 = vadd.f32 %v3066, %v3177
      %v3250 = vadd.f32 %v3067, %v3227
      %v3251 = vld [vmem:[#allocation2 + $0x13] sm:$0xff]
      %v3252 = vld [vmem:[#allocation2 + $0x1b] sm:$0xff]
      %v3253 = vld [vmem:[#allocation2 + $0x23] sm:$0xff]
      %v3254 = vld [vmem:[#allocation2 + $0x2b] sm:$0xff]
      %v3255 = vld [vmem:[#allocation2 + $0x33] sm:$0xff]
      %v3256 = vld [vmem:[#allocation2 + $0x3b] sm:$0xff]
      %v3257 = vld [vmem:[#allocation2 + $0x43] sm:$0xff]
      %v3258 = vld [vmem:[#allocation2 + $0x4b] sm:$0xff]
      %v3259 = vld [vmem:[#allocation2 + $0x53] sm:$0xff]
      %v3260 = vld [vmem:[#allocation2 + $0x5b] sm:$0xff]
      %v3261 = vld [vmem:[#allocation2 + $0x63] sm:$0x1]
      %s3262 = scalar_lea.vmem %s4, 896
      %v3263 = vld [vmem:[%s3262] sm:$0xff]
      %v3264 = vld [vmem:[%s3262 + $0x8] sm:$0xff]
      %v3265 = vld [vmem:[%s3262 + $0x10] sm:$0xff]
      %v3266 = vld [vmem:[%s3262 + $0x18] sm:$0xff]
      %v3267 = vld [vmem:[%s3262 + $0x20] sm:$0xff]
      %v3268 = vld [vmem:[%s3262 + $0x28] sm:$0xff]
      %v3269 = vld [vmem:[%s3262 + $0x30] sm:$0xff]
      %v3270 = vld [vmem:[%s3262 + $0x38] sm:$0xff]
      %v3271 = vld [vmem:[%s3262 + $0x40] sm:$0xff]
      %v3272 = vld [vmem:[%s3262 + $0x48] sm:$0xff]
      %v3273 = vld [vmem:[%s3262 + $0x50] sm:$0xff]
      %v3274 = vld [vmem:[%s3262 + $0x58] sm:$0xff]
      %v3275 = vld [vmem:[%s3262 + $0x60] sm:$0xff]
      %v3276 = vld [vmem:[%s3262 + $0x68] sm:$0xff]
      %v3277 = vld [vmem:[%s3262 + $0x70] sm:$0xff]
      %v3278 = vld [vmem:[%s3262 + $0x78] sm:$0xff]
      %v3280 = vsel %vm1387, %v3251, 0
      %v3283 = vsel %vm1387, %v3252, 0
      %v3286 = vsel %vm1387, %v3253, 0
      %v3289 = vsel %vm1387, %v3254, 0
      %v3292 = vsel %vm1387, %v3255, 0
      %v3295 = vsel %vm1387, %v3256, 0
      %v3298 = vsel %vm1387, %v3257, 0
      %v3301 = vsel %vm1387, %v3258, 0
      %v3304 = vsel %vm1387, %v3259, 0
      %v3307 = vsel %vm1387, %v3260, 0
      %v3310 = vsel %vm1387, %v3261, 0
      %3312 = vmatpush.msra.mxu0 0.0
      %3313 = vmatpush.msra.mxu0 0.0
      %3314 = vmatpush.msra.mxu0 0.0
      %3315 = vmatpush.msra.mxu0 0.0
      %3316 = vmatpush.msra.mxu0 0.0
      %3317 = vmatpush.msra.mxu0 0.0
      %3318 = vmatpush.msra.mxu0 0.0
      %3319 = vmatpush.msra.mxu0 0.0
      %3320 = vmatpush.msra.mxu0 %v3277
      %3321 = vmatpush.msra.mxu0 %v3275
      %3322 = vmatpush.msra.mxu0 %v3273
      %3323 = vmatpush.msra.mxu0 %v3271
      %3324 = vmatpush.msra.mxu0 %v3269
      %3325 = vmatpush.msra.mxu0 %v3267
      %3326 = vmatpush.msra.mxu0 %v3265
      %3327 = vmatpush.msra.mxu0 %v3263
      %3328 = vmatmul.f32.gmra.mxu0 %v3280
      %v3329 = vpop.f32.mrf.mxu0
      %v3330 = vadd.f32 0.0, %v3329
      %3331 = vmatmul.f32.gmra.mxu0 %v3283
      %v3332 = vpop.f32.mrf.mxu0
      %v3333 = vadd.f32 0.0, %v3332
      %3334 = vmatmul.f32.gmra.mxu0 %v3286
      %v3335 = vpop.f32.mrf.mxu0
      %v3336 = vadd.f32 0.0, %v3335
      %3337 = vmatmul.f32.gmra.mxu0 %v3289
      %v3338 = vpop.f32.mrf.mxu0
      %v3339 = vadd.f32 0.0, %v3338
      %3340 = vmatmul.f32.gmra.mxu0 %v3292
      %v3341 = vpop.f32.mrf.mxu0
      %v3342 = vadd.f32 0.0, %v3341
      %3343 = vmatmul.f32.gmra.mxu0 %v3295
      %v3344 = vpop.f32.mrf.mxu0
      %v3345 = vadd.f32 0.0, %v3344
      %3346 = vmatmul.f32.gmra.mxu0 %v3298
      %v3347 = vpop.f32.mrf.mxu0
      %v3348 = vadd.f32 0.0, %v3347
      %3349 = vmatmul.f32.gmra.mxu0 %v3301
      %v3350 = vpop.f32.mrf.mxu0
      %v3351 = vadd.f32 0.0, %v3350
      %3352 = vmatmul.f32.gmra.mxu0 %v3304
      %v3353 = vpop.f32.mrf.mxu0
      %v3354 = vadd.f32 0.0, %v3353
      %3355 = vmatmul.f32.gmra.mxu0 %v3307
      %v3356 = vpop.f32.mrf.mxu0
      %v3357 = vadd.f32 0.0, %v3356
      %3358 = vmatmul.f32.gmra.mxu0 %v3310
      %v3359 = vpop.f32.mrf.mxu0
      %v3360 = vadd.f32 0.0, %v3359
      %3361 = vdwg.mxu0
      %3362 = vmatpush.msra.mxu0 0.0
      %3363 = vmatpush.msra.mxu0 0.0
      %3364 = vmatpush.msra.mxu0 0.0
      %3365 = vmatpush.msra.mxu0 0.0
      %3366 = vmatpush.msra.mxu0 0.0
      %3367 = vmatpush.msra.mxu0 0.0
      %3368 = vmatpush.msra.mxu0 0.0
      %3369 = vmatpush.msra.mxu0 0.0
      %3370 = vmatpush.msra.mxu0 %v3278
      %3371 = vmatpush.msra.mxu0 %v3276
      %3372 = vmatpush.msra.mxu0 %v3274
      %3373 = vmatpush.msra.mxu0 %v3272
      %3374 = vmatpush.msra.mxu0 %v3270
      %3375 = vmatpush.msra.mxu0 %v3268
      %3376 = vmatpush.msra.mxu0 %v3266
      %3377 = vmatpush.msra.mxu0 %v3264
      %3378 = vmatmul.f32.gmra.mxu0 %v3280
      %v3379 = vpop.f32.mrf.mxu0
      %v3380 = vadd.f32 0.0, %v3379
      %3381 = vmatmul.f32.gmra.mxu0 %v3283
      %v3382 = vpop.f32.mrf.mxu0
      %v3383 = vadd.f32 0.0, %v3382
      %3384 = vmatmul.f32.gmra.mxu0 %v3286
      %v3385 = vpop.f32.mrf.mxu0
      %v3386 = vadd.f32 0.0, %v3385
      %3387 = vmatmul.f32.gmra.mxu0 %v3289
      %v3388 = vpop.f32.mrf.mxu0
      %v3389 = vadd.f32 0.0, %v3388
      %3390 = vmatmul.f32.gmra.mxu0 %v3292
      %v3391 = vpop.f32.mrf.mxu0
      %v3392 = vadd.f32 0.0, %v3391
      %3393 = vmatmul.f32.gmra.mxu0 %v3295
      %v3394 = vpop.f32.mrf.mxu0
      %v3395 = vadd.f32 0.0, %v3394
      %3396 = vmatmul.f32.gmra.mxu0 %v3298
      %v3397 = vpop.f32.mrf.mxu0
      %v3398 = vadd.f32 0.0, %v3397
      %3399 = vmatmul.f32.gmra.mxu0 %v3301
      %v3400 = vpop.f32.mrf.mxu0
      %v3401 = vadd.f32 0.0, %v3400
      %3402 = vmatmul.f32.gmra.mxu0 %v3304
      %v3403 = vpop.f32.mrf.mxu0
      %v3404 = vadd.f32 0.0, %v3403
      %3405 = vmatmul.f32.gmra.mxu0 %v3307
      %v3406 = vpop.f32.mrf.mxu0
      %v3407 = vadd.f32 0.0, %v3406
      %3408 = vmatmul.f32.gmra.mxu0 %v3310
      %v3409 = vpop.f32.mrf.mxu0
      %v3410 = vadd.f32 0.0, %v3409
      %3411 = vdwg.mxu0
      %v3412 = vadd.f32 %v3229, %v3330
      %v3413 = vadd.f32 %v3230, %v3380
      %v3414 = vadd.f32 %v3231, %v3333
      %v3415 = vadd.f32 %v3232, %v3383
      %v3416 = vadd.f32 %v3233, %v3336
      %v3417 = vadd.f32 %v3234, %v3386
      %v3418 = vadd.f32 %v3235, %v3339
      %v3419 = vadd.f32 %v3236, %v3389
      %v3420 = vadd.f32 %v3237, %v3342
      %v3421 = vadd.f32 %v3238, %v3392
      %v3422 = vadd.f32 %v3239, %v3345
      %v3423 = vadd.f32 %v3240, %v3395
      %v3424 = vadd.f32 %v3241, %v3348
      %v3425 = vadd.f32 %v3242, %v3398
      %v3426 = vadd.f32 %v3243, %v3351
      %v3427 = vadd.f32 %v3244, %v3401
      %v3428 = vadd.f32 %v3245, %v3354
      %v3429 = vadd.f32 %v3246, %v3404
      %v3430 = vadd.f32 %v3247, %v3357
      %v3431 = vadd.f32 %v3248, %v3407
      %v3432 = vadd.f32 %v3249, %v3360
      %v3433 = vadd.f32 %v3250, %v3410
      %v3434 = vld [vmem:[#allocation2 + $0x14] sm:$0xff]
      %v3435 = vld [vmem:[#allocation2 + $0x1c] sm:$0xff]
      %v3436 = vld [vmem:[#allocation2 + $0x24] sm:$0xff]
      %v3437 = vld [vmem:[#allocation2 + $0x2c] sm:$0xff]
      %v3438 = vld [vmem:[#allocation2 + $0x34] sm:$0xff]
      %v3439 = vld [vmem:[#allocation2 + $0x3c] sm:$0xff]
      %v3440 = vld [vmem:[#allocation2 + $0x44] sm:$0xff]
      %v3441 = vld [vmem:[#allocation2 + $0x4c] sm:$0xff]
      %v3442 = vld [vmem:[#allocation2 + $0x54] sm:$0xff]
      %v3443 = vld [vmem:[#allocation2 + $0x5c] sm:$0xff]
      %v3444 = vld [vmem:[#allocation2 + $0x64] sm:$0x1]
      %s3445 = scalar_lea.vmem %s4, 1024
      %v3446 = vld [vmem:[%s3445] sm:$0xff]
      %v3447 = vld [vmem:[%s3445 + $0x8] sm:$0xff]
      %v3448 = vld [vmem:[%s3445 + $0x10] sm:$0xff]
      %v3449 = vld [vmem:[%s3445 + $0x18] sm:$0xff]
      %v3450 = vld [vmem:[%s3445 + $0x20] sm:$0xff]
      %v3451 = vld [vmem:[%s3445 + $0x28] sm:$0xff]
      %v3452 = vld [vmem:[%s3445 + $0x30] sm:$0xff]
      %v3453 = vld [vmem:[%s3445 + $0x38] sm:$0xff]
      %v3454 = vld [vmem:[%s3445 + $0x40] sm:$0xff]
      %v3455 = vld [vmem:[%s3445 + $0x48] sm:$0xff]
      %v3456 = vld [vmem:[%s3445 + $0x50] sm:$0xff]
      %v3457 = vld [vmem:[%s3445 + $0x58] sm:$0xff]
      %v3458 = vld [vmem:[%s3445 + $0x60] sm:$0xff]
      %v3459 = vld [vmem:[%s3445 + $0x68] sm:$0xff]
      %v3460 = vld [vmem:[%s3445 + $0x70] sm:$0xff]
      %v3461 = vld [vmem:[%s3445 + $0x78] sm:$0xff]
      %v3463 = vsel %vm1387, %v3434, 0
      %v3466 = vsel %vm1387, %v3435, 0
      %v3469 = vsel %vm1387, %v3436, 0
      %v3472 = vsel %vm1387, %v3437, 0
      %v3475 = vsel %vm1387, %v3438, 0
      %v3478 = vsel %vm1387, %v3439, 0
      %v3481 = vsel %vm1387, %v3440, 0
      %v3484 = vsel %vm1387, %v3441, 0
      %v3487 = vsel %vm1387, %v3442, 0
      %v3490 = vsel %vm1387, %v3443, 0
      %v3493 = vsel %vm1387, %v3444, 0
      %3495 = vmatpush.msra.mxu0 0.0
      %3496 = vmatpush.msra.mxu0 0.0
      %3497 = vmatpush.msra.mxu0 0.0
      %3498 = vmatpush.msra.mxu0 0.0
      %3499 = vmatpush.msra.mxu0 0.0
      %3500 = vmatpush.msra.mxu0 0.0
      %3501 = vmatpush.msra.mxu0 0.0
      %3502 = vmatpush.msra.mxu0 0.0
      %3503 = vmatpush.msra.mxu0 %v3460
      %3504 = vmatpush.msra.mxu0 %v3458
      %3505 = vmatpush.msra.mxu0 %v3456
      %3506 = vmatpush.msra.mxu0 %v3454
      %3507 = vmatpush.msra.mxu0 %v3452
      %3508 = vmatpush.msra.mxu0 %v3450
      %3509 = vmatpush.msra.mxu0 %v3448
      %3510 = vmatpush.msra.mxu0 %v3446
      %3511 = vmatmul.f32.gmra.mxu0 %v3463
      %v3512 = vpop.f32.mrf.mxu0
      %v3513 = vadd.f32 0.0, %v3512
      %3514 = vmatmul.f32.gmra.mxu0 %v3466
      %v3515 = vpop.f32.mrf.mxu0
      %v3516 = vadd.f32 0.0, %v3515
      %3517 = vmatmul.f32.gmra.mxu0 %v3469
      %v3518 = vpop.f32.mrf.mxu0
      %v3519 = vadd.f32 0.0, %v3518
      %3520 = vmatmul.f32.gmra.mxu0 %v3472
      %v3521 = vpop.f32.mrf.mxu0
      %v3522 = vadd.f32 0.0, %v3521
      %3523 = vmatmul.f32.gmra.mxu0 %v3475
      %v3524 = vpop.f32.mrf.mxu0
      %v3525 = vadd.f32 0.0, %v3524
      %3526 = vmatmul.f32.gmra.mxu0 %v3478
      %v3527 = vpop.f32.mrf.mxu0
      %v3528 = vadd.f32 0.0, %v3527
      %3529 = vmatmul.f32.gmra.mxu0 %v3481
      %v3530 = vpop.f32.mrf.mxu0
      %v3531 = vadd.f32 0.0, %v3530
      %3532 = vmatmul.f32.gmra.mxu0 %v3484
      %v3533 = vpop.f32.mrf.mxu0
      %v3534 = vadd.f32 0.0, %v3533
      %3535 = vmatmul.f32.gmra.mxu0 %v3487
      %v3536 = vpop.f32.mrf.mxu0
      %v3537 = vadd.f32 0.0, %v3536
      %3538 = vmatmul.f32.gmra.mxu0 %v3490
      %v3539 = vpop.f32.mrf.mxu0
      %v3540 = vadd.f32 0.0, %v3539
      %3541 = vmatmul.f32.gmra.mxu0 %v3493
      %v3542 = vpop.f32.mrf.mxu0
      %v3543 = vadd.f32 0.0, %v3542
      %3544 = vdwg.mxu0
      %3545 = vmatpush.msra.mxu0 0.0
      %3546 = vmatpush.msra.mxu0 0.0
      %3547 = vmatpush.msra.mxu0 0.0
      %3548 = vmatpush.msra.mxu0 0.0
      %3549 = vmatpush.msra.mxu0 0.0
      %3550 = vmatpush.msra.mxu0 0.0
      %3551 = vmatpush.msra.mxu0 0.0
      %3552 = vmatpush.msra.mxu0 0.0
      %3553 = vmatpush.msra.mxu0 %v3461
      %3554 = vmatpush.msra.mxu0 %v3459
      %3555 = vmatpush.msra.mxu0 %v3457
      %3556 = vmatpush.msra.mxu0 %v3455
      %3557 = vmatpush.msra.mxu0 %v3453
      %3558 = vmatpush.msra.mxu0 %v3451
      %3559 = vmatpush.msra.mxu0 %v3449
      %3560 = vmatpush.msra.mxu0 %v3447
      %3561 = vmatmul.f32.gmra.mxu0 %v3463
      %v3562 = vpop.f32.mrf.mxu0
      %v3563 = vadd.f32 0.0, %v3562
      %3564 = vmatmul.f32.gmra.mxu0 %v3466
      %v3565 = vpop.f32.mrf.mxu0
      %v3566 = vadd.f32 0.0, %v3565
      %3567 = vmatmul.f32.gmra.mxu0 %v3469
      %v3568 = vpop.f32.mrf.mxu0
      %v3569 = vadd.f32 0.0, %v3568
      %3570 = vmatmul.f32.gmra.mxu0 %v3472
      %v3571 = vpop.f32.mrf.mxu0
      %v3572 = vadd.f32 0.0, %v3571
      %3573 = vmatmul.f32.gmra.mxu0 %v3475
      %v3574 = vpop.f32.mrf.mxu0
      %v3575 = vadd.f32 0.0, %v3574
      %3576 = vmatmul.f32.gmra.mxu0 %v3478
      %v3577 = vpop.f32.mrf.mxu0
      %v3578 = vadd.f32 0.0, %v3577
      %3579 = vmatmul.f32.gmra.mxu0 %v3481
      %v3580 = vpop.f32.mrf.mxu0
      %v3581 = vadd.f32 0.0, %v3580
      %3582 = vmatmul.f32.gmra.mxu0 %v3484
      %v3583 = vpop.f32.mrf.mxu0
      %v3584 = vadd.f32 0.0, %v3583
      %3585 = vmatmul.f32.gmra.mxu0 %v3487
      %v3586 = vpop.f32.mrf.mxu0
      %v3587 = vadd.f32 0.0, %v3586
      %3588 = vmatmul.f32.gmra.mxu0 %v3490
      %v3589 = vpop.f32.mrf.mxu0
      %v3590 = vadd.f32 0.0, %v3589
      %3591 = vmatmul.f32.gmra.mxu0 %v3493
      %v3592 = vpop.f32.mrf.mxu0
      %v3593 = vadd.f32 0.0, %v3592
      %3594 = vdwg.mxu0
      %v3595 = vadd.f32 %v3412, %v3513
      %v3596 = vadd.f32 %v3413, %v3563
      %v3597 = vadd.f32 %v3414, %v3516
      %v3598 = vadd.f32 %v3415, %v3566
      %v3599 = vadd.f32 %v3416, %v3519
      %v3600 = vadd.f32 %v3417, %v3569
      %v3601 = vadd.f32 %v3418, %v3522
      %v3602 = vadd.f32 %v3419, %v3572
      %v3603 = vadd.f32 %v3420, %v3525
      %v3604 = vadd.f32 %v3421, %v3575
      %v3605 = vadd.f32 %v3422, %v3528
      %v3606 = vadd.f32 %v3423, %v3578
      %v3607 = vadd.f32 %v3424, %v3531
      %v3608 = vadd.f32 %v3425, %v3581
      %v3609 = vadd.f32 %v3426, %v3534
      %v3610 = vadd.f32 %v3427, %v3584
      %v3611 = vadd.f32 %v3428, %v3537
      %v3612 = vadd.f32 %v3429, %v3587
      %v3613 = vadd.f32 %v3430, %v3540
      %v3614 = vadd.f32 %v3431, %v3590
      %v3615 = vadd.f32 %v3432, %v3543
      %v3616 = vadd.f32 %v3433, %v3593
      %v3617 = vmul.f32 %v3595, %v1324
      %v3618 = vmul.f32 %v3596, %v1324
      %v3619 = vmul.f32 %v3597, %v1329
      %v3620 = vmul.f32 %v3598, %v1329
      %v3621 = vmul.f32 %v3599, %v1334
      %v3622 = vmul.f32 %v3600, %v1334
      %v3623 = vmul.f32 %v3601, %v1339
      %v3624 = vmul.f32 %v3602, %v1339
      %v3625 = vmul.f32 %v3603, %v1344
      %v3626 = vmul.f32 %v3604, %v1344
      %v3627 = vmul.f32 %v3605, %v1349
      %v3628 = vmul.f32 %v3606, %v1349
      %v3629 = vmul.f32 %v3607, %v1354
      %v3630 = vmul.f32 %v3608, %v1354
      %v3631 = vmul.f32 %v3609, %v1359
      %v3632 = vmul.f32 %v3610, %v1359
      %v3633 = vmul.f32 %v3611, %v1364
      %v3634 = vmul.f32 %v3612, %v1364
      %v3635 = vmul.f32 %v3613, %v1369
      %v3636 = vmul.f32 %v3614, %v1369
      %v3637 = vmul.f32 %v3615, %v1374
      %v3638 = vmul.f32 %v3616, %v1374
      %v3639 = vadd.f32 %v3617, %v3618
      %v3640 = vadd.f32 %v3639, %v3619
      %v3641 = vadd.f32 %v3640, %v3620
      %v3642 = vadd.f32 %v3641, %v3621
      %v3643 = vadd.f32 %v3642, %v3622
      %v3644 = vadd.f32 %v3643, %v3623
      %v3645 = vadd.f32 %v3644, %v3624
      %v3646 = vadd.f32 %v3645, %v3625
      %v3647 = vadd.f32 %v3646, %v3626
      %v3648 = vadd.f32 %v3647, %v3627
      %v3649 = vadd.f32 %v3648, %v3628
      %v3650 = vadd.f32 %v3649, %v3629
      %v3651 = vadd.f32 %v3650, %v3630
      %v3652 = vadd.f32 %v3651, %v3631
      %v3653 = vadd.f32 %v3652, %v3632
      %v3654 = vadd.f32 %v3653, %v3633
      %v3655 = vadd.f32 %v3654, %v3634
      %v3656 = vadd.f32 %v3655, %v3635
      %v3657 = vadd.f32 %v3656, %v3636
      %vm3658 = vcmask 1040384
      %v3659 = vsel %vm3658, %v3637, 0.0
      %v3660 = vadd.f32 %v3657, %v3659
      %v3661 = vsel %vm3658, %v3638, 0.0
      %v3662 = vadd.f32 %v3660, %v3661
      %3663 = vadd.xlane.f32.xlu0 %v3662
      %v3664 = vpop.xlane.xlu0 %3663
      %v3665 = vrot.slane %v3664, 4
      %v3666 = vadd.f32 %v3664, %v3665
      %v3667 = vrot.slane %v3666, 2
      %v3668 = vadd.f32 %v3666, %v3667
      %v3669 = vrot.slane %v3668, 1
      %v3670 = vadd.f32 %v3668, %v3669
      %s3671 = vtos %v3670
      %v3672 = vstv %s3671
      %v3673 = vrcp.pop 12544.0
      %v3674 = vmul.f32 12544.0, %v3673
      %v3675 = vsub.f32 1.0, %v3674
      %v3676 = vmul.f32 %v3673, %v3675
      %v3677 = vadd.f32 %v3673, %v3676
      %vm3678 = vweird.f32 %v3673
      %v3679 = vsel %vm3678, %v3673, %v3677
      %v3680 = vmul.f32 %v3672, %v3679
      %v3681 = vmul.f32 %v3595, %v3595
      %v3682 = vmul.f32 %v3596, %v3596
      %v3683 = vmul.f32 %v3597, %v3597
      %v3684 = vmul.f32 %v3598, %v3598
      %v3685 = vmul.f32 %v3599, %v3599
      %v3686 = vmul.f32 %v3600, %v3600
      %v3687 = vmul.f32 %v3601, %v3601
      %v3688 = vmul.f32 %v3602, %v3602
      %v3689 = vmul.f32 %v3603, %v3603
      %v3690 = vmul.f32 %v3604, %v3604
      %v3691 = vmul.f32 %v3605, %v3605
      %v3692 = vmul.f32 %v3606, %v3606
      %v3693 = vmul.f32 %v3607, %v3607
      %v3694 = vmul.f32 %v3608, %v3608
      %v3695 = vmul.f32 %v3609, %v3609
      %v3696 = vmul.f32 %v3610, %v3610
      %v3697 = vmul.f32 %v3611, %v3611
      %v3698 = vmul.f32 %v3612, %v3612
      %v3699 = vmul.f32 %v3613, %v3613
      %v3700 = vmul.f32 %v3614, %v3614
      %v3701 = vmul.f32 %v3615, %v3615
      %v3702 = vmul.f32 %v3616, %v3616
      %v3703 = vmul.f32 %v3681, %v1324
      %v3704 = vmul.f32 %v3682, %v1324
      %v3705 = vmul.f32 %v3683, %v1329
      %v3706 = vmul.f32 %v3684, %v1329
      %v3707 = vmul.f32 %v3685, %v1334
      %v3708 = vmul.f32 %v3686, %v1334
      %v3709 = vmul.f32 %v3687, %v1339
      %v3710 = vmul.f32 %v3688, %v1339
      %v3711 = vmul.f32 %v3689, %v1344
      %v3712 = vmul.f32 %v3690, %v1344
      %v3713 = vmul.f32 %v3691, %v1349
      %v3714 = vmul.f32 %v3692, %v1349
      %v3715 = vmul.f32 %v3693, %v1354
      %v3716 = vmul.f32 %v3694, %v1354
      %v3717 = vmul.f32 %v3695, %v1359
      %v3718 = vmul.f32 %v3696, %v1359
      %v3719 = vmul.f32 %v3697, %v1364
      %v3720 = vmul.f32 %v3698, %v1364
      %v3721 = vmul.f32 %v3699, %v1369
      %v3722 = vmul.f32 %v3700, %v1369
      %v3723 = vmul.f32 %v3701, %v1374
      %v3724 = vmul.f32 %v3702, %v1374
      %v3725 = vadd.f32 %v3703, %v3704
      %v3726 = vadd.f32 %v3725, %v3705
      %v3727 = vadd.f32 %v3726, %v3706
      %v3728 = vadd.f32 %v3727, %v3707
      %v3729 = vadd.f32 %v3728, %v3708
      %v3730 = vadd.f32 %v3729, %v3709
      %v3731 = vadd.f32 %v3730, %v3710
      %v3732 = vadd.f32 %v3731, %v3711
      %v3733 = vadd.f32 %v3732, %v3712
      %v3734 = vadd.f32 %v3733, %v3713
      %v3735 = vadd.f32 %v3734, %v3714
      %v3736 = vadd.f32 %v3735, %v3715
      %v3737 = vadd.f32 %v3736, %v3716
      %v3738 = vadd.f32 %v3737, %v3717
      %v3739 = vadd.f32 %v3738, %v3718
      %v3740 = vadd.f32 %v3739, %v3719
      %v3741 = vadd.f32 %v3740, %v3720
      %v3742 = vadd.f32 %v3741, %v3721
      %v3743 = vadd.f32 %v3742, %v3722
      %v3744 = vsel %vm3658, %v3723, 0.0
      %v3745 = vadd.f32 %v3743, %v3744
      %v3746 = vsel %vm3658, %v3724, 0.0
      %v3747 = vadd.f32 %v3745, %v3746
      %3748 = vadd.xlane.f32.xlu0 %v3747
      %v3749 = vpop.xlane.xlu0 %3748
      %v3750 = vrot.slane %v3749, 4
      %v3751 = vadd.f32 %v3749, %v3750
      %v3752 = vrot.slane %v3751, 2
      %v3753 = vadd.f32 %v3751, %v3752
      %v3754 = vrot.slane %v3753, 1
      %v3755 = vadd.f32 %v3753, %v3754
      %s3756 = vtos %v3755
      %v3757 = vstv %s3756
      %v3758 = vmul.f32 %v3757, %v3679
      %v3759 = vmul.f32 %v3680, %v3680
      %v3760 = vsub.f32 %v3758, %v3759
      %v3761 = vadd.f32 %v3760, 1e-05
      %v3762 = vrsqrt.pop %v3761
      %v3763 = vmul.f32 %v3762, %v3761
      %v3764 = vmul.f32 %v3763, %v3762
      %v3765 = vmul.f32 0.5, %v3764
      %v3766 = vsub.f32 1.5, %v3765
      %v3767 = vmul.f32 %v3762, %v3766
      %vm3768 = vweird.f32 %v3761
      %vm3769 = vweird.f32 %v3762
      %vm3770 = vmor %vm3768, %vm3769
      %v3771 = vsel %vm3770, %v3762, %v3767
      %v3772 = vsub.f32 %v3595, %v3680
      %v3773 = vsub.f32 %v3596, %v3680
      %v3774 = vsub.f32 %v3597, %v3680
      %v3775 = vsub.f32 %v3598, %v3680
      %v3776 = vsub.f32 %v3599, %v3680
      %v3777 = vsub.f32 %v3600, %v3680
      %v3778 = vsub.f32 %v3601, %v3680
      %v3779 = vsub.f32 %v3602, %v3680
      %v3780 = vsub.f32 %v3603, %v3680
      %v3781 = vsub.f32 %v3604, %v3680
      %v3782 = vsub.f32 %v3605, %v3680
      %v3783 = vsub.f32 %v3606, %v3680
      %v3784 = vsub.f32 %v3607, %v3680
      %v3785 = vsub.f32 %v3608, %v3680
      %v3786 = vsub.f32 %v3609, %v3680
      %v3787 = vsub.f32 %v3610, %v3680
      %v3788 = vsub.f32 %v3611, %v3680
      %v3789 = vsub.f32 %v3612, %v3680
      %v3790 = vsub.f32 %v3613, %v3680
      %v3791 = vsub.f32 %v3614, %v3680
      %v3792 = vsub.f32 %v3615, %v3680
      %v3793 = vsub.f32 %v3616, %v3680
      %v3794 = vmul.f32 %v3772, %v3771
      %v3795 = vmul.f32 %v3773, %v3771
      %v3796 = vmul.f32 %v3774, %v3771
      %v3797 = vmul.f32 %v3775, %v3771
      %v3798 = vmul.f32 %v3776, %v3771
      %v3799 = vmul.f32 %v3777, %v3771
      %v3800 = vmul.f32 %v3778, %v3771
      %v3801 = vmul.f32 %v3779, %v3771
      %v3802 = vmul.f32 %v3780, %v3771
      %v3803 = vmul.f32 %v3781, %v3771
      %v3804 = vmul.f32 %v3782, %v3771
      %v3805 = vmul.f32 %v3783, %v3771
      %v3806 = vmul.f32 %v3784, %v3771
      %v3807 = vmul.f32 %v3785, %v3771
      %v3808 = vmul.f32 %v3786, %v3771
      %v3809 = vmul.f32 %v3787, %v3771
      %v3810 = vmul.f32 %v3788, %v3771
      %v3811 = vmul.f32 %v3789, %v3771
      %v3812 = vmul.f32 %v3790, %v3771
      %v3813 = vmul.f32 %v3791, %v3771
      %v3814 = vmul.f32 %v3792, %v3771
      %v3815 = vmul.f32 %v3793, %v3771
      %v3816 = vld [vmem:[%s5] sm:$0x3]
      %v3818 = vperm.slane %v3816, 0
      %v3819 = vperm.slane %v3816, 1
      %v3822 = vmul.f32 %v3794, %v3818
      %v3823 = vmul.f32 %v3795, %v3819
      %v3824 = vmul.f32 %v3796, %v3818
      %v3825 = vmul.f32 %v3797, %v3819
      %v3826 = vmul.f32 %v3798, %v3818
      %v3827 = vmul.f32 %v3799, %v3819
      %v3828 = vmul.f32 %v3800, %v3818
      %v3829 = vmul.f32 %v3801, %v3819
      %v3830 = vmul.f32 %v3802, %v3818
      %v3831 = vmul.f32 %v3803, %v3819
      %v3832 = vmul.f32 %v3804, %v3818
      %v3833 = vmul.f32 %v3805, %v3819
      %v3834 = vmul.f32 %v3806, %v3818
      %v3835 = vmul.f32 %v3807, %v3819
      %v3836 = vmul.f32 %v3808, %v3818
      %v3837 = vmul.f32 %v3809, %v3819
      %v3838 = vmul.f32 %v3810, %v3818
      %v3839 = vmul.f32 %v3811, %v3819
      %v3840 = vmul.f32 %v3812, %v3818
      %v3841 = vmul.f32 %v3813, %v3819
      %v3842 = vmul.f32 %v3814, %v3818
      %v3843 = vmul.f32 %v3815, %v3819
      %v3844 = vld [vmem:[%s6] sm:$0x3]
      %v3846 = vperm.slane %v3844, 0
      %v3847 = vperm.slane %v3844, 1
      %v3850 = vadd.f32 %v3822, %v3846
      %v3851 = vadd.f32 %v3823, %v3847
      %v3852 = vadd.f32 %v3824, %v3846
      %v3853 = vadd.f32 %v3825, %v3847
      %v3854 = vadd.f32 %v3826, %v3846
      %v3855 = vadd.f32 %v3827, %v3847
      %v3856 = vadd.f32 %v3828, %v3846
      %v3857 = vadd.f32 %v3829, %v3847
      %v3858 = vadd.f32 %v3830, %v3846
      %v3859 = vadd.f32 %v3831, %v3847
      %v3860 = vadd.f32 %v3832, %v3846
      %v3861 = vadd.f32 %v3833, %v3847
      %v3862 = vadd.f32 %v3834, %v3846
      %v3863 = vadd.f32 %v3835, %v3847
      %v3864 = vadd.f32 %v3836, %v3846
      %v3865 = vadd.f32 %v3837, %v3847
      %v3866 = vadd.f32 %v3838, %v3846
      %v3867 = vadd.f32 %v3839, %v3847
      %v3868 = vadd.f32 %v3840, %v3846
      %v3869 = vadd.f32 %v3841, %v3847
      %v3870 = vadd.f32 %v3842, %v3846
      %v3871 = vadd.f32 %v3843, %v3847
      %v3872 = vmul.f32 %v3850, 0.5
      %v3873 = vmul.f32 %v3851, 0.5
      %v3874 = vmul.f32 %v3852, 0.5
      %v3875 = vmul.f32 %v3853, 0.5
      %v3876 = vmul.f32 %v3854, 0.5
      %v3877 = vmul.f32 %v3855, 0.5
      %v3878 = vmul.f32 %v3856, 0.5
      %v3879 = vmul.f32 %v3857, 0.5
      %v3880 = vmul.f32 %v3858, 0.5
      %v3881 = vmul.f32 %v3859, 0.5
      %v3882 = vmul.f32 %v3860, 0.5
      %v3883 = vmul.f32 %v3861, 0.5
      %v3884 = vmul.f32 %v3862, 0.5
      %v3885 = vmul.f32 %v3863, 0.5
      %v3886 = vmul.f32 %v3864, 0.5
      %v3887 = vmul.f32 %v3865, 0.5
      %v3888 = vmul.f32 %v3866, 0.5
      %v3889 = vmul.f32 %v3867, 0.5
      %v3890 = vmul.f32 %v3868, 0.5
      %v3891 = vmul.f32 %v3869, 0.5
      %v3892 = vmul.f32 %v3870, 0.5
      %v3893 = vmul.f32 %v3871, 0.5
      %v3894 = vmul.f32 %v3850, 0.70710677
      %v3895 = vmul.f32 %v3851, 0.70710677
      %v3896 = vmul.f32 %v3852, 0.70710677
      %v3897 = vmul.f32 %v3853, 0.70710677
      %v3898 = vmul.f32 %v3854, 0.70710677
      %v3899 = vmul.f32 %v3855, 0.70710677
      %v3900 = vmul.f32 %v3856, 0.70710677
      %v3901 = vmul.f32 %v3857, 0.70710677
      %v3902 = vmul.f32 %v3858, 0.70710677
      %v3903 = vmul.f32 %v3859, 0.70710677
      %v3904 = vmul.f32 %v3860, 0.70710677
      %v3905 = vmul.f32 %v3861, 0.70710677
      %v3906 = vmul.f32 %v3862, 0.70710677
      %v3907 = vmul.f32 %v3863, 0.70710677
      %v3908 = vmul.f32 %v3864, 0.70710677
      %v3909 = vmul.f32 %v3865, 0.70710677
      %v3910 = vmul.f32 %v3866, 0.70710677
      %v3911 = vmul.f32 %v3867, 0.70710677
      %v3912 = vmul.f32 %v3868, 0.70710677
      %v3913 = vmul.f32 %v3869, 0.70710677
      %v3914 = vmul.f32 %v3870, 0.70710677
      %v3915 = vmul.f32 %v3871, 0.70710677
      %vm3916 = vcmp.ge.f32.partialorder %v3894, 0.0
      %vm3917 = vcmp.ge.f32.partialorder %v3895, 0.0
      %vm3918 = vcmp.ge.f32.partialorder %v3896, 0.0
      %vm3919 = vcmp.ge.f32.partialorder %v3897, 0.0
      %vm3920 = vcmp.ge.f32.partialorder %v3898, 0.0
      %vm3921 = vcmp.ge.f32.partialorder %v3899, 0.0
      %vm3922 = vcmp.ge.f32.partialorder %v3900, 0.0
      %vm3923 = vcmp.ge.f32.partialorder %v3901, 0.0
      %vm3924 = vcmp.ge.f32.partialorder %v3902, 0.0
      %vm3925 = vcmp.ge.f32.partialorder %v3903, 0.0
      %vm3926 = vcmp.ge.f32.partialorder %v3904, 0.0
      %vm3927 = vcmp.ge.f32.partialorder %v3905, 0.0
      %vm3928 = vcmp.ge.f32.partialorder %v3906, 0.0
      %vm3929 = vcmp.ge.f32.partialorder %v3907, 0.0
      %vm3930 = vcmp.ge.f32.partialorder %v3908, 0.0
      %vm3931 = vcmp.ge.f32.partialorder %v3909, 0.0
      %vm3932 = vcmp.ge.f32.partialorder %v3910, 0.0
      %vm3933 = vcmp.ge.f32.partialorder %v3911, 0.0
      %vm3934 = vcmp.ge.f32.partialorder %v3912, 0.0
      %vm3935 = vcmp.ge.f32.partialorder %v3913, 0.0
      %vm3936 = vcmp.ge.f32.partialorder %v3914, 0.0
      %vm3937 = vcmp.ge.f32.partialorder %v3915, 0.0
      %v3938 = vsel %vm3916, 1.0, -1.0
      %v3939 = vsel %vm3917, 1.0, -1.0
      %v3940 = vsel %vm3918, 1.0, -1.0
      %v3941 = vsel %vm3919, 1.0, -1.0
      %v3942 = vsel %vm3920, 1.0, -1.0
      %v3943 = vsel %vm3921, 1.0, -1.0
      %v3944 = vsel %vm3922, 1.0, -1.0
      %v3945 = vsel %vm3923, 1.0, -1.0
      %v3946 = vsel %vm3924, 1.0, -1.0
      %v3947 = vsel %vm3925, 1.0, -1.0
      %v3948 = vsel %vm3926, 1.0, -1.0
      %v3949 = vsel %vm3927, 1.0, -1.0
      %v3950 = vsel %vm3928, 1.0, -1.0
      %v3951 = vsel %vm3929, 1.0, -1.0
      %v3952 = vsel %vm3930, 1.0, -1.0
      %v3953 = vsel %vm3931, 1.0, -1.0
      %v3954 = vsel %vm3932, 1.0, -1.0
      %v3955 = vsel %vm3933, 1.0, -1.0
      %v3956 = vsel %vm3934, 1.0, -1.0
      %v3957 = vsel %vm3935, 1.0, -1.0
      %v3958 = vsel %vm3936, 1.0, -1.0
      %v3959 = vsel %vm3937, 1.0, -1.0
      %v3960 = vand.u32 2147483647, %v3894
      %v3961 = vand.u32 2147483647, %v3895
      %v3962 = vand.u32 2147483647, %v3896
      %v3963 = vand.u32 2147483647, %v3897
      %v3964 = vand.u32 2147483647, %v3898
      %v3965 = vand.u32 2147483647, %v3899
      %v3966 = vand.u32 2147483647, %v3900
      %v3967 = vand.u32 2147483647, %v3901
      %v3968 = vand.u32 2147483647, %v3902
      %v3969 = vand.u32 2147483647, %v3903
      %v3970 = vand.u32 2147483647, %v3904
      %v3971 = vand.u32 2147483647, %v3905
      %v3972 = vand.u32 2147483647, %v3906
      %v3973 = vand.u32 2147483647, %v3907
      %v3974 = vand.u32 2147483647, %v3908
      %v3975 = vand.u32 2147483647, %v3909
      %v3976 = vand.u32 2147483647, %v3910
      %v3977 = vand.u32 2147483647, %v3911
      %v3978 = vand.u32 2147483647, %v3912
      %v3979 = vand.u32 2147483647, %v3913
      %v3980 = vand.u32 2147483647, %v3914
      %v3981 = vand.u32 2147483647, %v3915
      %v3982 = vmul.f32 %v3960, 0.3275911
      %v3983 = vmul.f32 %v3961, 0.3275911
      %v3984 = vmul.f32 %v3962, 0.3275911
      %v3985 = vmul.f32 %v3963, 0.3275911
      %v3986 = vmul.f32 %v3964, 0.3275911
      %v3987 = vmul.f32 %v3965, 0.3275911
      %v3988 = vmul.f32 %v3966, 0.3275911
      %v3989 = vmul.f32 %v3967, 0.3275911
      %v3990 = vmul.f32 %v3968, 0.3275911
      %v3991 = vmul.f32 %v3969, 0.3275911
      %v3992 = vmul.f32 %v3970, 0.3275911
      %v3993 = vmul.f32 %v3971, 0.3275911
      %v3994 = vmul.f32 %v3972, 0.3275911
      %v3995 = vmul.f32 %v3973, 0.3275911
      %v3996 = vmul.f32 %v3974, 0.3275911
      %v3997 = vmul.f32 %v3975, 0.3275911
      %v3998 = vmul.f32 %v3976, 0.3275911
      %v3999 = vmul.f32 %v3977, 0.3275911
      %v4000 = vmul.f32 %v3978, 0.3275911
      %v4001 = vmul.f32 %v3979, 0.3275911
      %v4002 = vmul.f32 %v3980, 0.3275911
      %v4003 = vmul.f32 %v3981, 0.3275911
      %v4004 = vadd.f32 %v3982, 1.0
      %v4005 = vadd.f32 %v3983, 1.0
      %v4006 = vadd.f32 %v3984, 1.0
      %v4007 = vadd.f32 %v3985, 1.0
      %v4008 = vadd.f32 %v3986, 1.0
      %v4009 = vadd.f32 %v3987, 1.0
      %v4010 = vadd.f32 %v3988, 1.0
      %v4011 = vadd.f32 %v3989, 1.0
      %v4012 = vadd.f32 %v3990, 1.0
      %v4013 = vadd.f32 %v3991, 1.0
      %v4014 = vadd.f32 %v3992, 1.0
      %v4015 = vadd.f32 %v3993, 1.0
      %v4016 = vadd.f32 %v3994, 1.0
      %v4017 = vadd.f32 %v3995, 1.0
      %v4018 = vadd.f32 %v3996, 1.0
      %v4019 = vadd.f32 %v3997, 1.0
      %v4020 = vadd.f32 %v3998, 1.0
      %v4021 = vadd.f32 %v3999, 1.0
      %v4022 = vadd.f32 %v4000, 1.0
      %v4023 = vadd.f32 %v4001, 1.0
      %v4024 = vadd.f32 %v4002, 1.0
      %v4025 = vadd.f32 %v4003, 1.0
      %v4026 = vrcp.pop %v4004
      %v4027 = vmul.f32 %v4004, %v4026
      %v4028 = vsub.f32 1.0, %v4027
      %v4029 = vmul.f32 %v4026, %v4028
      %v4030 = vadd.f32 %v4026, %v4029
      %vm4031 = vweird.f32 %v4004
      %vm4032 = vweird.f32 %v4026
      %vm4033 = vmor %vm4031, %vm4032
      %v4034 = vsel %vm4033, %v4026, %v4030
      %v4035 = vand.u32 2147483647, %v4004
      %vm4036 = vcmp.eq.f32.partialorder %v4035, 8.507059e+37
      %v4037 = vand.u32 %v4004, 2147483648
      %v4038 = vor.u32 1.1754944e-38, %v4037
      %v4039 = vsel %vm4036, %v4038, %v4034
      %v4040 = vmul.f32 1.0, %v4039
      %v4041 = vrcp.pop %v4005
      %v4042 = vmul.f32 %v4005, %v4041
      %v4043 = vsub.f32 1.0, %v4042
      %v4044 = vmul.f32 %v4041, %v4043
      %v4045 = vadd.f32 %v4041, %v4044
      %vm4046 = vweird.f32 %v4005
      %vm4047 = vweird.f32 %v4041
      %vm4048 = vmor %vm4046, %vm4047
      %v4049 = vsel %vm4048, %v4041, %v4045
      %v4050 = vand.u32 2147483647, %v4005
      %vm4051 = vcmp.eq.f32.partialorder %v4050, 8.507059e+37
      %v4052 = vand.u32 %v4005, 2147483648
      %v4053 = vor.u32 1.1754944e-38, %v4052
      %v4054 = vsel %vm4051, %v4053, %v4049
      %v4055 = vmul.f32 1.0, %v4054
      %v4056 = vrcp.pop %v4006
      %v4057 = vmul.f32 %v4006, %v4056
      %v4058 = vsub.f32 1.0, %v4057
      %v4059 = vmul.f32 %v4056, %v4058
      %v4060 = vadd.f32 %v4056, %v4059
      %vm4061 = vweird.f32 %v4006
      %vm4062 = vweird.f32 %v4056
      %vm4063 = vmor %vm4061, %vm4062
      %v4064 = vsel %vm4063, %v4056, %v4060
      %v4065 = vand.u32 2147483647, %v4006
      %vm4066 = vcmp.eq.f32.partialorder %v4065, 8.507059e+37
      %v4067 = vand.u32 %v4006, 2147483648
      %v4068 = vor.u32 1.1754944e-38, %v4067
      %v4069 = vsel %vm4066, %v4068, %v4064
      %v4070 = vmul.f32 1.0, %v4069
      %v4071 = vrcp.pop %v4007
      %v4072 = vmul.f32 %v4007, %v4071
      %v4073 = vsub.f32 1.0, %v4072
      %v4074 = vmul.f32 %v4071, %v4073
      %v4075 = vadd.f32 %v4071, %v4074
      %vm4076 = vweird.f32 %v4007
      %vm4077 = vweird.f32 %v4071
      %vm4078 = vmor %vm4076, %vm4077
      %v4079 = vsel %vm4078, %v4071, %v4075
      %v4080 = vand.u32 2147483647, %v4007
      %vm4081 = vcmp.eq.f32.partialorder %v4080, 8.507059e+37
      %v4082 = vand.u32 %v4007, 2147483648
      %v4083 = vor.u32 1.1754944e-38, %v4082
      %v4084 = vsel %vm4081, %v4083, %v4079
      %v4085 = vmul.f32 1.0, %v4084
      %v4086 = vrcp.pop %v4008
      %v4087 = vmul.f32 %v4008, %v4086
      %v4088 = vsub.f32 1.0, %v4087
      %v4089 = vmul.f32 %v4086, %v4088
      %v4090 = vadd.f32 %v4086, %v4089
      %vm4091 = vweird.f32 %v4008
      %vm4092 = vweird.f32 %v4086
      %vm4093 = vmor %vm4091, %vm4092
      %v4094 = vsel %vm4093, %v4086, %v4090
      %v4095 = vand.u32 2147483647, %v4008
      %vm4096 = vcmp.eq.f32.partialorder %v4095, 8.507059e+37
      %v4097 = vand.u32 %v4008, 2147483648
      %v4098 = vor.u32 1.1754944e-38, %v4097
      %v4099 = vsel %vm4096, %v4098, %v4094
      %v4100 = vmul.f32 1.0, %v4099
      %v4101 = vrcp.pop %v4009
      %v4102 = vmul.f32 %v4009, %v4101
      %v4103 = vsub.f32 1.0, %v4102
      %v4104 = vmul.f32 %v4101, %v4103
      %v4105 = vadd.f32 %v4101, %v4104
      %vm4106 = vweird.f32 %v4009
      %vm4107 = vweird.f32 %v4101
      %vm4108 = vmor %vm4106, %vm4107
      %v4109 = vsel %vm4108, %v4101, %v4105
      %v4110 = vand.u32 2147483647, %v4009
      %vm4111 = vcmp.eq.f32.partialorder %v4110, 8.507059e+37
      %v4112 = vand.u32 %v4009, 2147483648
      %v4113 = vor.u32 1.1754944e-38, %v4112
      %v4114 = vsel %vm4111, %v4113, %v4109
      %v4115 = vmul.f32 1.0, %v4114
      %v4116 = vrcp.pop %v4010
      %v4117 = vmul.f32 %v4010, %v4116
      %v4118 = vsub.f32 1.0, %v4117
      %v4119 = vmul.f32 %v4116, %v4118
      %v4120 = vadd.f32 %v4116, %v4119
      %vm4121 = vweird.f32 %v4010
      %vm4122 = vweird.f32 %v4116
      %vm4123 = vmor %vm4121, %vm4122
      %v4124 = vsel %vm4123, %v4116, %v4120
      %v4125 = vand.u32 2147483647, %v4010
      %vm4126 = vcmp.eq.f32.partialorder %v4125, 8.507059e+37
      %v4127 = vand.u32 %v4010, 2147483648
      %v4128 = vor.u32 1.1754944e-38, %v4127
      %v4129 = vsel %vm4126, %v4128, %v4124
      %v4130 = vmul.f32 1.0, %v4129
      %v4131 = vrcp.pop %v4011
      %v4132 = vmul.f32 %v4011, %v4131
      %v4133 = vsub.f32 1.0, %v4132
      %v4134 = vmul.f32 %v4131, %v4133
      %v4135 = vadd.f32 %v4131, %v4134
      %vm4136 = vweird.f32 %v4011
      %vm4137 = vweird.f32 %v4131
      %vm4138 = vmor %vm4136, %vm4137
      %v4139 = vsel %vm4138, %v4131, %v4135
      %v4140 = vand.u32 2147483647, %v4011
      %vm4141 = vcmp.eq.f32.partialorder %v4140, 8.507059e+37
      %v4142 = vand.u32 %v4011, 2147483648
      %v4143 = vor.u32 1.1754944e-38, %v4142
      %v4144 = vsel %vm4141, %v4143, %v4139
      %v4145 = vmul.f32 1.0, %v4144
      %v4146 = vrcp.pop %v4012
      %v4147 = vmul.f32 %v4012, %v4146
      %v4148 = vsub.f32 1.0, %v4147
      %v4149 = vmul.f32 %v4146, %v4148
      %v4150 = vadd.f32 %v4146, %v4149
      %vm4151 = vweird.f32 %v4012
      %vm4152 = vweird.f32 %v4146
      %vm4153 = vmor %vm4151, %vm4152
      %v4154 = vsel %vm4153, %v4146, %v4150
      %v4155 = vand.u32 2147483647, %v4012
      %vm4156 = vcmp.eq.f32.partialorder %v4155, 8.507059e+37
      %v4157 = vand.u32 %v4012, 2147483648
      %v4158 = vor.u32 1.1754944e-38, %v4157
      %v4159 = vsel %vm4156, %v4158, %v4154
      %v4160 = vmul.f32 1.0, %v4159
      %v4161 = vrcp.pop %v4013
      %v4162 = vmul.f32 %v4013, %v4161
      %v4163 = vsub.f32 1.0, %v4162
      %v4164 = vmul.f32 %v4161, %v4163
      %v4165 = vadd.f32 %v4161, %v4164
      %vm4166 = vweird.f32 %v4013
      %vm4167 = vweird.f32 %v4161
      %vm4168 = vmor %vm4166, %vm4167
      %v4169 = vsel %vm4168, %v4161, %v4165
      %v4170 = vand.u32 2147483647, %v4013
      %vm4171 = vcmp.eq.f32.partialorder %v4170, 8.507059e+37
      %v4172 = vand.u32 %v4013, 2147483648
      %v4173 = vor.u32 1.1754944e-38, %v4172
      %v4174 = vsel %vm4171, %v4173, %v4169
      %v4175 = vmul.f32 1.0, %v4174
      %v4176 = vrcp.pop %v4014
      %v4177 = vmul.f32 %v4014, %v4176
      %v4178 = vsub.f32 1.0, %v4177
      %v4179 = vmul.f32 %v4176, %v4178
      %v4180 = vadd.f32 %v4176, %v4179
      %vm4181 = vweird.f32 %v4014
      %vm4182 = vweird.f32 %v4176
      %vm4183 = vmor %vm4181, %vm4182
      %v4184 = vsel %vm4183, %v4176, %v4180
      %v4185 = vand.u32 2147483647, %v4014
      %vm4186 = vcmp.eq.f32.partialorder %v4185, 8.507059e+37
      %v4187 = vand.u32 %v4014, 2147483648
      %v4188 = vor.u32 1.1754944e-38, %v4187
      %v4189 = vsel %vm4186, %v4188, %v4184
      %v4190 = vmul.f32 1.0, %v4189
      %v4191 = vrcp.pop %v4015
      %v4192 = vmul.f32 %v4015, %v4191
      %v4193 = vsub.f32 1.0, %v4192
      %v4194 = vmul.f32 %v4191, %v4193
      %v4195 = vadd.f32 %v4191, %v4194
      %vm4196 = vweird.f32 %v4015
      %vm4197 = vweird.f32 %v4191
      %vm4198 = vmor %vm4196, %vm4197
      %v4199 = vsel %vm4198, %v4191, %v4195
      %v4200 = vand.u32 2147483647, %v4015
      %vm4201 = vcmp.eq.f32.partialorder %v4200, 8.507059e+37
      %v4202 = vand.u32 %v4015, 2147483648
      %v4203 = vor.u32 1.1754944e-38, %v4202
      %v4204 = vsel %vm4201, %v4203, %v4199
      %v4205 = vmul.f32 1.0, %v4204
      %v4206 = vrcp.pop %v4016
      %v4207 = vmul.f32 %v4016, %v4206
      %v4208 = vsub.f32 1.0, %v4207
      %v4209 = vmul.f32 %v4206, %v4208
      %v4210 = vadd.f32 %v4206, %v4209
      %vm4211 = vweird.f32 %v4016
      %vm4212 = vweird.f32 %v4206
      %vm4213 = vmor %vm4211, %vm4212
      %v4214 = vsel %vm4213, %v4206, %v4210
      %v4215 = vand.u32 2147483647, %v4016
      %vm4216 = vcmp.eq.f32.partialorder %v4215, 8.507059e+37
      %v4217 = vand.u32 %v4016, 2147483648
      %v4218 = vor.u32 1.1754944e-38, %v4217
      %v4219 = vsel %vm4216, %v4218, %v4214
      %v4220 = vmul.f32 1.0, %v4219
      %v4221 = vrcp.pop %v4017
      %v4222 = vmul.f32 %v4017, %v4221
      %v4223 = vsub.f32 1.0, %v4222
      %v4224 = vmul.f32 %v4221, %v4223
      %v4225 = vadd.f32 %v4221, %v4224
      %vm4226 = vweird.f32 %v4017
      %vm4227 = vweird.f32 %v4221
      %vm4228 = vmor %vm4226, %vm4227
      %v4229 = vsel %vm4228, %v4221, %v4225
      %v4230 = vand.u32 2147483647, %v4017
      %vm4231 = vcmp.eq.f32.partialorder %v4230, 8.507059e+37
      %v4232 = vand.u32 %v4017, 2147483648
      %v4233 = vor.u32 1.1754944e-38, %v4232
      %v4234 = vsel %vm4231, %v4233, %v4229
      %v4235 = vmul.f32 1.0, %v4234
      %v4236 = vrcp.pop %v4018
      %v4237 = vmul.f32 %v4018, %v4236
      %v4238 = vsub.f32 1.0, %v4237
      %v4239 = vmul.f32 %v4236, %v4238
      %v4240 = vadd.f32 %v4236, %v4239
      %vm4241 = vweird.f32 %v4018
      %vm4242 = vweird.f32 %v4236
      %vm4243 = vmor %vm4241, %vm4242
      %v4244 = vsel %vm4243, %v4236, %v4240
      %v4245 = vand.u32 2147483647, %v4018
      %vm4246 = vcmp.eq.f32.partialorder %v4245, 8.507059e+37
      %v4247 = vand.u32 %v4018, 2147483648
      %v4248 = vor.u32 1.1754944e-38, %v4247
      %v4249 = vsel %vm4246, %v4248, %v4244
      %v4250 = vmul.f32 1.0, %v4249
      %v4251 = vrcp.pop %v4019
      %v4252 = vmul.f32 %v4019, %v4251
      %v4253 = vsub.f32 1.0, %v4252
      %v4254 = vmul.f32 %v4251, %v4253
      %v4255 = vadd.f32 %v4251, %v4254
      %vm4256 = vweird.f32 %v4019
      %vm4257 = vweird.f32 %v4251
      %vm4258 = vmor %vm4256, %vm4257
      %v4259 = vsel %vm4258, %v4251, %v4255
      %v4260 = vand.u32 2147483647, %v4019
      %vm4261 = vcmp.eq.f32.partialorder %v4260, 8.507059e+37
      %v4262 = vand.u32 %v4019, 2147483648
      %v4263 = vor.u32 1.1754944e-38, %v4262
      %v4264 = vsel %vm4261, %v4263, %v4259
      %v4265 = vmul.f32 1.0, %v4264
      %v4266 = vrcp.pop %v4020
      %v4267 = vmul.f32 %v4020, %v4266
      %v4268 = vsub.f32 1.0, %v4267
      %v4269 = vmul.f32 %v4266, %v4268
      %v4270 = vadd.f32 %v4266, %v4269
      %vm4271 = vweird.f32 %v4020
      %vm4272 = vweird.f32 %v4266
      %vm4273 = vmor %vm4271, %vm4272
      %v4274 = vsel %vm4273, %v4266, %v4270
      %v4275 = vand.u32 2147483647, %v4020
      %vm4276 = vcmp.eq.f32.partialorder %v4275, 8.507059e+37
      %v4277 = vand.u32 %v4020, 2147483648
      %v4278 = vor.u32 1.1754944e-38, %v4277
      %v4279 = vsel %vm4276, %v4278, %v4274
      %v4280 = vmul.f32 1.0, %v4279
      %v4281 = vrcp.pop %v4021
      %v4282 = vmul.f32 %v4021, %v4281
      %v4283 = vsub.f32 1.0, %v4282
      %v4284 = vmul.f32 %v4281, %v4283
      %v4285 = vadd.f32 %v4281, %v4284
      %vm4286 = vweird.f32 %v4021
      %vm4287 = vweird.f32 %v4281
      %vm4288 = vmor %vm4286, %vm4287
      %v4289 = vsel %vm4288, %v4281, %v4285
      %v4290 = vand.u32 2147483647, %v4021
      %vm4291 = vcmp.eq.f32.partialorder %v4290, 8.507059e+37
      %v4292 = vand.u32 %v4021, 2147483648
      %v4293 = vor.u32 1.1754944e-38, %v4292
      %v4294 = vsel %vm4291, %v4293, %v4289
      %v4295 = vmul.f32 1.0, %v4294
      %v4296 = vrcp.pop %v4022
      %v4297 = vmul.f32 %v4022, %v4296
      %v4298 = vsub.f32 1.0, %v4297
      %v4299 = vmul.f32 %v4296, %v4298
      %v4300 = vadd.f32 %v4296, %v4299
      %vm4301 = vweird.f32 %v4022
      %vm4302 = vweird.f32 %v4296
      %vm4303 = vmor %vm4301, %vm4302
      %v4304 = vsel %vm4303, %v4296, %v4300
      %v4305 = vand.u32 2147483647, %v4022
      %vm4306 = vcmp.eq.f32.partialorder %v4305, 8.507059e+37
      %v4307 = vand.u32 %v4022, 2147483648
      %v4308 = vor.u32 1.1754944e-38, %v4307
      %v4309 = vsel %vm4306, %v4308, %v4304
      %v4310 = vmul.f32 1.0, %v4309
      %v4311 = vrcp.pop %v4023
      %v4312 = vmul.f32 %v4023, %v4311
      %v4313 = vsub.f32 1.0, %v4312
      %v4314 = vmul.f32 %v4311, %v4313
      %v4315 = vadd.f32 %v4311, %v4314
      %vm4316 = vweird.f32 %v4023
      %vm4317 = vweird.f32 %v4311
      %vm4318 = vmor %vm4316, %vm4317
      %v4319 = vsel %vm4318, %v4311, %v4315
      %v4320 = vand.u32 2147483647, %v4023
      %vm4321 = vcmp.eq.f32.partialorder %v4320, 8.507059e+37
      %v4322 = vand.u32 %v4023, 2147483648
      %v4323 = vor.u32 1.1754944e-38, %v4322
      %v4324 = vsel %vm4321, %v4323, %v4319
      %v4325 = vmul.f32 1.0, %v4324
      %v4326 = vrcp.pop %v4024
      %v4327 = vmul.f32 %v4024, %v4326
      %v4328 = vsub.f32 1.0, %v4327
      %v4329 = vmul.f32 %v4326, %v4328
      %v4330 = vadd.f32 %v4326, %v4329
      %vm4331 = vweird.f32 %v4024
      %vm4332 = vweird.f32 %v4326
      %vm4333 = vmor %vm4331, %vm4332
      %v4334 = vsel %vm4333, %v4326, %v4330
      %v4335 = vand.u32 2147483647, %v4024
      %vm4336 = vcmp.eq.f32.partialorder %v4335, 8.507059e+37
      %v4337 = vand.u32 %v4024, 2147483648
      %v4338 = vor.u32 1.1754944e-38, %v4337
      %v4339 = vsel %vm4336, %v4338, %v4334
      %v4340 = vmul.f32 1.0, %v4339
      %v4341 = vrcp.pop %v4025
      %v4342 = vmul.f32 %v4025, %v4341
      %v4343 = vsub.f32 1.0, %v4342
      %v4344 = vmul.f32 %v4341, %v4343
      %v4345 = vadd.f32 %v4341, %v4344
      %vm4346 = vweird.f32 %v4025
      %vm4347 = vweird.f32 %v4341
      %vm4348 = vmor %vm4346, %vm4347
      %v4349 = vsel %vm4348, %v4341, %v4345
      %v4350 = vand.u32 2147483647, %v4025
      %vm4351 = vcmp.eq.f32.partialorder %v4350, 8.507059e+37
      %v4352 = vand.u32 %v4025, 2147483648
      %v4353 = vor.u32 1.1754944e-38, %v4352
      %v4354 = vsel %vm4351, %v4353, %v4349
      %v4355 = vmul.f32 1.0, %v4354
      %v4356 = vmul.f32 %v4040, 1.0614054
      %v4357 = vmul.f32 %v4055, 1.0614054
      %v4358 = vmul.f32 %v4070, 1.0614054
      %v4359 = vmul.f32 %v4085, 1.0614054
      %v4360 = vmul.f32 %v4100, 1.0614054
      %v4361 = vmul.f32 %v4115, 1.0614054
      %v4362 = vmul.f32 %v4130, 1.0614054
      %v4363 = vmul.f32 %v4145, 1.0614054
      %v4364 = vmul.f32 %v4160, 1.0614054
      %v4365 = vmul.f32 %v4175, 1.0614054
      %v4366 = vmul.f32 %v4190, 1.0614054
      %v4367 = vmul.f32 %v4205, 1.0614054
      %v4368 = vmul.f32 %v4220, 1.0614054
      %v4369 = vmul.f32 %v4235, 1.0614054
      %v4370 = vmul.f32 %v4250, 1.0614054
      %v4371 = vmul.f32 %v4265, 1.0614054
      %v4372 = vmul.f32 %v4280, 1.0614054
      %v4373 = vmul.f32 %v4295, 1.0614054
      %v4374 = vmul.f32 %v4310, 1.0614054
      %v4375 = vmul.f32 %v4325, 1.0614054
      %v4376 = vmul.f32 %v4340, 1.0614054
      %v4377 = vmul.f32 %v4355, 1.0614054
      %v4378 = vadd.f32 %v4356, -1.4531521
      %v4379 = vadd.f32 %v4357, -1.4531521
      %v4380 = vadd.f32 %v4358, -1.4531521
      %v4381 = vadd.f32 %v4359, -1.4531521
      %v4382 = vadd.f32 %v4360, -1.4531521
      %v4383 = vadd.f32 %v4361, -1.4531521
      %v4384 = vadd.f32 %v4362, -1.4531521
      %v4385 = vadd.f32 %v4363, -1.4531521
      %v4386 = vadd.f32 %v4364, -1.4531521
      %v4387 = vadd.f32 %v4365, -1.4531521
      %v4388 = vadd.f32 %v4366, -1.4531521
      %v4389 = vadd.f32 %v4367, -1.4531521
      %v4390 = vadd.f32 %v4368, -1.4531521
      %v4391 = vadd.f32 %v4369, -1.4531521
      %v4392 = vadd.f32 %v4370, -1.4531521
      %v4393 = vadd.f32 %v4371, -1.4531521
      %v4394 = vadd.f32 %v4372, -1.4531521
      %v4395 = vadd.f32 %v4373, -1.4531521
      %v4396 = vadd.f32 %v4374, -1.4531521
      %v4397 = vadd.f32 %v4375, -1.4531521
      %v4398 = vadd.f32 %v4376, -1.4531521
      %v4399 = vadd.f32 %v4377, -1.4531521
      %v4400 = vmul.f32 %v4040, %v4378
      %v4401 = vmul.f32 %v4055, %v4379
      %v4402 = vmul.f32 %v4070, %v4380
      %v4403 = vmul.f32 %v4085, %v4381
      %v4404 = vmul.f32 %v4100, %v4382
      %v4405 = vmul.f32 %v4115, %v4383
      %v4406 = vmul.f32 %v4130, %v4384
      %v4407 = vmul.f32 %v4145, %v4385
      %v4408 = vmul.f32 %v4160, %v4386
      %v4409 = vmul.f32 %v4175, %v4387
      %v4410 = vmul.f32 %v4190, %v4388
      %v4411 = vmul.f32 %v4205, %v4389
      %v4412 = vmul.f32 %v4220, %v4390
      %v4413 = vmul.f32 %v4235, %v4391
      %v4414 = vmul.f32 %v4250, %v4392
      %v4415 = vmul.f32 %v4265, %v4393
      %v4416 = vmul.f32 %v4280, %v4394
      %v4417 = vmul.f32 %v4295, %v4395
      %v4418 = vmul.f32 %v4310, %v4396
      %v4419 = vmul.f32 %v4325, %v4397
      %v4420 = vmul.f32 %v4340, %v4398
      %v4421 = vmul.f32 %v4355, %v4399
      %v4422 = vadd.f32 %v4400, 1.4214138
      %v4423 = vadd.f32 %v4401, 1.4214138
      %v4424 = vadd.f32 %v4402, 1.4214138
      %v4425 = vadd.f32 %v4403, 1.4214138
      %v4426 = vadd.f32 %v4404, 1.4214138
      %v4427 = vadd.f32 %v4405, 1.4214138
      %v4428 = vadd.f32 %v4406, 1.4214138
      %v4429 = vadd.f32 %v4407, 1.4214138
      %v4430 = vadd.f32 %v4408, 1.4214138
      %v4431 = vadd.f32 %v4409, 1.4214138
      %v4432 = vadd.f32 %v4410, 1.4214138
      %v4433 = vadd.f32 %v4411, 1.4214138
      %v4434 = vadd.f32 %v4412, 1.4214138
      %v4435 = vadd.f32 %v4413, 1.4214138
      %v4436 = vadd.f32 %v4414, 1.4214138
      %v4437 = vadd.f32 %v4415, 1.4214138
      %v4438 = vadd.f32 %v4416, 1.4214138
      %v4439 = vadd.f32 %v4417, 1.4214138
      %v4440 = vadd.f32 %v4418, 1.4214138
      %v4441 = vadd.f32 %v4419, 1.4214138
      %v4442 = vadd.f32 %v4420, 1.4214138
      %v4443 = vadd.f32 %v4421, 1.4214138
      %v4444 = vmul.f32 %v4040, %v4422
      %v4445 = vmul.f32 %v4055, %v4423
      %v4446 = vmul.f32 %v4070, %v4424
      %v4447 = vmul.f32 %v4085, %v4425
      %v4448 = vmul.f32 %v4100, %v4426
      %v4449 = vmul.f32 %v4115, %v4427
      %v4450 = vmul.f32 %v4130, %v4428
      %v4451 = vmul.f32 %v4145, %v4429
      %v4452 = vmul.f32 %v4160, %v4430
      %v4453 = vmul.f32 %v4175, %v4431
      %v4454 = vmul.f32 %v4190, %v4432
      %v4455 = vmul.f32 %v4205, %v4433
      %v4456 = vmul.f32 %v4220, %v4434
      %v4457 = vmul.f32 %v4235, %v4435
      %v4458 = vmul.f32 %v4250, %v4436
      %v4459 = vmul.f32 %v4265, %v4437
      %v4460 = vmul.f32 %v4280, %v4438
      %v4461 = vmul.f32 %v4295, %v4439
      %v4462 = vmul.f32 %v4310, %v4440
      %v4463 = vmul.f32 %v4325, %v4441
      %v4464 = vmul.f32 %v4340, %v4442
      %v4465 = vmul.f32 %v4355, %v4443
      %v4466 = vadd.f32 %v4444, -0.28449672
      %v4467 = vadd.f32 %v4445, -0.28449672
      %v4468 = vadd.f32 %v4446, -0.28449672
      %v4469 = vadd.f32 %v4447, -0.28449672
      %v4470 = vadd.f32 %v4448, -0.28449672
      %v4471 = vadd.f32 %v4449, -0.28449672
      %v4472 = vadd.f32 %v4450, -0.28449672
      %v4473 = vadd.f32 %v4451, -0.28449672
      %v4474 = vadd.f32 %v4452, -0.28449672
      %v4475 = vadd.f32 %v4453, -0.28449672
      %v4476 = vadd.f32 %v4454, -0.28449672
      %v4477 = vadd.f32 %v4455, -0.28449672
      %v4478 = vadd.f32 %v4456, -0.28449672
      %v4479 = vadd.f32 %v4457, -0.28449672
      %v4480 = vadd.f32 %v4458, -0.28449672
      %v4481 = vadd.f32 %v4459, -0.28449672
      %v4482 = vadd.f32 %v4460, -0.28449672
      %v4483 = vadd.f32 %v4461, -0.28449672
      %v4484 = vadd.f32 %v4462, -0.28449672
      %v4485 = vadd.f32 %v4463, -0.28449672
      %v4486 = vadd.f32 %v4464, -0.28449672
      %v4487 = vadd.f32 %v4465, -0.28449672
      %v4488 = vmul.f32 %v4040, %v4466
      %v4489 = vmul.f32 %v4055, %v4467
      %v4490 = vmul.f32 %v4070, %v4468
      %v4491 = vmul.f32 %v4085, %v4469
      %v4492 = vmul.f32 %v4100, %v4470
      %v4493 = vmul.f32 %v4115, %v4471
      %v4494 = vmul.f32 %v4130, %v4472
      %v4495 = vmul.f32 %v4145, %v4473
      %v4496 = vmul.f32 %v4160, %v4474
      %v4497 = vmul.f32 %v4175, %v4475
      %v4498 = vmul.f32 %v4190, %v4476
      %v4499 = vmul.f32 %v4205, %v4477
      %v4500 = vmul.f32 %v4220, %v4478
      %v4501 = vmul.f32 %v4235, %v4479
      %v4502 = vmul.f32 %v4250, %v4480
      %v4503 = vmul.f32 %v4265, %v4481
      %v4504 = vmul.f32 %v4280, %v4482
      %v4505 = vmul.f32 %v4295, %v4483
      %v4506 = vmul.f32 %v4310, %v4484
      %v4507 = vmul.f32 %v4325, %v4485
      %v4508 = vmul.f32 %v4340, %v4486
      %v4509 = vmul.f32 %v4355, %v4487
      %v4510 = vadd.f32 %v4488, 0.2548296
      %v4511 = vadd.f32 %v4489, 0.2548296
      %v4512 = vadd.f32 %v4490, 0.2548296
      %v4513 = vadd.f32 %v4491, 0.2548296
      %v4514 = vadd.f32 %v4492, 0.2548296
      %v4515 = vadd.f32 %v4493, 0.2548296
      %v4516 = vadd.f32 %v4494, 0.2548296
      %v4517 = vadd.f32 %v4495, 0.2548296
      %v4518 = vadd.f32 %v4496, 0.2548296
      %v4519 = vadd.f32 %v4497, 0.2548296
      %v4520 = vadd.f32 %v4498, 0.2548296
      %v4521 = vadd.f32 %v4499, 0.2548296
      %v4522 = vadd.f32 %v4500, 0.2548296
      %v4523 = vadd.f32 %v4501, 0.2548296
      %v4524 = vadd.f32 %v4502, 0.2548296
      %v4525 = vadd.f32 %v4503, 0.2548296
      %v4526 = vadd.f32 %v4504, 0.2548296
      %v4527 = vadd.f32 %v4505, 0.2548296
      %v4528 = vadd.f32 %v4506, 0.2548296
      %v4529 = vadd.f32 %v4507, 0.2548296
      %v4530 = vadd.f32 %v4508, 0.2548296
      %v4531 = vadd.f32 %v4509, 0.2548296
      %v4532 = vmul.f32 %v4040, %v4510
      %v4533 = vmul.f32 %v4055, %v4511
      %v4534 = vmul.f32 %v4070, %v4512
      %v4535 = vmul.f32 %v4085, %v4513
      %v4536 = vmul.f32 %v4100, %v4514
      %v4537 = vmul.f32 %v4115, %v4515
      %v4538 = vmul.f32 %v4130, %v4516
      %v4539 = vmul.f32 %v4145, %v4517
      %v4540 = vmul.f32 %v4160, %v4518
      %v4541 = vmul.f32 %v4175, %v4519
      %v4542 = vmul.f32 %v4190, %v4520
      %v4543 = vmul.f32 %v4205, %v4521
      %v4544 = vmul.f32 %v4220, %v4522
      %v4545 = vmul.f32 %v4235, %v4523
      %v4546 = vmul.f32 %v4250, %v4524
      %v4547 = vmul.f32 %v4265, %v4525
      %v4548 = vmul.f32 %v4280, %v4526
      %v4549 = vmul.f32 %v4295, %v4527
      %v4550 = vmul.f32 %v4310, %v4528
      %v4551 = vmul.f32 %v4325, %v4529
      %v4552 = vmul.f32 %v4340, %v4530
      %v4553 = vmul.f32 %v4355, %v4531
      %v4554 = vsub.f32 0.0, %v3960
      %v4555 = vsub.f32 0.0, %v3961
      %v4556 = vsub.f32 0.0, %v3962
      %v4557 = vsub.f32 0.0, %v3963
      %v4558 = vsub.f32 0.0, %v3964
      %v4559 = vsub.f32 0.0, %v3965
      %v4560 = vsub.f32 0.0, %v3966
      %v4561 = vsub.f32 0.0, %v3967
      %v4562 = vsub.f32 0.0, %v3968
      %v4563 = vsub.f32 0.0, %v3969
      %v4564 = vsub.f32 0.0, %v3970
      %v4565 = vsub.f32 0.0, %v3971
      %v4566 = vsub.f32 0.0, %v3972
      %v4567 = vsub.f32 0.0, %v3973
      %v4568 = vsub.f32 0.0, %v3974
      %v4569 = vsub.f32 0.0, %v3975
      %v4570 = vsub.f32 0.0, %v3976
      %v4571 = vsub.f32 0.0, %v3977
      %v4572 = vsub.f32 0.0, %v3978
      %v4573 = vsub.f32 0.0, %v3979
      %v4574 = vsub.f32 0.0, %v3980
      %v4575 = vsub.f32 0.0, %v3981
      %v4576 = vmul.f32 %v4554, %v3960
      %v4577 = vmul.f32 %v4555, %v3961
      %v4578 = vmul.f32 %v4556, %v3962
      %v4579 = vmul.f32 %v4557, %v3963
      %v4580 = vmul.f32 %v4558, %v3964
      %v4581 = vmul.f32 %v4559, %v3965
      %v4582 = vmul.f32 %v4560, %v3966
      %v4583 = vmul.f32 %v4561, %v3967
      %v4584 = vmul.f32 %v4562, %v3968
      %v4585 = vmul.f32 %v4563, %v3969
      %v4586 = vmul.f32 %v4564, %v3970
      %v4587 = vmul.f32 %v4565, %v3971
      %v4588 = vmul.f32 %v4566, %v3972
      %v4589 = vmul.f32 %v4567, %v3973
      %v4590 = vmul.f32 %v4568, %v3974
      %v4591 = vmul.f32 %v4569, %v3975
      %v4592 = vmul.f32 %v4570, %v3976
      %v4593 = vmul.f32 %v4571, %v3977
      %v4594 = vmul.f32 %v4572, %v3978
      %v4595 = vmul.f32 %v4573, %v3979
      %v4596 = vmul.f32 %v4574, %v3980
      %v4597 = vmul.f32 %v4575, %v3981
      %v4598 = vmul.f32 %v4576, 1.442695
      %v4599 = vpow.pop %v4598
      %v4600 = vmul.f32 %v4577, 1.442695
      %v4601 = vpow.pop %v4600
      %v4602 = vmul.f32 %v4578, 1.442695
      %v4603 = vpow.pop %v4602
      %v4604 = vmul.f32 %v4579, 1.442695
      %v4605 = vpow.pop %v4604
      %v4606 = vmul.f32 %v4580, 1.442695
      %v4607 = vpow.pop %v4606
      %v4608 = vmul.f32 %v4581, 1.442695
      %v4609 = vpow.pop %v4608
      %v4610 = vmul.f32 %v4582, 1.442695
      %v4611 = vpow.pop %v4610
      %v4612 = vmul.f32 %v4583, 1.442695
      %v4613 = vpow.pop %v4612
      %v4614 = vmul.f32 %v4584, 1.442695
      %v4615 = vpow.pop %v4614
      %v4616 = vmul.f32 %v4585, 1.442695
      %v4617 = vpow.pop %v4616
      %v4618 = vmul.f32 %v4586, 1.442695
      %v4619 = vpow.pop %v4618
      %v4620 = vmul.f32 %v4587, 1.442695
      %v4621 = vpow.pop %v4620
      %v4622 = vmul.f32 %v4588, 1.442695
      %v4623 = vpow.pop %v4622
      %v4624 = vmul.f32 %v4589, 1.442695
      %v4625 = vpow.pop %v4624
      %v4626 = vmul.f32 %v4590, 1.442695
      %v4627 = vpow.pop %v4626
      %v4628 = vmul.f32 %v4591, 1.442695
      %v4629 = vpow.pop %v4628
      %v4630 = vmul.f32 %v4592, 1.442695
      %v4631 = vpow.pop %v4630
      %v4632 = vmul.f32 %v4593, 1.442695
      %v4633 = vpow.pop %v4632
      %v4634 = vmul.f32 %v4594, 1.442695
      %v4635 = vpow.pop %v4634
      %v4636 = vmul.f32 %v4595, 1.442695
      %v4637 = vpow.pop %v4636
      %v4638 = vmul.f32 %v4596, 1.442695
      %v4639 = vpow.pop %v4638
      %v4640 = vmul.f32 %v4597, 1.442695
      %v4641 = vpow.pop %v4640
      %v4642 = vmul.f32 %v4532, %v4599
      %v4643 = vmul.f32 %v4533, %v4601
      %v4644 = vmul.f32 %v4534, %v4603
      %v4645 = vmul.f32 %v4535, %v4605
      %v4646 = vmul.f32 %v4536, %v4607
      %v4647 = vmul.f32 %v4537, %v4609
      %v4648 = vmul.f32 %v4538, %v4611
      %v4649 = vmul.f32 %v4539, %v4613
      %v4650 = vmul.f32 %v4540, %v4615
      %v4651 = vmul.f32 %v4541, %v4617
      %v4652 = vmul.f32 %v4542, %v4619
      %v4653 = vmul.f32 %v4543, %v4621
      %v4654 = vmul.f32 %v4544, %v4623
      %v4655 = vmul.f32 %v4545, %v4625
      %v4656 = vmul.f32 %v4546, %v4627
      %v4657 = vmul.f32 %v4547, %v4629
      %v4658 = vmul.f32 %v4548, %v4631
      %v4659 = vmul.f32 %v4549, %v4633
      %v4660 = vmul.f32 %v4550, %v4635
      %v4661 = vmul.f32 %v4551, %v4637
      %v4662 = vmul.f32 %v4552, %v4639
      %v4663 = vmul.f32 %v4553, %v4641
      %v4664 = vsub.f32 1.0, %v4642
      %v4665 = vsub.f32 1.0, %v4643
      %v4666 = vsub.f32 1.0, %v4644
      %v4667 = vsub.f32 1.0, %v4645
      %v4668 = vsub.f32 1.0, %v4646
      %v4669 = vsub.f32 1.0, %v4647
      %v4670 = vsub.f32 1.0, %v4648
      %v4671 = vsub.f32 1.0, %v4649
      %v4672 = vsub.f32 1.0, %v4650
      %v4673 = vsub.f32 1.0, %v4651
      %v4674 = vsub.f32 1.0, %v4652
      %v4675 = vsub.f32 1.0, %v4653
      %v4676 = vsub.f32 1.0, %v4654
      %v4677 = vsub.f32 1.0, %v4655
      %v4678 = vsub.f32 1.0, %v4656
      %v4679 = vsub.f32 1.0, %v4657
      %v4680 = vsub.f32 1.0, %v4658
      %v4681 = vsub.f32 1.0, %v4659
      %v4682 = vsub.f32 1.0, %v4660
      %v4683 = vsub.f32 1.0, %v4661
      %v4684 = vsub.f32 1.0, %v4662
      %v4685 = vsub.f32 1.0, %v4663
      %v4686 = vmul.f32 %v3938, %v4664
      %v4687 = vmul.f32 %v3939, %v4665
      %v4688 = vmul.f32 %v3940, %v4666
      %v4689 = vmul.f32 %v3941, %v4667
      %v4690 = vmul.f32 %v3942, %v4668
      %v4691 = vmul.f32 %v3943, %v4669
      %v4692 = vmul.f32 %v3944, %v4670
      %v4693 = vmul.f32 %v3945, %v4671
      %v4694 = vmul.f32 %v3946, %v4672
      %v4695 = vmul.f32 %v3947, %v4673
      %v4696 = vmul.f32 %v3948, %v4674
      %v4697 = vmul.f32 %v3949, %v4675
      %v4698 = vmul.f32 %v3950, %v4676
      %v4699 = vmul.f32 %v3951, %v4677
      %v4700 = vmul.f32 %v3952, %v4678
      %v4701 = vmul.f32 %v3953, %v4679
      %v4702 = vmul.f32 %v3954, %v4680
      %v4703 = vmul.f32 %v3955, %v4681
      %v4704 = vmul.f32 %v3956, %v4682
      %v4705 = vmul.f32 %v3957, %v4683
      %v4706 = vmul.f32 %v3958, %v4684
      %v4707 = vmul.f32 %v3959, %v4685
      %v4708 = vadd.f32 %v4686, 1.0
      %v4709 = vadd.f32 %v4687, 1.0
      %v4710 = vadd.f32 %v4688, 1.0
      %v4711 = vadd.f32 %v4689, 1.0
      %v4712 = vadd.f32 %v4690, 1.0
      %v4713 = vadd.f32 %v4691, 1.0
      %v4714 = vadd.f32 %v4692, 1.0
      %v4715 = vadd.f32 %v4693, 1.0
      %v4716 = vadd.f32 %v4694, 1.0
      %v4717 = vadd.f32 %v4695, 1.0
      %v4718 = vadd.f32 %v4696, 1.0
      %v4719 = vadd.f32 %v4697, 1.0
      %v4720 = vadd.f32 %v4698, 1.0
      %v4721 = vadd.f32 %v4699, 1.0
      %v4722 = vadd.f32 %v4700, 1.0
      %v4723 = vadd.f32 %v4701, 1.0
      %v4724 = vadd.f32 %v4702, 1.0
      %v4725 = vadd.f32 %v4703, 1.0
      %v4726 = vadd.f32 %v4704, 1.0
      %v4727 = vadd.f32 %v4705, 1.0
      %v4728 = vadd.f32 %v4706, 1.0
      %v4729 = vadd.f32 %v4707, 1.0
      %v4730 = vmul.f32 %v3872, %v4708
      %v4731 = vmul.f32 %v3873, %v4709
      %v4732 = vmul.f32 %v3874, %v4710
      %v4733 = vmul.f32 %v3875, %v4711
      %v4734 = vmul.f32 %v3876, %v4712
      %v4735 = vmul.f32 %v3877, %v4713
      %v4736 = vmul.f32 %v3878, %v4714
      %v4737 = vmul.f32 %v3879, %v4715
      %v4738 = vmul.f32 %v3880, %v4716
      %v4739 = vmul.f32 %v3881, %v4717
      %v4740 = vmul.f32 %v3882, %v4718
      %v4741 = vmul.f32 %v3883, %v4719
      %v4742 = vmul.f32 %v3884, %v4720
      %v4743 = vmul.f32 %v3885, %v4721
      %v4744 = vmul.f32 %v3886, %v4722
      %v4745 = vmul.f32 %v3887, %v4723
      %v4746 = vmul.f32 %v3888, %v4724
      %v4747 = vmul.f32 %v3889, %v4725
      %v4748 = vmul.f32 %v3890, %v4726
      %v4749 = vmul.f32 %v3891, %v4727
      %v4750 = vmul.f32 %v3892, %v4728
      %v4751 = vmul.f32 %v3893, %v4729
      %v4752 = vld [vmem:[%s7] sm:$0xff]
      %v4753 = vld [vmem:[%s7 + $0x8] sm:$0xff]
      %v4754 = vld [vmem:[%s7 + $0x10] sm:$0xff]
      %v4755 = vld [vmem:[%s7 + $0x18] sm:$0xff]
      %v4756 = vld [vmem:[%s7 + $0x20] sm:$0xff]
      %v4757 = vld [vmem:[%s7 + $0x28] sm:$0xff]
      %v4758 = vld [vmem:[%s7 + $0x30] sm:$0xff]
      %v4759 = vld [vmem:[%s7 + $0x38] sm:$0xff]
      %v4760 = vld [vmem:[%s7 + $0x40] sm:$0xff]
      %v4761 = vld [vmem:[%s7 + $0x48] sm:$0xff]
      %v4762 = vld [vmem:[%s7 + $0x50] sm:$0xff]
      %v4763 = vld [vmem:[%s7 + $0x58] sm:$0xff]
      %v4764 = vld [vmem:[%s7 + $0x60] sm:$0xff]
      %v4765 = vld [vmem:[%s7 + $0x68] sm:$0xff]
      %v4766 = vld [vmem:[%s7 + $0x70] sm:$0xff]
      %v4767 = vld [vmem:[%s7 + $0x78] sm:$0xff]
      %v4768 = vld [vmem:[%s7 + $0x80] sm:$0xff]
      %v4769 = vld [vmem:[%s7 + $0x88] sm:$0xff]
      %v4770 = vld [vmem:[%s7 + $0x90] sm:$0xff]
      %v4771 = vld [vmem:[%s7 + $0x98] sm:$0xff]
      %v4772 = vld [vmem:[%s7 + $0xa0] sm:$0xff]
      %v4773 = vld [vmem:[%s7 + $0xa8] sm:$0xff]
      %v4774 = vld [vmem:[%s7 + $0xb0] sm:$0xff]
      %v4775 = vld [vmem:[%s7 + $0xb8] sm:$0xff]
      %v4776 = vld [vmem:[%s7 + $0xc0] sm:$0xff]
      %v4777 = vld [vmem:[%s7 + $0xc8] sm:$0xff]
      %v4778 = vld [vmem:[%s7 + $0xd0] sm:$0xff]
      %v4779 = vld [vmem:[%s7 + $0xd8] sm:$0xff]
      %v4780 = vld [vmem:[%s7 + $0xe0] sm:$0xff]
      %v4781 = vld [vmem:[%s7 + $0xe8] sm:$0xff]
      %v4782 = vld [vmem:[%s7 + $0xf0] sm:$0xff]
      %v4783 = vld [vmem:[%s7 + $0xf8] sm:$0xff]
      %v4784 = vld [vmem:[%s8] sm:$0x1]
      %v4786 = vperm.slane %v4784, 0
      %4788 = vmatpush.msra.mxu0 %v4767
      %4789 = vmatpush.msra.mxu0 %v4766
      %4790 = vmatpush.msra.mxu0 %v4765
      %4791 = vmatpush.msra.mxu0 %v4764
      %4792 = vmatpush.msra.mxu0 %v4763
      %4793 = vmatpush.msra.mxu0 %v4762
      %4794 = vmatpush.msra.mxu0 %v4761
      %4795 = vmatpush.msra.mxu0 %v4760
      %4796 = vmatpush.msra.mxu0 %v4759
      %4797 = vmatpush.msra.mxu0 %v4758
      %4798 = vmatpush.msra.mxu0 %v4757
      %4799 = vmatpush.msra.mxu0 %v4756
      %4800 = vmatpush.msra.mxu0 %v4755
      %4801 = vmatpush.msra.mxu0 %v4754
      %4802 = vmatpush.msra.mxu0 %v4753
      %4803 = vmatpush.msra.mxu0 %v4752
      %4804 = vmatmul.f32.gmra.mxu0 %v4730
      %v4805 = vpop.f32.mrf.mxu0
      %v4806 = vadd.f32 %v4786, %v4805
      %4807 = vmatmul.f32.gmra.mxu0 %v4732
      %v4808 = vpop.f32.mrf.mxu0
      %v4809 = vadd.f32 %v4786, %v4808
      %4810 = vmatmul.f32.gmra.mxu0 %v4734
      %v4811 = vpop.f32.mrf.mxu0
      %v4812 = vadd.f32 %v4786, %v4811
      %4813 = vmatmul.f32.gmra.mxu0 %v4736
      %v4814 = vpop.f32.mrf.mxu0
      %v4815 = vadd.f32 %v4786, %v4814
      %4816 = vmatmul.f32.gmra.mxu0 %v4738
      %v4817 = vpop.f32.mrf.mxu0
      %v4818 = vadd.f32 %v4786, %v4817
      %4819 = vmatmul.f32.gmra.mxu0 %v4740
      %v4820 = vpop.f32.mrf.mxu0
      %v4821 = vadd.f32 %v4786, %v4820
      %4822 = vmatmul.f32.gmra.mxu0 %v4742
      %v4823 = vpop.f32.mrf.mxu0
      %v4824 = vadd.f32 %v4786, %v4823
      %4825 = vmatmul.f32.gmra.mxu0 %v4744
      %v4826 = vpop.f32.mrf.mxu0
      %v4827 = vadd.f32 %v4786, %v4826
      %4828 = vmatmul.f32.gmra.mxu0 %v4746
      %v4829 = vpop.f32.mrf.mxu0
      %v4830 = vadd.f32 %v4786, %v4829
      %4831 = vmatmul.f32.gmra.mxu0 %v4748
      %v4832 = vpop.f32.mrf.mxu0
      %v4833 = vadd.f32 %v4786, %v4832
      %4834 = vmatmul.f32.gmra.mxu0 %v4750
      %v4835 = vpop.f32.mrf.mxu0
      %v4836 = vadd.f32 %v4786, %v4835
      %4837 = vdwg.mxu0
      %4838 = vmatpush.msra.mxu0 %v4783
      %4839 = vmatpush.msra.mxu0 %v4782
      %4840 = vmatpush.msra.mxu0 %v4781
      %4841 = vmatpush.msra.mxu0 %v4780
      %4842 = vmatpush.msra.mxu0 %v4779
      %4843 = vmatpush.msra.mxu0 %v4778
      %4844 = vmatpush.msra.mxu0 %v4777
      %4845 = vmatpush.msra.mxu0 %v4776
      %4846 = vmatpush.msra.mxu0 %v4775
      %4847 = vmatpush.msra.mxu0 %v4774
      %4848 = vmatpush.msra.mxu0 %v4773
      %4849 = vmatpush.msra.mxu0 %v4772
      %4850 = vmatpush.msra.mxu0 %v4771
      %4851 = vmatpush.msra.mxu0 %v4770
      %4852 = vmatpush.msra.mxu0 %v4769
      %4853 = vmatpush.msra.mxu0 %v4768
      %4854 = vmatmul.f32.gmra.mxu0 %v4731
      %v4855 = vpop.f32.mrf.mxu0
      %v4856 = vadd.f32 %v4806, %v4855
      %4857 = vmatmul.f32.gmra.mxu0 %v4733
      %v4858 = vpop.f32.mrf.mxu0
      %v4859 = vadd.f32 %v4809, %v4858
      %4860 = vmatmul.f32.gmra.mxu0 %v4735
      %v4861 = vpop.f32.mrf.mxu0
      %v4862 = vadd.f32 %v4812, %v4861
      %4863 = vmatmul.f32.gmra.mxu0 %v4737
      %v4864 = vpop.f32.mrf.mxu0
      %v4865 = vadd.f32 %v4815, %v4864
      %4866 = vmatmul.f32.gmra.mxu0 %v4739
      %v4867 = vpop.f32.mrf.mxu0
      %v4868 = vadd.f32 %v4818, %v4867
      %4869 = vmatmul.f32.gmra.mxu0 %v4741
      %v4870 = vpop.f32.mrf.mxu0
      %v4871 = vadd.f32 %v4821, %v4870
      %4872 = vmatmul.f32.gmra.mxu0 %v4743
      %v4873 = vpop.f32.mrf.mxu0
      %v4874 = vadd.f32 %v4824, %v4873
      %4875 = vmatmul.f32.gmra.mxu0 %v4745
      %v4876 = vpop.f32.mrf.mxu0
      %v4877 = vadd.f32 %v4827, %v4876
      %4878 = vmatmul.f32.gmra.mxu0 %v4747
      %v4879 = vpop.f32.mrf.mxu0
      %v4880 = vadd.f32 %v4830, %v4879
      %4881 = vmatmul.f32.gmra.mxu0 %v4749
      %v4882 = vpop.f32.mrf.mxu0
      %v4883 = vadd.f32 %v4833, %v4882
      %4884 = vmatmul.f32.gmra.mxu0 %v4751
      %v4885 = vpop.f32.mrf.mxu0
      %v4886 = vadd.f32 %v4836, %v4885
      %4887 = vdwg.mxu0
      %v4888 = vsub.f32 0.0, %v4856
      %v4889 = vsub.f32 0.0, %v4859
      %v4890 = vsub.f32 0.0, %v4862
      %v4891 = vsub.f32 0.0, %v4865
      %v4892 = vsub.f32 0.0, %v4868
      %v4893 = vsub.f32 0.0, %v4871
      %v4894 = vsub.f32 0.0, %v4874
      %v4895 = vsub.f32 0.0, %v4877
      %v4896 = vsub.f32 0.0, %v4880
      %v4897 = vsub.f32 0.0, %v4883
      %v4898 = vsub.f32 0.0, %v4886
      %v4899 = vmul.f32 %v4888, 1.442695
      %v4900 = vpow.pop %v4899
      %v4901 = vmul.f32 %v4889, 1.442695
      %v4902 = vpow.pop %v4901
      %v4903 = vmul.f32 %v4890, 1.442695
      %v4904 = vpow.pop %v4903
      %v4905 = vmul.f32 %v4891, 1.442695
      %v4906 = vpow.pop %v4905
      %v4907 = vmul.f32 %v4892, 1.442695
      %v4908 = vpow.pop %v4907
      %v4909 = vmul.f32 %v4893, 1.442695
      %v4910 = vpow.pop %v4909
      %v4911 = vmul.f32 %v4894, 1.442695
      %v4912 = vpow.pop %v4911
      %v4913 = vmul.f32 %v4895, 1.442695
      %v4914 = vpow.pop %v4913
      %v4915 = vmul.f32 %v4896, 1.442695
      %v4916 = vpow.pop %v4915
      %v4917 = vmul.f32 %v4897, 1.442695
      %v4918 = vpow.pop %v4917
      %v4919 = vmul.f32 %v4898, 1.442695
      %v4920 = vpow.pop %v4919
      %v4921 = vadd.f32 %v4900, 1.0
      %v4922 = vadd.f32 %v4902, 1.0
      %v4923 = vadd.f32 %v4904, 1.0
      %v4924 = vadd.f32 %v4906, 1.0
      %v4925 = vadd.f32 %v4908, 1.0
      %v4926 = vadd.f32 %v4910, 1.0
      %v4927 = vadd.f32 %v4912, 1.0
      %v4928 = vadd.f32 %v4914, 1.0
      %v4929 = vadd.f32 %v4916, 1.0
      %v4930 = vadd.f32 %v4918, 1.0
      %v4931 = vadd.f32 %v4920, 1.0
      %v4932 = vrcp.pop %v4921
      %v4933 = vrcp.pop %v4922
      %v4934 = vrcp.pop %v4923
      %v4935 = vrcp.pop %v4924
      %v4936 = vrcp.pop %v4925
      %v4937 = vrcp.pop %v4926
      %v4938 = vrcp.pop %v4927
      %v4939 = vrcp.pop %v4928
      %v4940 = vrcp.pop %v4929
      %v4941 = vrcp.pop %v4930
      %v4942 = vrcp.pop %v4931
      %4943 = vst.msk [vmem:[%s359] sm:$0xff] %vm398, %v4932
      %4944 = vst.msk [vmem:[%s359 + $0x8] sm:$0xff] %vm398, %v4933
      %4945 = vst.msk [vmem:[%s359 + $0x10] sm:$0xff] %vm398, %v4934
      %4946 = vst.msk [vmem:[%s359 + $0x18] sm:$0xff] %vm398, %v4935
      %4947 = vst.msk [vmem:[%s359 + $0x20] sm:$0xff] %vm398, %v4936
      %4948 = vst.msk [vmem:[%s359 + $0x28] sm:$0xff] %vm398, %v4937
      %4949 = vst.msk [vmem:[%s359 + $0x30] sm:$0xff] %vm398, %v4938
      %4950 = vst.msk [vmem:[%s359 + $0x38] sm:$0xff] %vm398, %v4939
      %4951 = vst.msk [vmem:[%s359 + $0x40] sm:$0xff] %vm398, %v4940
      %4952 = vst.msk [vmem:[%s359 + $0x48] sm:$0xff] %vm398, %v4941
      %vm4953 = vcmask 122880
      %4954 = vst.msk [vmem:[%s359 + $0x50] sm:$0x1] %vm4953, %v4942
      %p4955 = scmp.lt.s32.totalorder %s21, 1
      %s4956 = scalar_select %p4955, %s21, 1
      %s4957 = smul.addr %s4956, 11
      %s4958 = smul.addr %s4957, 8
      %s4959 = scalar_lea.vmem %s10, %s4958
      // Predicated region
      $region61: #{generator_forward.3} parent=59 // pred_check
        %p4960 = pneg %p254
      $region62: #{generator_forward.3} parent=59 // pred_check_branch
        %4962 = sbr.rel (%p4960) target = $region64
      $region63: #{generator_forward.3} parent=59 // pred_region
        _
      $region64: #{generator_forward.3} parent=59 // pred_fallthru
        _
    $region60: #{generator_forward.3} parent=5 // pred_fallthru
      _
    %p4963 = scmp.le.s32.totalorder 2, %s16
    // Predicated region
    $region65: #{generator_forward.3} parent=5 // pred_check
      %p4964 = pneg %p4963
    $region66: #{generator_forward.3} parent=5 // pred_check_branch
      %4966 = sbr.rel (%p4964) target = $region68
    $region67: #{generator_forward.3} parent=5 // pred_region
      %s4967 = ssub.s32 %s16, 2
      // Predicated region
      $region69: #{generator_forward.3} parent=67 // pred_check
        %p4968 = pneg %p260
      $region70: #{generator_forward.3} parent=67 // pred_check_branch
        %4970 = sbr.rel (%p4968) target = $region72
      $region71: #{generator_forward.3} parent=67 // pred_region
        %p4971 = scmp.lt.s32.totalorder %s22, 1
        %s4972 = scalar_select %p4971, %s22, 1
        %s4973 = smul.addr %s4972, 11
        %s4974 = smul.addr %s4973, 8
        %s4975 = scalar_lea.vmem %s10, %s4974
      $region72: #{generator_forward.3} parent=67 // pred_fallthru
        _
    $region68: #{generator_forward.3} parent=5 // pred_fallthru
      _
  $region6: #{generator_forward.3} parent=0 // loop_footer
    %s20 = sadd.s32 1, %s16
  $region7: #{generator_forward.3} parent=0 // loop_footer_branch
    %15 = sbr.rel target = $region3
  $region8: #{generator_forward.3} parent=0 // loop_exit
    _

</llo_original>
